<compile_context>
chip_gen: v6e
topology: v6e:2x2x1
jax: 0.10.0
libtpu: 0.0.40
codegen_flags: <defaults>
</compile_context>

<pallas_src>
import jax
import jax.numpy as jnp
from jax.experimental import pallas as pl
from jax.experimental.pallas import tpu as pltpu

# ---- model hyper-params (small, consistent with the module) -----------------
B = 2          # batch
R = 8          # number of ROI regions (roi_features.shape[1])
H = 128        # hidden size (module uses 1024; scaled down, lane-aligned)
V = 32         # NUM_WORDS (vocab size)
T = 4          # text_max_len (TOTAL_MAX_WORDS);  T*V == 128 -> lane-dense slab
L = 2          # rnn_layers
SOS = 1        # word2idx['<SOS>']

_vmem = pl.BlockSpec(memory_space=pltpu.MemorySpace.VMEM)


# -------------------- fully fused greedy-decode kernel ------------------------
def _decode_kernel(roi_ref, mask_ref, embed_ref,
                   wq_ref, bq_ref, wkv_ref, bkv_ref,
                   w_lstm_ref, b_lstm_ref, wp_ref, bp_ref,
                   logits_ref):
    f32 = jnp.float32
    roi = roi_ref[...].astype(f32)                          # (B, R, H)
    mask = mask_ref[...].astype(f32)[:, None, :]            # (B, 1, R)
    embed = embed_ref[...].astype(f32)                      # (V, H)
    wq, wkv, wp = wq_ref[...], wkv_ref[...], wp_ref[...]

    # Hoisted bias broadcasts / weight loads / iota (JAX does not CSE these).
    bq = jnp.broadcast_to(bq_ref[...], (B, H))
    bp = jnp.broadcast_to(bp_ref[...], (B, V))
    w_lstm = [w_lstm_ref[l] for l in range(L)]              # (2H, 4H) each
    b_lstm = [jnp.broadcast_to(b_lstm_ref[l], (B, 4 * H)) for l in range(L)]
    colf = jax.lax.broadcasted_iota(jnp.int32, (B, V), 1).astype(f32)

    # ---- keys / values: loop-invariant -> computed once (fused Wk|Wv matmul) ----
    roi_flat = roi.reshape(B * R, H)                        # (16, 128)
    kv = jnp.tanh(jnp.dot(roi_flat, wkv, preferred_element_type=f32)
                  + jnp.broadcast_to(bkv_ref[...], (B * R, 2 * H)))
    keys = kv[:, :H].reshape(B, R, H)                       # (B, R, H)
    values = kv[:, H:].reshape(B, R, H)                     # (B, R, H)

    def attention(q_in):                                    # (B, H) -> (B, H)
        query = jnp.tanh(jnp.dot(q_in, wq, preferred_element_type=f32) + bq)
        q3 = query[:, None, :]                              # (B, 1, H)
        scores = jnp.einsum('bqh,brh->bqr', q3, keys,
                            preferred_element_type=f32)     # (B, 1, R)
        scores = scores - jnp.max(scores, axis=-1, keepdims=True)
        e = jnp.exp(scores)
        w = e / jnp.sum(e, axis=-1, keepdims=True)          # softmax over regions
        # NOTE: reference adds the mask AFTER softmax -- reproduced exactly.
        w = w + mask
        ctx = jnp.einsum('bqr,brh->bqh', w, values,
                         preferred_element_type=f32)        # (B, 1, H)
        return ctx.reshape(B, H)

    def projection(ctx, hid):                               # (B,H),(B,H) -> (B,V)
        cat = jnp.concatenate([ctx, hid], axis=-1)          # (B, 2H)
        return jnp.dot(cat, wp, preferred_element_type=f32) + bp

    def greedy_embed(logits):                               # (B, V) -> (B, H)
        # first-max tie-break (matches torch.max) via iota-compare one-hot
        is_max = logits == jnp.max(logits, axis=-1, keepdims=True)
        idx = jnp.min(jnp.where(is_max, colf, float(V)), axis=-1, keepdims=True)
        onehot = (colf == idx).astype(f32)                  # one-hot(argmax)
        return jnp.dot(onehot, embed, preferred_element_type=f32)

    def lstm_step(x, h, c):
        for l in range(L):                                  # static unroll
            xh = jnp.concatenate([x, h[l]], axis=-1)        # (B, 2H)
            gates = (jnp.dot(xh, w_lstm[l], preferred_element_type=f32)
                     + b_lstm[l])                           # (B, 4H)
            i = jax.nn.sigmoid(gates[:, 0:H])
            f = jax.nn.sigmoid(gates[:, H:2 * H])
            g = jnp.tanh(gates[:, 2 * H:3 * H])
            o = jax.nn.sigmoid(gates[:, 3 * H:4 * H])
            c[l] = f * c[l] + i * g
            h[l] = o * jnp.tanh(c[l])
            x = h[l]
        return x, h, c

    # ---- <SOS> step ----
    sos_onehot = (colf == float(SOS)).astype(f32)           # (B, V)
    start_embed = jnp.dot(sos_onehot, embed, preferred_element_type=f32)  # (B, H)
    attn_sos = attention(start_embed)
    h = [attn_sos for _ in range(L)]                        # h0 = attention_SOS (all layers)
    c = [jnp.zeros((B, H), f32) for _ in range(L)]
    step_logits = [projection(attn_sos, start_embed)]       # step 0 logits (B, V)

    # ---- greedy decode, statically unrolled (T - 1 steps) ----
    out = start_embed
    for _ in range(T - 1):
        out, h, c = lstm_step(out, h, c)                    # out = top-layer hidden
        ctx = attention(h[L - 1])
        logits = projection(ctx, out)
        step_logits.append(logits)
        out = greedy_embed(logits)

    # ONE unmasked lane-dense store of the whole (B, T*V) slab.
    logits_ref[...] = jnp.concatenate(step_logits, axis=-1).astype(logits_ref.dtype)


def decode(roi, mask, params):
    return pl.pallas_call(
        _decode_kernel,
        out_shape=jax.ShapeDtypeStruct((B, T * V), jnp.float32),
        in_specs=[_vmem] * 11,
        out_specs=_vmem,
    )(roi, mask, params['embed'],
      params['wq'], params['bq'], params['wkv'], params['bkv'],
      params['w_lstm'], params['b_lstm'], params['wp'], params['bp'])


# ---------------------------------- forward ----------------------------------
def forward(roi, params):
    # mask: 0 for regions with non-zero feature sum, -inf for all-zero regions.
    # (Added AFTER softmax inside the attention, exactly as in the reference.)
    sum_reg = roi.sum(axis=2)                               # (B, R)
    mask = jnp.where(sum_reg != 0, 0.0, -jnp.inf).astype(jnp.float32)

    slab = decode(roi, mask, params)                        # (B, T*V) lane-dense
    pred = slab.reshape(B, T, V)                            # (B, T, V)
    return jnp.transpose(pred, (0, 2, 1))                   # (B, V, T)


# ------------------------------- init & driver --------------------------------
def init_params(key):
    ks = jax.random.split(key, 9)
    s = 0.1
    rnd = lambda k, shape: jax.random.normal(k, shape, jnp.float32) * s
    return dict(
        wq=rnd(ks[0], (H, H)),        bq=rnd(ks[1], (1, H)),
        wkv=rnd(ks[2], (H, 2 * H)),   bkv=rnd(ks[3], (1, 2 * H)),   # Wk | Wv concat
        w_lstm=rnd(ks[4], (L, 2 * H, 4 * H)),   # per layer [W_ih ; W_hh] (transposed)
        b_lstm=rnd(ks[5], (L, 1, 4 * H)),       # combined b_ih + b_hh
        wp=rnd(ks[6], (2 * H, V)),    bp=rnd(ks[7], (1, V)),
        embed=rnd(ks[8], (V, H)),
    )


if __name__ == "__main__":
    key = jax.random.PRNGKey(0)
    k_roi, k_par = jax.random.split(key)
    roi_features = jax.random.normal(k_roi, (B, R, H), jnp.float32)
    params = init_params(k_par)

    pred = jax.jit(forward)(roi_features, params)
    pred = jax.block_until_ready(pred)
    assert pred.shape == (B, V, T), pred.shape
    assert bool(jnp.all(jnp.isfinite(pred))), "non-finite logits"
    print("KERNEL_OK")
</pallas_src>

<mosaic_0001>
module attributes {stable_mosaic.version = 11 : i64} {
  func.func @_decode_kernel(%arg0: memref<2x8x128xf32, #tpu.memory_space<vmem>>, %arg1: memref<2x8xf32, #tpu.memory_space<vmem>>, %arg2: memref<32x128xf32, #tpu.memory_space<vmem>>, %arg3: memref<128x128xf32, #tpu.memory_space<vmem>>, %arg4: memref<1x128xf32, #tpu.memory_space<vmem>>, %arg5: memref<128x256xf32, #tpu.memory_space<vmem>>, %arg6: memref<1x256xf32, #tpu.memory_space<vmem>>, %arg7: memref<2x256x512xf32, #tpu.memory_space<vmem>>, %arg8: memref<2x1x512xf32, #tpu.memory_space<vmem>>, %arg9: memref<256x32xf32, #tpu.memory_space<vmem>>, %arg10: memref<1x32xf32, #tpu.memory_space<vmem>>, %arg11: memref<2x128xf32, #tpu.memory_space<vmem>>) attributes {dimension_semantics = [], scalar_prefetch = 0 : i64, scratch_operands = 0 : i64, tpu.core_type = #tpu.core_type<tc>} {
    %c0 = arith.constant 0 : index
    %c0_0 = arith.constant 0 : index
    %c0_1 = arith.constant 0 : index
    %0 = vector.load %arg0[%c0, %c0_0, %c0_1] : memref<2x8x128xf32, #tpu.memory_space<vmem>>, vector<2x8x128xf32>
    %c0_2 = arith.constant 0 : index
    %c0_3 = arith.constant 0 : index
    %1 = vector.load %arg1[%c0_2, %c0_3] : memref<2x8xf32, #tpu.memory_space<vmem>>, vector<2x8xf32>
    %2 = vector.shape_cast %1 : vector<2x8xf32> to vector<2x1x8xf32>
    %c0_4 = arith.constant 0 : index
    %c0_5 = arith.constant 0 : index
    %3 = vector.load %arg2[%c0_4, %c0_5] : memref<32x128xf32, #tpu.memory_space<vmem>>, vector<32x128xf32>
    %c0_6 = arith.constant 0 : index
    %c0_7 = arith.constant 0 : index
    %4 = vector.load %arg3[%c0_6, %c0_7] : memref<128x128xf32, #tpu.memory_space<vmem>>, vector<128x128xf32>
    %c0_8 = arith.constant 0 : index
    %c0_9 = arith.constant 0 : index
    %5 = vector.load %arg5[%c0_8, %c0_9] : memref<128x256xf32, #tpu.memory_space<vmem>>, vector<128x256xf32>
    %c0_10 = arith.constant 0 : index
    %c0_11 = arith.constant 0 : index
    %6 = vector.load %arg9[%c0_10, %c0_11] : memref<256x32xf32, #tpu.memory_space<vmem>>, vector<256x32xf32>
    %c0_12 = arith.constant 0 : index
    %c0_13 = arith.constant 0 : index
    %7 = vector.load %arg4[%c0_12, %c0_13] : memref<1x128xf32, #tpu.memory_space<vmem>>, vector<1x128xf32>
    %8 = vector.shape_cast %7 : vector<1x128xf32> to vector<1x128xf32>
    %9 = vector.broadcast %8 : vector<1x128xf32> to vector<2x128xf32>
    %c0_14 = arith.constant 0 : index
    %c0_15 = arith.constant 0 : index
    %10 = vector.load %arg10[%c0_14, %c0_15] : memref<1x32xf32, #tpu.memory_space<vmem>>, vector<1x32xf32>
    %11 = vector.shape_cast %10 : vector<1x32xf32> to vector<1x32xf32>
    %12 = vector.broadcast %11 : vector<1x32xf32> to vector<2x32xf32>
    %c0_16 = arith.constant 0 : index
    %c0_17 = arith.constant 0 : index
    %c0_18 = arith.constant 0 : index
    %13 = vector.load %arg7[%c0_16, %c0_17, %c0_18] : memref<2x256x512xf32, #tpu.memory_space<vmem>>, vector<1x256x512xf32>
    %14 = vector.shape_cast %13 : vector<1x256x512xf32> to vector<256x512xf32>
    %c1 = arith.constant 1 : index
    %c0_19 = arith.constant 0 : index
    %c0_20 = arith.constant 0 : index
    %15 = vector.load %arg7[%c1, %c0_19, %c0_20] : memref<2x256x512xf32, #tpu.memory_space<vmem>>, vector<1x256x512xf32>
    %16 = vector.shape_cast %15 : vector<1x256x512xf32> to vector<256x512xf32>
    %c0_21 = arith.constant 0 : index
    %c0_22 = arith.constant 0 : index
    %c0_23 = arith.constant 0 : index
    %17 = vector.load %arg8[%c0_21, %c0_22, %c0_23] : memref<2x1x512xf32, #tpu.memory_space<vmem>>, vector<1x1x512xf32>
    %18 = vector.shape_cast %17 : vector<1x1x512xf32> to vector<1x512xf32>
    %19 = vector.shape_cast %18 : vector<1x512xf32> to vector<1x512xf32>
    %20 = vector.broadcast %19 : vector<1x512xf32> to vector<2x512xf32>
    %c1_24 = arith.constant 1 : index
    %c0_25 = arith.constant 0 : index
    %c0_26 = arith.constant 0 : index
    %21 = vector.load %arg8[%c1_24, %c0_25, %c0_26] : memref<2x1x512xf32, #tpu.memory_space<vmem>>, vector<1x1x512xf32>
    %22 = vector.shape_cast %21 : vector<1x1x512xf32> to vector<1x512xf32>
    %23 = vector.shape_cast %22 : vector<1x512xf32> to vector<1x512xf32>
    %24 = vector.broadcast %23 : vector<1x512xf32> to vector<2x512xf32>
    %25 = tpu.iota {dimensions = array<i32: 1>} : vector<2x32xi32>
    %26 = arith.sitofp %25 : vector<2x32xi32> to vector<2x32xf32>
    %27 = vector.shape_cast %0 : vector<2x8x128xf32> to vector<16x128xf32>
    %cst = arith.constant dense<0.000000e+00> : vector<16x256xf32>
    %28 = tpu.matmul %27, %5, %cst {dimension_numbers = #tpu.dot_dimension_numbers<[1], [0], [0], [1], [0, 0, 1, 1], [], []>} : vector<16x128xf32>, vector<128x256xf32>, vector<16x256xf32> -> vector<16x256xf32>
    %c0_27 = arith.constant 0 : index
    %c0_28 = arith.constant 0 : index
    %29 = vector.load %arg6[%c0_27, %c0_28] : memref<1x256xf32, #tpu.memory_space<vmem>>, vector<1x256xf32>
    %30 = vector.shape_cast %29 : vector<1x256xf32> to vector<1x256xf32>
    %31 = vector.broadcast %30 : vector<1x256xf32> to vector<16x256xf32>
    %32 = arith.addf %28, %31 : vector<16x256xf32>
    %33 = math.tanh %32 : vector<16x256xf32>
    %34 = vector.extract_strided_slice %33 {offsets = [0, 0], sizes = [16, 128], strides = [1, 1]} : vector<16x256xf32> to vector<16x128xf32>
    %35 = vector.shape_cast %34 : vector<16x128xf32> to vector<2x8x128xf32>
    %36 = vector.extract_strided_slice %33 {offsets = [0, 128], sizes = [16, 128], strides = [1, 1]} : vector<16x256xf32> to vector<16x128xf32>
    %37 = vector.shape_cast %36 : vector<16x128xf32> to vector<2x8x128xf32>
    %cst_29 = arith.constant 1.000000e+00 : f32
    %38 = vector.broadcast %cst_29 : f32 to vector<2x32xf32>
    %39 = arith.cmpf oeq, %26, %38 : vector<2x32xf32>
    %40 = arith.extui %39 : vector<2x32xi1> to vector<2x32xi32>
    %41 = arith.sitofp %40 : vector<2x32xi32> to vector<2x32xf32>
    %cst_30 = arith.constant dense<0.000000e+00> : vector<2x128xf32>
    %42 = tpu.matmul %41, %3, %cst_30 {dimension_numbers = #tpu.dot_dimension_numbers<[1], [0], [0], [1], [0, 0, 1, 1], [], []>} : vector<2x32xf32>, vector<32x128xf32>, vector<2x128xf32> -> vector<2x128xf32>
    %cst_31 = arith.constant dense<0.000000e+00> : vector<2x128xf32>
    %43 = tpu.matmul %42, %4, %cst_31 {dimension_numbers = #tpu.dot_dimension_numbers<[1], [0], [0], [1], [0, 0, 1, 1], [], []>} : vector<2x128xf32>, vector<128x128xf32>, vector<2x128xf32> -> vector<2x128xf32>
    %44 = arith.addf %43, %9 : vector<2x128xf32>
    %45 = math.tanh %44 : vector<2x128xf32>
    %46 = vector.shape_cast %45 : vector<2x128xf32> to vector<2x1x128xf32>
    "tpu.trace_start"() <{level = 10 : i32, message = "bqh,brh->bqr"}> : () -> ()
    %cst_32 = arith.constant dense<0.000000e+00> : vector<2x1x8xf32>
    %47 = tpu.matmul %46, %35, %cst_32 {dimension_numbers = #tpu.dot_dimension_numbers<[2], [2], [1], [1], [0, 0, 0, 1, 1, 1], [0], [0]>} : vector<2x1x128xf32>, vector<2x8x128xf32>, vector<2x1x8xf32> -> vector<2x1x8xf32>
    "tpu.trace_stop"() : () -> ()
    %cst_33 = arith.constant dense<0xFF800000> : vector<2x1xf32>
    %48 = vector.multi_reduction <maximumf>, %47, %cst_33 [2] : vector<2x1x8xf32> to vector<2x1xf32>
    %49 = vector.shape_cast %48 : vector<2x1xf32> to vector<2x1x1xf32>
    %50 = vector.broadcast %49 : vector<2x1x1xf32> to vector<2x1x8xf32>
    %51 = arith.subf %47, %50 : vector<2x1x8xf32>
    %52 = math.exp %51 : vector<2x1x8xf32>
    %cst_34 = arith.constant dense<0.000000e+00> : vector<2x1xf32>
    %53 = vector.multi_reduction <add>, %52, %cst_34 [2] : vector<2x1x8xf32> to vector<2x1xf32>
    %54 = vector.shape_cast %53 : vector<2x1xf32> to vector<2x1x1xf32>
    %55 = vector.broadcast %54 : vector<2x1x1xf32> to vector<2x1x8xf32>
    %56 = arith.divf %52, %55 : vector<2x1x8xf32>
    %57 = arith.addf %56, %2 : vector<2x1x8xf32>
    "tpu.trace_start"() <{level = 10 : i32, message = "bqr,brh->bqh"}> : () -> ()
    %cst_35 = arith.constant dense<0.000000e+00> : vector<2x1x128xf32>
    %58 = tpu.matmul %57, %37, %cst_35 {dimension_numbers = #tpu.dot_dimension_numbers<[2], [1], [1], [2], [0, 0, 0, 1, 1, 2], [0], [0]>} : vector<2x1x8xf32>, vector<2x8x128xf32>, vector<2x1x128xf32> -> vector<2x1x128xf32>
    "tpu.trace_stop"() : () -> ()
    %59 = vector.shape_cast %58 : vector<2x1x128xf32> to vector<2x128xf32>
    %cst_36 = arith.constant 0.000000e+00 : f32
    %60 = vector.broadcast %cst_36 : f32 to vector<2x128xf32>
    %cst_37 = arith.constant 0.000000e+00 : f32
    %61 = vector.broadcast %cst_37 : f32 to vector<2x128xf32>
    %62 = tpu.concatenate %59, %42 in 1 : vector<2x128xf32>, vector<2x128xf32> -> vector<2x256xf32>
    %cst_38 = arith.constant dense<0.000000e+00> : vector<2x32xf32>
    %63 = tpu.matmul %62, %6, %cst_38 {dimension_numbers = #tpu.dot_dimension_numbers<[1], [0], [0], [1], [0, 0, 1, 1], [], []>} : vector<2x256xf32>, vector<256x32xf32>, vector<2x32xf32> -> vector<2x32xf32>
    %64 = arith.addf %63, %12 : vector<2x32xf32>
    %65 = tpu.concatenate %42, %59 in 1 : vector<2x128xf32>, vector<2x128xf32> -> vector<2x256xf32>
    %cst_39 = arith.constant dense<0.000000e+00> : vector<2x512xf32>
    %66 = tpu.matmul %65, %14, %cst_39 {dimension_numbers = #tpu.dot_dimension_numbers<[1], [0], [0], [1], [0, 0, 1, 1], [], []>} : vector<2x256xf32>, vector<256x512xf32>, vector<2x512xf32> -> vector<2x512xf32>
    %67 = arith.addf %66, %20 : vector<2x512xf32>
    %68 = vector.extract_strided_slice %67 {offsets = [0, 0], sizes = [2, 128], strides = [1, 1]} : vector<2x512xf32> to vector<2x128xf32>
    %69 = arith.negf %68 : vector<2x128xf32>
    %70 = math.exp %69 : vector<2x128xf32>
    %cst_40 = arith.constant 1.000000e+00 : f32
    %71 = vector.broadcast %cst_40 : f32 to vector<2x128xf32>
    %72 = arith.addf %71, %70 : vector<2x128xf32>
    %73 = arith.divf %71, %72 : vector<2x128xf32>
    %74 = vector.extract_strided_slice %67 {offsets = [0, 128], sizes = [2, 128], strides = [1, 1]} : vector<2x512xf32> to vector<2x128xf32>
    %75 = arith.negf %74 : vector<2x128xf32>
    %76 = math.exp %75 : vector<2x128xf32>
    %cst_41 = arith.constant 1.000000e+00 : f32
    %77 = vector.broadcast %cst_41 : f32 to vector<2x128xf32>
    %78 = arith.addf %77, %76 : vector<2x128xf32>
    %79 = arith.divf %77, %78 : vector<2x128xf32>
    %80 = vector.extract_strided_slice %67 {offsets = [0, 256], sizes = [2, 128], strides = [1, 1]} : vector<2x512xf32> to vector<2x128xf32>
    %81 = math.tanh %80 : vector<2x128xf32>
    %82 = vector.extract_strided_slice %67 {offsets = [0, 384], sizes = [2, 128], strides = [1, 1]} : vector<2x512xf32> to vector<2x128xf32>
    %83 = arith.negf %82 : vector<2x128xf32>
    %84 = math.exp %83 : vector<2x128xf32>
    %cst_42 = arith.constant 1.000000e+00 : f32
    %85 = vector.broadcast %cst_42 : f32 to vector<2x128xf32>
    %86 = arith.addf %85, %84 : vector<2x128xf32>
    %87 = arith.divf %85, %86 : vector<2x128xf32>
    %88 = arith.mulf %79, %60 : vector<2x128xf32>
    %89 = arith.mulf %73, %81 : vector<2x128xf32>
    %90 = arith.addf %88, %89 : vector<2x128xf32>
    %91 = math.tanh %90 : vector<2x128xf32>
    %92 = arith.mulf %87, %91 : vector<2x128xf32>
    %93 = tpu.concatenate %92, %59 in 1 : vector<2x128xf32>, vector<2x128xf32> -> vector<2x256xf32>
    %cst_43 = arith.constant dense<0.000000e+00> : vector<2x512xf32>
    %94 = tpu.matmul %93, %16, %cst_43 {dimension_numbers = #tpu.dot_dimension_numbers<[1], [0], [0], [1], [0, 0, 1, 1], [], []>} : vector<2x256xf32>, vector<256x512xf32>, vector<2x512xf32> -> vector<2x512xf32>
    %95 = arith.addf %94, %24 : vector<2x512xf32>
    %96 = vector.extract_strided_slice %95 {offsets = [0, 0], sizes = [2, 128], strides = [1, 1]} : vector<2x512xf32> to vector<2x128xf32>
    %97 = arith.negf %96 : vector<2x128xf32>
    %98 = math.exp %97 : vector<2x128xf32>
    %cst_44 = arith.constant 1.000000e+00 : f32
    %99 = vector.broadcast %cst_44 : f32 to vector<2x128xf32>
    %100 = arith.addf %99, %98 : vector<2x128xf32>
    %101 = arith.divf %99, %100 : vector<2x128xf32>
    %102 = vector.extract_strided_slice %95 {offsets = [0, 128], sizes = [2, 128], strides = [1, 1]} : vector<2x512xf32> to vector<2x128xf32>
    %103 = arith.negf %102 : vector<2x128xf32>
    %104 = math.exp %103 : vector<2x128xf32>
    %cst_45 = arith.constant 1.000000e+00 : f32
    %105 = vector.broadcast %cst_45 : f32 to vector<2x128xf32>
    %106 = arith.addf %105, %104 : vector<2x128xf32>
    %107 = arith.divf %105, %106 : vector<2x128xf32>
    %108 = vector.extract_strided_slice %95 {offsets = [0, 256], sizes = [2, 128], strides = [1, 1]} : vector<2x512xf32> to vector<2x128xf32>
    %109 = math.tanh %108 : vector<2x128xf32>
    %110 = vector.extract_strided_slice %95 {offsets = [0, 384], sizes = [2, 128], strides = [1, 1]} : vector<2x512xf32> to vector<2x128xf32>
    %111 = arith.negf %110 : vector<2x128xf32>
    %112 = math.exp %111 : vector<2x128xf32>
    %cst_46 = arith.constant 1.000000e+00 : f32
    %113 = vector.broadcast %cst_46 : f32 to vector<2x128xf32>
    %114 = arith.addf %113, %112 : vector<2x128xf32>
    %115 = arith.divf %113, %114 : vector<2x128xf32>
    %116 = arith.mulf %107, %61 : vector<2x128xf32>
    %117 = arith.mulf %101, %109 : vector<2x128xf32>
    %118 = arith.addf %116, %117 : vector<2x128xf32>
    %119 = math.tanh %118 : vector<2x128xf32>
    %120 = arith.mulf %115, %119 : vector<2x128xf32>
    %cst_47 = arith.constant dense<0.000000e+00> : vector<2x128xf32>
    %121 = tpu.matmul %120, %4, %cst_47 {dimension_numbers = #tpu.dot_dimension_numbers<[1], [0], [0], [1], [0, 0, 1, 1], [], []>} : vector<2x128xf32>, vector<128x128xf32>, vector<2x128xf32> -> vector<2x128xf32>
    %122 = arith.addf %121, %9 : vector<2x128xf32>
    %123 = math.tanh %122 : vector<2x128xf32>
    %124 = vector.shape_cast %123 : vector<2x128xf32> to vector<2x1x128xf32>
    "tpu.trace_start"() <{level = 10 : i32, message = "bqh,brh->bqr"}> : () -> ()
    %cst_48 = arith.constant dense<0.000000e+00> : vector<2x1x8xf32>
    %125 = tpu.matmul %124, %35, %cst_48 {dimension_numbers = #tpu.dot_dimension_numbers<[2], [2], [1], [1], [0, 0, 0, 1, 1, 1], [0], [0]>} : vector<2x1x128xf32>, vector<2x8x128xf32>, vector<2x1x8xf32> -> vector<2x1x8xf32>
    "tpu.trace_stop"() : () -> ()
    %cst_49 = arith.constant dense<0xFF800000> : vector<2x1xf32>
    %126 = vector.multi_reduction <maximumf>, %125, %cst_49 [2] : vector<2x1x8xf32> to vector<2x1xf32>
    %127 = vector.shape_cast %126 : vector<2x1xf32> to vector<2x1x1xf32>
    %128 = vector.broadcast %127 : vector<2x1x1xf32> to vector<2x1x8xf32>
    %129 = arith.subf %125, %128 : vector<2x1x8xf32>
    %130 = math.exp %129 : vector<2x1x8xf32>
    %cst_50 = arith.constant dense<0.000000e+00> : vector<2x1xf32>
    %131 = vector.multi_reduction <add>, %130, %cst_50 [2] : vector<2x1x8xf32> to vector<2x1xf32>
    %132 = vector.shape_cast %131 : vector<2x1xf32> to vector<2x1x1xf32>
    %133 = vector.broadcast %132 : vector<2x1x1xf32> to vector<2x1x8xf32>
    %134 = arith.divf %130, %133 : vector<2x1x8xf32>
    %135 = arith.addf %134, %2 : vector<2x1x8xf32>
    "tpu.trace_start"() <{level = 10 : i32, message = "bqr,brh->bqh"}> : () -> ()
    %cst_51 = arith.constant dense<0.000000e+00> : vector<2x1x128xf32>
    %136 = tpu.matmul %135, %37, %cst_51 {dimension_numbers = #tpu.dot_dimension_numbers<[2], [1], [1], [2], [0, 0, 0, 1, 1, 2], [0], [0]>} : vector<2x1x8xf32>, vector<2x8x128xf32>, vector<2x1x128xf32> -> vector<2x1x128xf32>
    "tpu.trace_stop"() : () -> ()
    %137 = vector.shape_cast %136 : vector<2x1x128xf32> to vector<2x128xf32>
    %138 = tpu.concatenate %137, %120 in 1 : vector<2x128xf32>, vector<2x128xf32> -> vector<2x256xf32>
    %cst_52 = arith.constant dense<0.000000e+00> : vector<2x32xf32>
    %139 = tpu.matmul %138, %6, %cst_52 {dimension_numbers = #tpu.dot_dimension_numbers<[1], [0], [0], [1], [0, 0, 1, 1], [], []>} : vector<2x256xf32>, vector<256x32xf32>, vector<2x32xf32> -> vector<2x32xf32>
    %140 = arith.addf %139, %12 : vector<2x32xf32>
    %cst_53 = arith.constant dense<0xFF800000> : vector<2xf32>
    %141 = vector.multi_reduction <maximumf>, %140, %cst_53 [1] : vector<2x32xf32> to vector<2xf32>
    %142 = vector.shape_cast %141 : vector<2xf32> to vector<2x1xf32>
    %143 = vector.broadcast %142 : vector<2x1xf32> to vector<2x32xf32>
    %144 = arith.cmpf oeq, %140, %143 : vector<2x32xf32>
    %cst_54 = arith.constant 3.200000e+01 : f32
    %145 = vector.broadcast %cst_54 : f32 to vector<2x32xf32>
    %146 = arith.select %144, %26, %145 : vector<2x32xi1>, vector<2x32xf32>
    %cst_55 = arith.constant dense<0x7F800000> : vector<2xf32>
    %147 = vector.multi_reduction <minimumf>, %146, %cst_55 [1] : vector<2x32xf32> to vector<2xf32>
    %148 = vector.shape_cast %147 : vector<2xf32> to vector<2x1xf32>
    %149 = vector.broadcast %148 : vector<2x1xf32> to vector<2x32xf32>
    %150 = arith.cmpf oeq, %26, %149 : vector<2x32xf32>
    %151 = arith.extui %150 : vector<2x32xi1> to vector<2x32xi32>
    %152 = arith.sitofp %151 : vector<2x32xi32> to vector<2x32xf32>
    %cst_56 = arith.constant dense<0.000000e+00> : vector<2x128xf32>
    %153 = tpu.matmul %152, %3, %cst_56 {dimension_numbers = #tpu.dot_dimension_numbers<[1], [0], [0], [1], [0, 0, 1, 1], [], []>} : vector<2x32xf32>, vector<32x128xf32>, vector<2x128xf32> -> vector<2x128xf32>
    %154 = tpu.concatenate %153, %92 in 1 : vector<2x128xf32>, vector<2x128xf32> -> vector<2x256xf32>
    %cst_57 = arith.constant dense<0.000000e+00> : vector<2x512xf32>
    %155 = tpu.matmul %154, %14, %cst_57 {dimension_numbers = #tpu.dot_dimension_numbers<[1], [0], [0], [1], [0, 0, 1, 1], [], []>} : vector<2x256xf32>, vector<256x512xf32>, vector<2x512xf32> -> vector<2x512xf32>
    %156 = arith.addf %155, %20 : vector<2x512xf32>
    %157 = vector.extract_strided_slice %156 {offsets = [0, 0], sizes = [2, 128], strides = [1, 1]} : vector<2x512xf32> to vector<2x128xf32>
    %158 = arith.negf %157 : vector<2x128xf32>
    %159 = math.exp %158 : vector<2x128xf32>
    %cst_58 = arith.constant 1.000000e+00 : f32
    %160 = vector.broadcast %cst_58 : f32 to vector<2x128xf32>
    %161 = arith.addf %160, %159 : vector<2x128xf32>
    %162 = arith.divf %160, %161 : vector<2x128xf32>
    %163 = vector.extract_strided_slice %156 {offsets = [0, 128], sizes = [2, 128], strides = [1, 1]} : vector<2x512xf32> to vector<2x128xf32>
    %164 = arith.negf %163 : vector<2x128xf32>
    %165 = math.exp %164 : vector<2x128xf32>
    %cst_59 = arith.constant 1.000000e+00 : f32
    %166 = vector.broadcast %cst_59 : f32 to vector<2x128xf32>
    %167 = arith.addf %166, %165 : vector<2x128xf32>
    %168 = arith.divf %166, %167 : vector<2x128xf32>
    %169 = vector.extract_strided_slice %156 {offsets = [0, 256], sizes = [2, 128], strides = [1, 1]} : vector<2x512xf32> to vector<2x128xf32>
    %170 = math.tanh %169 : vector<2x128xf32>
    %171 = vector.extract_strided_slice %156 {offsets = [0, 384], sizes = [2, 128], strides = [1, 1]} : vector<2x512xf32> to vector<2x128xf32>
    %172 = arith.negf %171 : vector<2x128xf32>
    %173 = math.exp %172 : vector<2x128xf32>
    %cst_60 = arith.constant 1.000000e+00 : f32
    %174 = vector.broadcast %cst_60 : f32 to vector<2x128xf32>
    %175 = arith.addf %174, %173 : vector<2x128xf32>
    %176 = arith.divf %174, %175 : vector<2x128xf32>
    %177 = arith.mulf %168, %90 : vector<2x128xf32>
    %178 = arith.mulf %162, %170 : vector<2x128xf32>
    %179 = arith.addf %177, %178 : vector<2x128xf32>
    %180 = math.tanh %179 : vector<2x128xf32>
    %181 = arith.mulf %176, %180 : vector<2x128xf32>
    %182 = tpu.concatenate %181, %120 in 1 : vector<2x128xf32>, vector<2x128xf32> -> vector<2x256xf32>
    %cst_61 = arith.constant dense<0.000000e+00> : vector<2x512xf32>
    %183 = tpu.matmul %182, %16, %cst_61 {dimension_numbers = #tpu.dot_dimension_numbers<[1], [0], [0], [1], [0, 0, 1, 1], [], []>} : vector<2x256xf32>, vector<256x512xf32>, vector<2x512xf32> -> vector<2x512xf32>
    %184 = arith.addf %183, %24 : vector<2x512xf32>
    %185 = vector.extract_strided_slice %184 {offsets = [0, 0], sizes = [2, 128], strides = [1, 1]} : vector<2x512xf32> to vector<2x128xf32>
    %186 = arith.negf %185 : vector<2x128xf32>
    %187 = math.exp %186 : vector<2x128xf32>
    %cst_62 = arith.constant 1.000000e+00 : f32
    %188 = vector.broadcast %cst_62 : f32 to vector<2x128xf32>
    %189 = arith.addf %188, %187 : vector<2x128xf32>
    %190 = arith.divf %188, %189 : vector<2x128xf32>
    %191 = vector.extract_strided_slice %184 {offsets = [0, 128], sizes = [2, 128], strides = [1, 1]} : vector<2x512xf32> to vector<2x128xf32>
    %192 = arith.negf %191 : vector<2x128xf32>
    %193 = math.exp %192 : vector<2x128xf32>
    %cst_63 = arith.constant 1.000000e+00 : f32
    %194 = vector.broadcast %cst_63 : f32 to vector<2x128xf32>
    %195 = arith.addf %194, %193 : vector<2x128xf32>
    %196 = arith.divf %194, %195 : vector<2x128xf32>
    %197 = vector.extract_strided_slice %184 {offsets = [0, 256], sizes = [2, 128], strides = [1, 1]} : vector<2x512xf32> to vector<2x128xf32>
    %198 = math.tanh %197 : vector<2x128xf32>
    %199 = vector.extract_strided_slice %184 {offsets = [0, 384], sizes = [2, 128], strides = [1, 1]} : vector<2x512xf32> to vector<2x128xf32>
    %200 = arith.negf %199 : vector<2x128xf32>
    %201 = math.exp %200 : vector<2x128xf32>
    %cst_64 = arith.constant 1.000000e+00 : f32
    %202 = vector.broadcast %cst_64 : f32 to vector<2x128xf32>
    %203 = arith.addf %202, %201 : vector<2x128xf32>
    %204 = arith.divf %202, %203 : vector<2x128xf32>
    %205 = arith.mulf %196, %118 : vector<2x128xf32>
    %206 = arith.mulf %190, %198 : vector<2x128xf32>
    %207 = arith.addf %205, %206 : vector<2x128xf32>
    %208 = math.tanh %207 : vector<2x128xf32>
    %209 = arith.mulf %204, %208 : vector<2x128xf32>
    %cst_65 = arith.constant dense<0.000000e+00> : vector<2x128xf32>
    %210 = tpu.matmul %209, %4, %cst_65 {dimension_numbers = #tpu.dot_dimension_numbers<[1], [0], [0], [1], [0, 0, 1, 1], [], []>} : vector<2x128xf32>, vector<128x128xf32>, vector<2x128xf32> -> vector<2x128xf32>
    %211 = arith.addf %210, %9 : vector<2x128xf32>
    %212 = math.tanh %211 : vector<2x128xf32>
    %213 = vector.shape_cast %212 : vector<2x128xf32> to vector<2x1x128xf32>
    "tpu.trace_start"() <{level = 10 : i32, message = "bqh,brh->bqr"}> : () -> ()
    %cst_66 = arith.constant dense<0.000000e+00> : vector<2x1x8xf32>
    %214 = tpu.matmul %213, %35, %cst_66 {dimension_numbers = #tpu.dot_dimension_numbers<[2], [2], [1], [1], [0, 0, 0, 1, 1, 1], [0], [0]>} : vector<2x1x128xf32>, vector<2x8x128xf32>, vector<2x1x8xf32> -> vector<2x1x8xf32>
    "tpu.trace_stop"() : () -> ()
    %cst_67 = arith.constant dense<0xFF800000> : vector<2x1xf32>
    %215 = vector.multi_reduction <maximumf>, %214, %cst_67 [2] : vector<2x1x8xf32> to vector<2x1xf32>
    %216 = vector.shape_cast %215 : vector<2x1xf32> to vector<2x1x1xf32>
    %217 = vector.broadcast %216 : vector<2x1x1xf32> to vector<2x1x8xf32>
    %218 = arith.subf %214, %217 : vector<2x1x8xf32>
    %219 = math.exp %218 : vector<2x1x8xf32>
    %cst_68 = arith.constant dense<0.000000e+00> : vector<2x1xf32>
    %220 = vector.multi_reduction <add>, %219, %cst_68 [2] : vector<2x1x8xf32> to vector<2x1xf32>
    %221 = vector.shape_cast %220 : vector<2x1xf32> to vector<2x1x1xf32>
    %222 = vector.broadcast %221 : vector<2x1x1xf32> to vector<2x1x8xf32>
    %223 = arith.divf %219, %222 : vector<2x1x8xf32>
    %224 = arith.addf %223, %2 : vector<2x1x8xf32>
    "tpu.trace_start"() <{level = 10 : i32, message = "bqr,brh->bqh"}> : () -> ()
    %cst_69 = arith.constant dense<0.000000e+00> : vector<2x1x128xf32>
    %225 = tpu.matmul %224, %37, %cst_69 {dimension_numbers = #tpu.dot_dimension_numbers<[2], [1], [1], [2], [0, 0, 0, 1, 1, 2], [0], [0]>} : vector<2x1x8xf32>, vector<2x8x128xf32>, vector<2x1x128xf32> -> vector<2x1x128xf32>
    "tpu.trace_stop"() : () -> ()
    %226 = vector.shape_cast %225 : vector<2x1x128xf32> to vector<2x128xf32>
    %227 = tpu.concatenate %226, %209 in 1 : vector<2x128xf32>, vector<2x128xf32> -> vector<2x256xf32>
    %cst_70 = arith.constant dense<0.000000e+00> : vector<2x32xf32>
    %228 = tpu.matmul %227, %6, %cst_70 {dimension_numbers = #tpu.dot_dimension_numbers<[1], [0], [0], [1], [0, 0, 1, 1], [], []>} : vector<2x256xf32>, vector<256x32xf32>, vector<2x32xf32> -> vector<2x32xf32>
    %229 = arith.addf %228, %12 : vector<2x32xf32>
    %cst_71 = arith.constant dense<0xFF800000> : vector<2xf32>
    %230 = vector.multi_reduction <maximumf>, %229, %cst_71 [1] : vector<2x32xf32> to vector<2xf32>
    %231 = vector.shape_cast %230 : vector<2xf32> to vector<2x1xf32>
    %232 = vector.broadcast %231 : vector<2x1xf32> to vector<2x32xf32>
    %233 = arith.cmpf oeq, %229, %232 : vector<2x32xf32>
    %cst_72 = arith.constant 3.200000e+01 : f32
    %234 = vector.broadcast %cst_72 : f32 to vector<2x32xf32>
    %235 = arith.select %233, %26, %234 : vector<2x32xi1>, vector<2x32xf32>
    %cst_73 = arith.constant dense<0x7F800000> : vector<2xf32>
    %236 = vector.multi_reduction <minimumf>, %235, %cst_73 [1] : vector<2x32xf32> to vector<2xf32>
    %237 = vector.shape_cast %236 : vector<2xf32> to vector<2x1xf32>
    %238 = vector.broadcast %237 : vector<2x1xf32> to vector<2x32xf32>
    %239 = arith.cmpf oeq, %26, %238 : vector<2x32xf32>
    %240 = arith.extui %239 : vector<2x32xi1> to vector<2x32xi32>
    %241 = arith.sitofp %240 : vector<2x32xi32> to vector<2x32xf32>
    %cst_74 = arith.constant dense<0.000000e+00> : vector<2x128xf32>
    %242 = tpu.matmul %241, %3, %cst_74 {dimension_numbers = #tpu.dot_dimension_numbers<[1], [0], [0], [1], [0, 0, 1, 1], [], []>} : vector<2x32xf32>, vector<32x128xf32>, vector<2x128xf32> -> vector<2x128xf32>
    %243 = tpu.concatenate %242, %181 in 1 : vector<2x128xf32>, vector<2x128xf32> -> vector<2x256xf32>
    %cst_75 = arith.constant dense<0.000000e+00> : vector<2x512xf32>
    %244 = tpu.matmul %243, %14, %cst_75 {dimension_numbers = #tpu.dot_dimension_numbers<[1], [0], [0], [1], [0, 0, 1, 1], [], []>} : vector<2x256xf32>, vector<256x512xf32>, vector<2x512xf32> -> vector<2x512xf32>
    %245 = arith.addf %244, %20 : vector<2x512xf32>
    %246 = vector.extract_strided_slice %245 {offsets = [0, 0], sizes = [2, 128], strides = [1, 1]} : vector<2x512xf32> to vector<2x128xf32>
    %247 = arith.negf %246 : vector<2x128xf32>
    %248 = math.exp %247 : vector<2x128xf32>
    %cst_76 = arith.constant 1.000000e+00 : f32
    %249 = vector.broadcast %cst_76 : f32 to vector<2x128xf32>
    %250 = arith.addf %249, %248 : vector<2x128xf32>
    %251 = arith.divf %249, %250 : vector<2x128xf32>
    %252 = vector.extract_strided_slice %245 {offsets = [0, 128], sizes = [2, 128], strides = [1, 1]} : vector<2x512xf32> to vector<2x128xf32>
    %253 = arith.negf %252 : vector<2x128xf32>
    %254 = math.exp %253 : vector<2x128xf32>
    %cst_77 = arith.constant 1.000000e+00 : f32
    %255 = vector.broadcast %cst_77 : f32 to vector<2x128xf32>
    %256 = arith.addf %255, %254 : vector<2x128xf32>
    %257 = arith.divf %255, %256 : vector<2x128xf32>
    %258 = vector.extract_strided_slice %245 {offsets = [0, 256], sizes = [2, 128], strides = [1, 1]} : vector<2x512xf32> to vector<2x128xf32>
    %259 = math.tanh %258 : vector<2x128xf32>
    %260 = vector.extract_strided_slice %245 {offsets = [0, 384], sizes = [2, 128], strides = [1, 1]} : vector<2x512xf32> to vector<2x128xf32>
    %261 = arith.negf %260 : vector<2x128xf32>
    %262 = math.exp %261 : vector<2x128xf32>
    %cst_78 = arith.constant 1.000000e+00 : f32
    %263 = vector.broadcast %cst_78 : f32 to vector<2x128xf32>
    %264 = arith.addf %263, %262 : vector<2x128xf32>
    %265 = arith.divf %263, %264 : vector<2x128xf32>
    %266 = arith.mulf %257, %179 : vector<2x128xf32>
    %267 = arith.mulf %251, %259 : vector<2x128xf32>
    %268 = arith.addf %266, %267 : vector<2x128xf32>
    %269 = math.tanh %268 : vector<2x128xf32>
    %270 = arith.mulf %265, %269 : vector<2x128xf32>
    %271 = tpu.concatenate %270, %209 in 1 : vector<2x128xf32>, vector<2x128xf32> -> vector<2x256xf32>
    %cst_79 = arith.constant dense<0.000000e+00> : vector<2x512xf32>
    %272 = tpu.matmul %271, %16, %cst_79 {dimension_numbers = #tpu.dot_dimension_numbers<[1], [0], [0], [1], [0, 0, 1, 1], [], []>} : vector<2x256xf32>, vector<256x512xf32>, vector<2x512xf32> -> vector<2x512xf32>
    %273 = arith.addf %272, %24 : vector<2x512xf32>
    %274 = vector.extract_strided_slice %273 {offsets = [0, 0], sizes = [2, 128], strides = [1, 1]} : vector<2x512xf32> to vector<2x128xf32>
    %275 = arith.negf %274 : vector<2x128xf32>
    %276 = math.exp %275 : vector<2x128xf32>
    %cst_80 = arith.constant 1.000000e+00 : f32
    %277 = vector.broadcast %cst_80 : f32 to vector<2x128xf32>
    %278 = arith.addf %277, %276 : vector<2x128xf32>
    %279 = arith.divf %277, %278 : vector<2x128xf32>
    %280 = vector.extract_strided_slice %273 {offsets = [0, 128], sizes = [2, 128], strides = [1, 1]} : vector<2x512xf32> to vector<2x128xf32>
    %281 = arith.negf %280 : vector<2x128xf32>
    %282 = math.exp %281 : vector<2x128xf32>
    %cst_81 = arith.constant 1.000000e+00 : f32
    %283 = vector.broadcast %cst_81 : f32 to vector<2x128xf32>
    %284 = arith.addf %283, %282 : vector<2x128xf32>
    %285 = arith.divf %283, %284 : vector<2x128xf32>
    %286 = vector.extract_strided_slice %273 {offsets = [0, 256], sizes = [2, 128], strides = [1, 1]} : vector<2x512xf32> to vector<2x128xf32>
    %287 = math.tanh %286 : vector<2x128xf32>
    %288 = vector.extract_strided_slice %273 {offsets = [0, 384], sizes = [2, 128], strides = [1, 1]} : vector<2x512xf32> to vector<2x128xf32>
    %289 = arith.negf %288 : vector<2x128xf32>
    %290 = math.exp %289 : vector<2x128xf32>
    %cst_82 = arith.constant 1.000000e+00 : f32
    %291 = vector.broadcast %cst_82 : f32 to vector<2x128xf32>
    %292 = arith.addf %291, %290 : vector<2x128xf32>
    %293 = arith.divf %291, %292 : vector<2x128xf32>
    %294 = arith.mulf %285, %207 : vector<2x128xf32>
    %295 = arith.mulf %279, %287 : vector<2x128xf32>
    %296 = arith.addf %294, %295 : vector<2x128xf32>
    %297 = math.tanh %296 : vector<2x128xf32>
    %298 = arith.mulf %293, %297 : vector<2x128xf32>
    %cst_83 = arith.constant dense<0.000000e+00> : vector<2x128xf32>
    %299 = tpu.matmul %298, %4, %cst_83 {dimension_numbers = #tpu.dot_dimension_numbers<[1], [0], [0], [1], [0, 0, 1, 1], [], []>} : vector<2x128xf32>, vector<128x128xf32>, vector<2x128xf32> -> vector<2x128xf32>
    %300 = arith.addf %299, %9 : vector<2x128xf32>
    %301 = math.tanh %300 : vector<2x128xf32>
    %302 = vector.shape_cast %301 : vector<2x128xf32> to vector<2x1x128xf32>
    "tpu.trace_start"() <{level = 10 : i32, message = "bqh,brh->bqr"}> : () -> ()
    %cst_84 = arith.constant dense<0.000000e+00> : vector<2x1x8xf32>
    %303 = tpu.matmul %302, %35, %cst_84 {dimension_numbers = #tpu.dot_dimension_numbers<[2], [2], [1], [1], [0, 0, 0, 1, 1, 1], [0], [0]>} : vector<2x1x128xf32>, vector<2x8x128xf32>, vector<2x1x8xf32> -> vector<2x1x8xf32>
    "tpu.trace_stop"() : () -> ()
    %cst_85 = arith.constant dense<0xFF800000> : vector<2x1xf32>
    %304 = vector.multi_reduction <maximumf>, %303, %cst_85 [2] : vector<2x1x8xf32> to vector<2x1xf32>
    %305 = vector.shape_cast %304 : vector<2x1xf32> to vector<2x1x1xf32>
    %306 = vector.broadcast %305 : vector<2x1x1xf32> to vector<2x1x8xf32>
    %307 = arith.subf %303, %306 : vector<2x1x8xf32>
    %308 = math.exp %307 : vector<2x1x8xf32>
    %cst_86 = arith.constant dense<0.000000e+00> : vector<2x1xf32>
    %309 = vector.multi_reduction <add>, %308, %cst_86 [2] : vector<2x1x8xf32> to vector<2x1xf32>
    %310 = vector.shape_cast %309 : vector<2x1xf32> to vector<2x1x1xf32>
    %311 = vector.broadcast %310 : vector<2x1x1xf32> to vector<2x1x8xf32>
    %312 = arith.divf %308, %311 : vector<2x1x8xf32>
    %313 = arith.addf %312, %2 : vector<2x1x8xf32>
    "tpu.trace_start"() <{level = 10 : i32, message = "bqr,brh->bqh"}> : () -> ()
    %cst_87 = arith.constant dense<0.000000e+00> : vector<2x1x128xf32>
    %314 = tpu.matmul %313, %37, %cst_87 {dimension_numbers = #tpu.dot_dimension_numbers<[2], [1], [1], [2], [0, 0, 0, 1, 1, 2], [0], [0]>} : vector<2x1x8xf32>, vector<2x8x128xf32>, vector<2x1x128xf32> -> vector<2x1x128xf32>
    "tpu.trace_stop"() : () -> ()
    %315 = vector.shape_cast %314 : vector<2x1x128xf32> to vector<2x128xf32>
    %316 = tpu.concatenate %315, %298 in 1 : vector<2x128xf32>, vector<2x128xf32> -> vector<2x256xf32>
    %cst_88 = arith.constant dense<0.000000e+00> : vector<2x32xf32>
    %317 = tpu.matmul %316, %6, %cst_88 {dimension_numbers = #tpu.dot_dimension_numbers<[1], [0], [0], [1], [0, 0, 1, 1], [], []>} : vector<2x256xf32>, vector<256x32xf32>, vector<2x32xf32> -> vector<2x32xf32>
    %318 = arith.addf %317, %12 : vector<2x32xf32>
    %319 = tpu.concatenate %64, %140, %229, %318 in 1 : vector<2x32xf32>, vector<2x32xf32>, vector<2x32xf32>, vector<2x32xf32> -> vector<2x128xf32>
    %c0_89 = arith.constant 0 : index
    %c0_90 = arith.constant 0 : index
    %320 = vector.load %arg11[%c0_89, %c0_90] : memref<2x128xf32, #tpu.memory_space<vmem>>, vector<2x128xf32>
    tpu.vector_store %arg11[%c0_89, %c0_90], %319 {strides = array<i32>} : memref<2x128xf32, #tpu.memory_space<vmem>>, vector<2x128xf32>,
    return
  }
}

</mosaic_0001>

<llo_original>
// kernel: forward.1
$region0: #{forward.1}
  #allocation0 [shape = 'u32[]', space=smem, size = 0x4, offset = 0x4, fixed_abs, tag = 'smem constant byte address 0x4 - core index']
  #allocation1 [shape = 'u32[144,128]{1,0:T(1,128)}', space=vmem, size = 0x12000, scoped, tag = 'internal scratch']
  %s0 = inlined_call_operand.vmem [shape: f32[2,8,128], index: 0, kind: input, shape index: {}]
  %s1 = inlined_call_operand.vmem [shape: f32[2,8], index: 1, kind: input, shape index: {}]
  %s2 = inlined_call_operand.vmem [shape: f32[32,128], index: 2, kind: input, shape index: {}]
  %s3 = inlined_call_operand.hbm [shape: f32[128,128], index: 3, kind: input, shape index: {}]
  %s4 = inlined_call_operand.vmem [shape: f32[1,128], index: 4, kind: input, shape index: {}]
  %s5 = inlined_call_operand.vmem [shape: f32[128,256], index: 5, kind: input, shape index: {}]
  %s6 = inlined_call_operand.vmem [shape: f32[1,256], index: 6, kind: input, shape index: {}]
  %s7 = inlined_call_operand.hbm [shape: f32[2,256,512], index: 7, kind: input, shape index: {}]
  %s8 = inlined_call_operand.vmem [shape: f32[2,1,512], index: 8, kind: input, shape index: {}]
  %s9 = inlined_call_operand.vmem [shape: f32[256,32], index: 9, kind: input, shape index: {}]
  %s10 = inlined_call_operand.vmem [shape: f32[1,32], index: 10, kind: input, shape index: {}]
  %s11 = inlined_call_operand.vmem [shape: f32[2,128], index: 11, kind: output, shape index: {}]
  %s12 = sld [smem:[#allocation0]]
  $region62: #{forward.1} parent=0
    _
  %s14 = ssub.s32 1, %s12
  %s15 = scalar_select 0, %s14, %s12
  $region1: #{forward.1} parent=0
    #allocation2 [shape = 'u8[65536]{0}', space=vmem, size = 0x10000, scoped, tag = 'input window, operand 3, single buffered']
    #allocation3 [shape = 's32[1]{0}', space=sflag, size = 0x4, scoped, tag = 'scoped memory for forward.1']
    #allocation4 [shape = 'u8[1048576]{0}', space=vmem, size = 0x100000, scoped, tag = 'input window, operand 7, single buffered']
    #allocation5 [shape = 's32[1]{0}', space=sflag, size = 0x4, scoped, tag = 'scoped memory for forward.1']
    %16 = vsyncpa [#allocation3], 0
    %17 = vsyncpa [#allocation5], 0
    // Predicated region
    $region2: #{forward.1} parent=1 // pred_check
      _
    $region3: #{forward.1} parent=1 // pred_check_branch
      %19 = sbr.rel (0) target = $region5
    $region4: #{forward.1} parent=1 // pred_region
      _
    $region5: #{forward.1} parent=1 // pred_fallthru
      _
    // Predicated region
    $region6: #{forward.1} parent=1 // pred_check
      _
    $region7: #{forward.1} parent=1 // pred_check_branch
      %21 = sbr.rel (0) target = $region9
    $region8: #{forward.1} parent=1 // pred_region
      _
    $region9: #{forward.1} parent=1 // pred_fallthru
      _
    // Predicated region
    $region10: #{forward.1} parent=1 // pred_check
      _
    $region11: #{forward.1} parent=1 // pred_check_branch
      %23 = sbr.rel (0) target = $region13
    $region12: #{forward.1} parent=1 // pred_region
      _
    $region13: #{forward.1} parent=1 // pred_fallthru
      _
    // Predicated region
    $region14: #{forward.1} parent=1 // pred_check
      _
    $region15: #{forward.1} parent=1 // pred_check_branch
      %25 = sbr.rel (0) target = $region17
    $region16: #{forward.1} parent=1 // pred_region
      %s27 = ssub.s32 2048, 2048
      %28 = vsyncadd [#allocation3], %s27
      %s29 = sshll.u32 [#allocation2], 4
      %s30 = int_to_ptr.vmem [resolvable:$true] %s29
      %35 = dma.hbm_to_vmem [thread:$0]  %s3, 2048, %s30, [#allocation3], 128, 128, 8
    $region17: #{forward.1} parent=1 // pred_fallthru
      _
    // Predicated region
    $region18: #{forward.1} parent=1 // pred_check
      _
    $region19: #{forward.1} parent=1 // pred_check_branch
      %37 = sbr.rel (0) target = $region21
    $region20: #{forward.1} parent=1 // pred_region
      _
    $region21: #{forward.1} parent=1 // pred_fallthru
      _
    // Predicated region
    $region22: #{forward.1} parent=1 // pred_check
      _
    $region23: #{forward.1} parent=1 // pred_check_branch
      %39 = sbr.rel (0) target = $region25
    $region24: #{forward.1} parent=1 // pred_region
      _
    $region25: #{forward.1} parent=1 // pred_fallthru
      _
    // Predicated region
    $region26: #{forward.1} parent=1 // pred_check
      _
    $region27: #{forward.1} parent=1 // pred_check_branch
      %41 = sbr.rel (0) target = $region29
    $region28: #{forward.1} parent=1 // pred_region
      _
    $region29: #{forward.1} parent=1 // pred_fallthru
      _
    // Predicated region
    $region30: #{forward.1} parent=1 // pred_check
      _
    $region31: #{forward.1} parent=1 // pred_check_branch
      %43 = sbr.rel (0) target = $region33
    $region32: #{forward.1} parent=1 // pred_region
      %s45 = ssub.s32 32768, 32768
      %46 = vsyncadd [#allocation5], %s45
      %s47 = sshll.u32 [#allocation4], 4
      %s48 = int_to_ptr.vmem [resolvable:$true] %s47
      %53 = dma.hbm_to_vmem [thread:$0]  %s7, 32768, %s48, [#allocation5], 512, 512, 32
    $region33: #{forward.1} parent=1 // pred_fallthru
      _
    // Predicated region
    $region34: #{forward.1} parent=1 // pred_check
      _
    $region35: #{forward.1} parent=1 // pred_check_branch
      %55 = sbr.rel (0) target = $region37
    $region36: #{forward.1} parent=1 // pred_region
      _
    $region37: #{forward.1} parent=1 // pred_fallthru
      _
    // Predicated region
    $region38: #{forward.1} parent=1 // pred_check
      _
    $region39: #{forward.1} parent=1 // pred_check_branch
      %57 = sbr.rel (0) target = $region41
    $region40: #{forward.1} parent=1 // pred_region
      _
    $region41: #{forward.1} parent=1 // pred_fallthru
      _
    // Predicated region
    $region42: #{forward.1} parent=1 // pred_check
      _
    $region43: #{forward.1} parent=1 // pred_check_branch
      %59 = sbr.rel (0) target = $region45
    $region44: #{forward.1} parent=1 // pred_region
      _
    $region45: #{forward.1} parent=1 // pred_fallthru
      _
    // Predicated region
    $region46: #{forward.1} parent=1 // pred_check
      _
    $region47: #{forward.1} parent=1 // pred_check_branch
      %61 = sbr.rel (0) target = $region49
    $region48: #{forward.1} parent=1 // pred_region
      %62 = dma.done [#allocation3], 2048
    $region49: #{forward.1} parent=1 // pred_fallthru
      _
    // Predicated region
    $region50: #{forward.1} parent=1 // pred_check
      _
    $region51: #{forward.1} parent=1 // pred_check_branch
      %64 = sbr.rel (0) target = $region53
    $region52: #{forward.1} parent=1 // pred_region
      %65 = dma.done [#allocation5], 32768
    $region53: #{forward.1} parent=1 // pred_fallthru
      _
    %v66 = vld [vmem:[%s0] sm:$0xff]
    %v67 = vld [vmem:[%s0 + $0x8] sm:$0xff]
    %v68 = vld [vmem:[%s1] sm:$0x3]
    %v71 = vunpack.c.l.s4 1966171168
    %v72 = vunpack.c.0.s8 %v71
    %v73 = vlaneseq
    %v74 = vshrl.u32 %v73, 7
    %v75 = vsub.s32 %v72, %v74
    %v76 = vrot.slane %v68, %v75
    %v77 = vcombine.high %v76, %v76
    %v79 = vunpack.c.l.s4 1966171168
    %v80 = vunpack.c.0.s8 %v79
    %v81 = vlaneseq
    %v82 = vshrl.u32 %v81, 7
    %v83 = vsub.s32 %v80, %v82
    %v84 = vrot.slane %v76, %v83
    %v86 = vunpack.c.l.s4 1966171168
    %v87 = vunpack.c.0.s8 %v86
    %v88 = vlaneseq
    %v89 = vshrl.u32 %v88, 7
    %v90 = vsub.s32 %v87, %v89
    %v91 = vrot.slane %v77, %v90
    %v94 = vld [vmem:[%s2] sm:$0xff]
    %v95 = vld [vmem:[%s2 + $0x8] sm:$0xff]
    %v96 = vld [vmem:[%s2 + $0x10] sm:$0xff]
    %v97 = vld [vmem:[%s2 + $0x18] sm:$0xff]
    %v98 = vld [vmem:[#allocation2] sm:$0xff]
    %v99 = vld [vmem:[#allocation2 + $0x8] sm:$0xff]
    %v100 = vld [vmem:[#allocation2 + $0x10] sm:$0xff]
    %v101 = vld [vmem:[#allocation2 + $0x18] sm:$0xff]
    %v102 = vld [vmem:[#allocation2 + $0x20] sm:$0xff]
    %v103 = vld [vmem:[#allocation2 + $0x28] sm:$0xff]
    %v104 = vld [vmem:[#allocation2 + $0x30] sm:$0xff]
    %v105 = vld [vmem:[#allocation2 + $0x38] sm:$0xff]
    %v106 = vld [vmem:[#allocation2 + $0x40] sm:$0xff]
    %v107 = vld [vmem:[#allocation2 + $0x48] sm:$0xff]
    %v108 = vld [vmem:[#allocation2 + $0x50] sm:$0xff]
    %v109 = vld [vmem:[#allocation2 + $0x58] sm:$0xff]
    %v110 = vld [vmem:[#allocation2 + $0x60] sm:$0xff]
    %v111 = vld [vmem:[#allocation2 + $0x68] sm:$0xff]
    %v112 = vld [vmem:[#allocation2 + $0x70] sm:$0xff]
    %v113 = vld [vmem:[#allocation2 + $0x78] sm:$0xff]
    %v114 = vld [vmem:[%s5] sm:$0xff]
    %v115 = vld [vmem:[%s5 + $0x8] sm:$0xff]
    %v116 = vld [vmem:[%s5 + $0x10] sm:$0xff]
    %v117 = vld [vmem:[%s5 + $0x18] sm:$0xff]
    %v118 = vld [vmem:[%s5 + $0x20] sm:$0xff]
    %v119 = vld [vmem:[%s5 + $0x28] sm:$0xff]
    %v120 = vld [vmem:[%s5 + $0x30] sm:$0xff]
    %v121 = vld [vmem:[%s5 + $0x38] sm:$0xff]
    %v122 = vld [vmem:[%s5 + $0x40] sm:$0xff]
    %v123 = vld [vmem:[%s5 + $0x48] sm:$0xff]
    %v124 = vld [vmem:[%s5 + $0x50] sm:$0xff]
    %v125 = vld [vmem:[%s5 + $0x58] sm:$0xff]
    %v126 = vld [vmem:[%s5 + $0x60] sm:$0xff]
    %v127 = vld [vmem:[%s5 + $0x68] sm:$0xff]
    %v128 = vld [vmem:[%s5 + $0x70] sm:$0xff]
    %v129 = vld [vmem:[%s5 + $0x78] sm:$0xff]
    %v130 = vld [vmem:[%s5 + $0x80] sm:$0xff]
    %v131 = vld [vmem:[%s5 + $0x88] sm:$0xff]
    %v132 = vld [vmem:[%s5 + $0x90] sm:$0xff]
    %v133 = vld [vmem:[%s5 + $0x98] sm:$0xff]
    %v134 = vld [vmem:[%s5 + $0xa0] sm:$0xff]
    %v135 = vld [vmem:[%s5 + $0xa8] sm:$0xff]
    %v136 = vld [vmem:[%s5 + $0xb0] sm:$0xff]
    %v137 = vld [vmem:[%s5 + $0xb8] sm:$0xff]
    %v138 = vld [vmem:[%s5 + $0xc0] sm:$0xff]
    %v139 = vld [vmem:[%s5 + $0xc8] sm:$0xff]
    %v140 = vld [vmem:[%s5 + $0xd0] sm:$0xff]
    %v141 = vld [vmem:[%s5 + $0xd8] sm:$0xff]
    %v142 = vld [vmem:[%s5 + $0xe0] sm:$0xff]
    %v143 = vld [vmem:[%s5 + $0xe8] sm:$0xff]
    %v144 = vld [vmem:[%s5 + $0xf0] sm:$0xff]
    %v145 = vld [vmem:[%s5 + $0xf8] sm:$0xff]
    %v146 = vld [vmem:[%s9] sm:$0xff]
    %v147 = vld [vmem:[%s9 + $0x8] sm:$0xff]
    %v148 = vld [vmem:[%s9 + $0x10] sm:$0xff]
    %v149 = vld [vmem:[%s9 + $0x18] sm:$0xff]
    %v150 = vld [vmem:[%s9 + $0x20] sm:$0xff]
    %v151 = vld [vmem:[%s9 + $0x28] sm:$0xff]
    %v152 = vld [vmem:[%s9 + $0x30] sm:$0xff]
    %v153 = vld [vmem:[%s9 + $0x38] sm:$0xff]
    %v154 = vld [vmem:[%s9 + $0x40] sm:$0xff]
    %v155 = vld [vmem:[%s9 + $0x48] sm:$0xff]
    %v156 = vld [vmem:[%s9 + $0x50] sm:$0xff]
    %v157 = vld [vmem:[%s9 + $0x58] sm:$0xff]
    %v158 = vld [vmem:[%s9 + $0x60] sm:$0xff]
    %v159 = vld [vmem:[%s9 + $0x68] sm:$0xff]
    %v160 = vld [vmem:[%s9 + $0x70] sm:$0xff]
    %v161 = vld [vmem:[%s9 + $0x78] sm:$0xff]
    %v162 = vld [vmem:[%s9 + $0x80] sm:$0xff]
    %v163 = vld [vmem:[%s9 + $0x88] sm:$0xff]
    %v164 = vld [vmem:[%s9 + $0x90] sm:$0xff]
    %v165 = vld [vmem:[%s9 + $0x98] sm:$0xff]
    %v166 = vld [vmem:[%s9 + $0xa0] sm:$0xff]
    %v167 = vld [vmem:[%s9 + $0xa8] sm:$0xff]
    %v168 = vld [vmem:[%s9 + $0xb0] sm:$0xff]
    %v169 = vld [vmem:[%s9 + $0xb8] sm:$0xff]
    %v170 = vld [vmem:[%s9 + $0xc0] sm:$0xff]
    %v171 = vld [vmem:[%s9 + $0xc8] sm:$0xff]
    %v172 = vld [vmem:[%s9 + $0xd0] sm:$0xff]
    %v173 = vld [vmem:[%s9 + $0xd8] sm:$0xff]
    %v174 = vld [vmem:[%s9 + $0xe0] sm:$0xff]
    %v175 = vld [vmem:[%s9 + $0xe8] sm:$0xff]
    %v176 = vld [vmem:[%s9 + $0xf0] sm:$0xff]
    %v177 = vld [vmem:[%s9 + $0xf8] sm:$0xff]
    %v178 = vld [vmem:[%s4] sm:$0x1]
    %v180 = vlaneseq
    %v181 = vshrl.u32 %v180, 7
    %v182 = vsub.s32 0, %v181
    %v183 = vrot.slane %v178, %v182
    %v185 = vld [vmem:[%s10] sm:$0x1]
    %v187 = vlaneseq
    %v188 = vshrl.u32 %v187, 7
    %v189 = vsub.s32 0, %v188
    %v190 = vrot.slane %v185, %v189
    %v192 = vld [vmem:[#allocation4] sm:$0xff]
    %v193 = vld [vmem:[#allocation4 + $0x8] sm:$0xff]
    %v194 = vld [vmem:[#allocation4 + $0x10] sm:$0xff]
    %v195 = vld [vmem:[#allocation4 + $0x18] sm:$0xff]
    %v196 = vld [vmem:[#allocation4 + $0x20] sm:$0xff]
    %v197 = vld [vmem:[#allocation4 + $0x28] sm:$0xff]
    %v198 = vld [vmem:[#allocation4 + $0x30] sm:$0xff]
    %v199 = vld [vmem:[#allocation4 + $0x38] sm:$0xff]
    %v200 = vld [vmem:[#allocation4 + $0x40] sm:$0xff]
    %v201 = vld [vmem:[#allocation4 + $0x48] sm:$0xff]
    %v202 = vld [vmem:[#allocation4 + $0x50] sm:$0xff]
    %v203 = vld [vmem:[#allocation4 + $0x58] sm:$0xff]
    %v204 = vld [vmem:[#allocation4 + $0x60] sm:$0xff]
    %v205 = vld [vmem:[#allocation4 + $0x68] sm:$0xff]
    %v206 = vld [vmem:[#allocation4 + $0x70] sm:$0xff]
    %v207 = vld [vmem:[#allocation4 + $0x78] sm:$0xff]
    %v208 = vld [vmem:[#allocation4 + $0x80] sm:$0xff]
    %v209 = vld [vmem:[#allocation4 + $0x88] sm:$0xff]
    %v210 = vld [vmem:[#allocation4 + $0x90] sm:$0xff]
    %v211 = vld [vmem:[#allocation4 + $0x98] sm:$0xff]
    %v212 = vld [vmem:[#allocation4 + $0xa0] sm:$0xff]
    %v213 = vld [vmem:[#allocation4 + $0xa8] sm:$0xff]
    %v214 = vld [vmem:[#allocation4 + $0xb0] sm:$0xff]
    %v215 = vld [vmem:[#allocation4 + $0xb8] sm:$0xff]
    %v216 = vld [vmem:[#allocation4 + $0xc0] sm:$0xff]
    %v217 = vld [vmem:[#allocation4 + $0xc8] sm:$0xff]
    %v218 = vld [vmem:[#allocation4 + $0xd0] sm:$0xff]
    %v219 = vld [vmem:[#allocation4 + $0xd8] sm:$0xff]
    %v220 = vld [vmem:[#allocation4 + $0xe0] sm:$0xff]
    %v221 = vld [vmem:[#allocation4 + $0xe8] sm:$0xff]
    %v222 = vld [vmem:[#allocation4 + $0xf0] sm:$0xff]
    %v223 = vld [vmem:[#allocation4 + $0xf8] sm:$0xff]
    %v224 = vld [vmem:[#allocation4 + $0x100] sm:$0xff]
    %v225 = vld [vmem:[#allocation4 + $0x108] sm:$0xff]
    %v226 = vld [vmem:[#allocation4 + $0x110] sm:$0xff]
    %v227 = vld [vmem:[#allocation4 + $0x118] sm:$0xff]
    %v228 = vld [vmem:[#allocation4 + $0x120] sm:$0xff]
    %v229 = vld [vmem:[#allocation4 + $0x128] sm:$0xff]
    %v230 = vld [vmem:[#allocation4 + $0x130] sm:$0xff]
    %v231 = vld [vmem:[#allocation4 + $0x138] sm:$0xff]
    %v232 = vld [vmem:[#allocation4 + $0x140] sm:$0xff]
    %v233 = vld [vmem:[#allocation4 + $0x148] sm:$0xff]
    %v234 = vld [vmem:[#allocation4 + $0x150] sm:$0xff]
    %v235 = vld [vmem:[#allocation4 + $0x158] sm:$0xff]
    %v236 = vld [vmem:[#allocation4 + $0x160] sm:$0xff]
    %v237 = vld [vmem:[#allocation4 + $0x168] sm:$0xff]
    %v238 = vld [vmem:[#allocation4 + $0x170] sm:$0xff]
    %v239 = vld [vmem:[#allocation4 + $0x178] sm:$0xff]
    %v240 = vld [vmem:[#allocation4 + $0x180] sm:$0xff]
    %v241 = vld [vmem:[#allocation4 + $0x188] sm:$0xff]
    %v242 = vld [vmem:[#allocation4 + $0x190] sm:$0xff]
    %v243 = vld [vmem:[#allocation4 + $0x198] sm:$0xff]
    %v244 = vld [vmem:[#allocation4 + $0x1a0] sm:$0xff]
    %v245 = vld [vmem:[#allocation4 + $0x1a8] sm:$0xff]
    %v246 = vld [vmem:[#allocation4 + $0x1b0] sm:$0xff]
    %v247 = vld [vmem:[#allocation4 + $0x1b8] sm:$0xff]
    %v248 = vld [vmem:[#allocation4 + $0x1c0] sm:$0xff]
    %v249 = vld [vmem:[#allocation4 + $0x1c8] sm:$0xff]
    %v250 = vld [vmem:[#allocation4 + $0x1d0] sm:$0xff]
    %v251 = vld [vmem:[#allocation4 + $0x1d8] sm:$0xff]
    %v252 = vld [vmem:[#allocation4 + $0x1e0] sm:$0xff]
    %v253 = vld [vmem:[#allocation4 + $0x1e8] sm:$0xff]
    %v254 = vld [vmem:[#allocation4 + $0x1f0] sm:$0xff]
    %v255 = vld [vmem:[#allocation4 + $0x1f8] sm:$0xff]
    %v256 = vld [vmem:[#allocation4 + $0x200] sm:$0xff]
    %v257 = vld [vmem:[#allocation4 + $0x208] sm:$0xff]
    %v258 = vld [vmem:[#allocation4 + $0x210] sm:$0xff]
    %v259 = vld [vmem:[#allocation4 + $0x218] sm:$0xff]
    %v260 = vld [vmem:[#allocation4 + $0x220] sm:$0xff]
    %v261 = vld [vmem:[#allocation4 + $0x228] sm:$0xff]
    %v262 = vld [vmem:[#allocation4 + $0x230] sm:$0xff]
    %v263 = vld [vmem:[#allocation4 + $0x238] sm:$0xff]
    %v264 = vld [vmem:[#allocation4 + $0x240] sm:$0xff]
    %v265 = vld [vmem:[#allocation4 + $0x248] sm:$0xff]
    %v266 = vld [vmem:[#allocation4 + $0x250] sm:$0xff]
    %v267 = vld [vmem:[#allocation4 + $0x258] sm:$0xff]
    %v268 = vld [vmem:[#allocation4 + $0x260] sm:$0xff]
    %v269 = vld [vmem:[#allocation4 + $0x268] sm:$0xff]
    %v270 = vld [vmem:[#allocation4 + $0x270] sm:$0xff]
    %v271 = vld [vmem:[#allocation4 + $0x278] sm:$0xff]
    %v272 = vld [vmem:[#allocation4 + $0x280] sm:$0xff]
    %v273 = vld [vmem:[#allocation4 + $0x288] sm:$0xff]
    %v274 = vld [vmem:[#allocation4 + $0x290] sm:$0xff]
    %v275 = vld [vmem:[#allocation4 + $0x298] sm:$0xff]
    %v276 = vld [vmem:[#allocation4 + $0x2a0] sm:$0xff]
    %v277 = vld [vmem:[#allocation4 + $0x2a8] sm:$0xff]
    %v278 = vld [vmem:[#allocation4 + $0x2b0] sm:$0xff]
    %v279 = vld [vmem:[#allocation4 + $0x2b8] sm:$0xff]
    %v280 = vld [vmem:[#allocation4 + $0x2c0] sm:$0xff]
    %v281 = vld [vmem:[#allocation4 + $0x2c8] sm:$0xff]
    %v282 = vld [vmem:[#allocation4 + $0x2d0] sm:$0xff]
    %v283 = vld [vmem:[#allocation4 + $0x2d8] sm:$0xff]
    %v284 = vld [vmem:[#allocation4 + $0x2e0] sm:$0xff]
    %v285 = vld [vmem:[#allocation4 + $0x2e8] sm:$0xff]
    %v286 = vld [vmem:[#allocation4 + $0x2f0] sm:$0xff]
    %v287 = vld [vmem:[#allocation4 + $0x2f8] sm:$0xff]
    %v288 = vld [vmem:[#allocation4 + $0x300] sm:$0xff]
    %v289 = vld [vmem:[#allocation4 + $0x308] sm:$0xff]
    %v290 = vld [vmem:[#allocation4 + $0x310] sm:$0xff]
    %v291 = vld [vmem:[#allocation4 + $0x318] sm:$0xff]
    %v292 = vld [vmem:[#allocation4 + $0x320] sm:$0xff]
    %v293 = vld [vmem:[#allocation4 + $0x328] sm:$0xff]
    %v294 = vld [vmem:[#allocation4 + $0x330] sm:$0xff]
    %v295 = vld [vmem:[#allocation4 + $0x338] sm:$0xff]
    %v296 = vld [vmem:[#allocation4 + $0x340] sm:$0xff]
    %v297 = vld [vmem:[#allocation4 + $0x348] sm:$0xff]
    %v298 = vld [vmem:[#allocation4 + $0x350] sm:$0xff]
    %v299 = vld [vmem:[#allocation4 + $0x358] sm:$0xff]
    %v300 = vld [vmem:[#allocation4 + $0x360] sm:$0xff]
    %v301 = vld [vmem:[#allocation4 + $0x368] sm:$0xff]
    %v302 = vld [vmem:[#allocation4 + $0x370] sm:$0xff]
    %v303 = vld [vmem:[#allocation4 + $0x378] sm:$0xff]
    %v304 = vld [vmem:[#allocation4 + $0x380] sm:$0xff]
    %v305 = vld [vmem:[#allocation4 + $0x388] sm:$0xff]
    %v306 = vld [vmem:[#allocation4 + $0x390] sm:$0xff]
    %v307 = vld [vmem:[#allocation4 + $0x398] sm:$0xff]
    %v308 = vld [vmem:[#allocation4 + $0x3a0] sm:$0xff]
    %v309 = vld [vmem:[#allocation4 + $0x3a8] sm:$0xff]
    %v310 = vld [vmem:[#allocation4 + $0x3b0] sm:$0xff]
    %v311 = vld [vmem:[#allocation4 + $0x3b8] sm:$0xff]
    %v312 = vld [vmem:[#allocation4 + $0x3c0] sm:$0xff]
    %v313 = vld [vmem:[#allocation4 + $0x3c8] sm:$0xff]
    %v314 = vld [vmem:[#allocation4 + $0x3d0] sm:$0xff]
    %v315 = vld [vmem:[#allocation4 + $0x3d8] sm:$0xff]
    %v316 = vld [vmem:[#allocation4 + $0x3e0] sm:$0xff]
    %v317 = vld [vmem:[#allocation4 + $0x3e8] sm:$0xff]
    %v318 = vld [vmem:[#allocation4 + $0x3f0] sm:$0xff]
    %v319 = vld [vmem:[#allocation4 + $0x3f8] sm:$0xff]
    %s320 = scalar_lea.vmem [#allocation4], 1024
    %v321 = vld [vmem:[%s320] sm:$0xff]
    %v322 = vld [vmem:[%s320 + $0x8] sm:$0xff]
    %v323 = vld [vmem:[%s320 + $0x10] sm:$0xff]
    %v324 = vld [vmem:[%s320 + $0x18] sm:$0xff]
    %v325 = vld [vmem:[%s320 + $0x20] sm:$0xff]
    %v326 = vld [vmem:[%s320 + $0x28] sm:$0xff]
    %v327 = vld [vmem:[%s320 + $0x30] sm:$0xff]
    %v328 = vld [vmem:[%s320 + $0x38] sm:$0xff]
    %v329 = vld [vmem:[%s320 + $0x40] sm:$0xff]
    %v330 = vld [vmem:[%s320 + $0x48] sm:$0xff]
    %v331 = vld [vmem:[%s320 + $0x50] sm:$0xff]
    %v332 = vld [vmem:[%s320 + $0x58] sm:$0xff]
    %v333 = vld [vmem:[%s320 + $0x60] sm:$0xff]
    %v334 = vld [vmem:[%s320 + $0x68] sm:$0xff]
    %v335 = vld [vmem:[%s320 + $0x70] sm:$0xff]
    %v336 = vld [vmem:[%s320 + $0x78] sm:$0xff]
    %v337 = vld [vmem:[%s320 + $0x80] sm:$0xff]
    %v338 = vld [vmem:[%s320 + $0x88] sm:$0xff]
    %v339 = vld [vmem:[%s320 + $0x90] sm:$0xff]
    %v340 = vld [vmem:[%s320 + $0x98] sm:$0xff]
    %v341 = vld [vmem:[%s320 + $0xa0] sm:$0xff]
    %v342 = vld [vmem:[%s320 + $0xa8] sm:$0xff]
    %v343 = vld [vmem:[%s320 + $0xb0] sm:$0xff]
    %v344 = vld [vmem:[%s320 + $0xb8] sm:$0xff]
    %v345 = vld [vmem:[%s320 + $0xc0] sm:$0xff]
    %v346 = vld [vmem:[%s320 + $0xc8] sm:$0xff]
    %v347 = vld [vmem:[%s320 + $0xd0] sm:$0xff]
    %v348 = vld [vmem:[%s320 + $0xd8] sm:$0xff]
    %v349 = vld [vmem:[%s320 + $0xe0] sm:$0xff]
    %v350 = vld [vmem:[%s320 + $0xe8] sm:$0xff]
    %v351 = vld [vmem:[%s320 + $0xf0] sm:$0xff]
    %v352 = vld [vmem:[%s320 + $0xf8] sm:$0xff]
    %v353 = vld [vmem:[%s320 + $0x100] sm:$0xff]
    %v354 = vld [vmem:[%s320 + $0x108] sm:$0xff]
    %v355 = vld [vmem:[%s320 + $0x110] sm:$0xff]
    %v356 = vld [vmem:[%s320 + $0x118] sm:$0xff]
    %v357 = vld [vmem:[%s320 + $0x120] sm:$0xff]
    %v358 = vld [vmem:[%s320 + $0x128] sm:$0xff]
    %v359 = vld [vmem:[%s320 + $0x130] sm:$0xff]
    %v360 = vld [vmem:[%s320 + $0x138] sm:$0xff]
    %v361 = vld [vmem:[%s320 + $0x140] sm:$0xff]
    %v362 = vld [vmem:[%s320 + $0x148] sm:$0xff]
    %v363 = vld [vmem:[%s320 + $0x150] sm:$0xff]
    %v364 = vld [vmem:[%s320 + $0x158] sm:$0xff]
    %v365 = vld [vmem:[%s320 + $0x160] sm:$0xff]
    %v366 = vld [vmem:[%s320 + $0x168] sm:$0xff]
    %v367 = vld [vmem:[%s320 + $0x170] sm:$0xff]
    %v368 = vld [vmem:[%s320 + $0x178] sm:$0xff]
    %v369 = vld [vmem:[%s320 + $0x180] sm:$0xff]
    %v370 = vld [vmem:[%s320 + $0x188] sm:$0xff]
    %v371 = vld [vmem:[%s320 + $0x190] sm:$0xff]
    %v372 = vld [vmem:[%s320 + $0x198] sm:$0xff]
    %v373 = vld [vmem:[%s320 + $0x1a0] sm:$0xff]
    %v374 = vld [vmem:[%s320 + $0x1a8] sm:$0xff]
    %v375 = vld [vmem:[%s320 + $0x1b0] sm:$0xff]
    %v376 = vld [vmem:[%s320 + $0x1b8] sm:$0xff]
    %v377 = vld [vmem:[%s320 + $0x1c0] sm:$0xff]
    %v378 = vld [vmem:[%s320 + $0x1c8] sm:$0xff]
    %v379 = vld [vmem:[%s320 + $0x1d0] sm:$0xff]
    %v380 = vld [vmem:[%s320 + $0x1d8] sm:$0xff]
    %v381 = vld [vmem:[%s320 + $0x1e0] sm:$0xff]
    %v382 = vld [vmem:[%s320 + $0x1e8] sm:$0xff]
    %v383 = vld [vmem:[%s320 + $0x1f0] sm:$0xff]
    %v384 = vld [vmem:[%s320 + $0x1f8] sm:$0xff]
    %v385 = vld [vmem:[%s320 + $0x200] sm:$0xff]
    %v386 = vld [vmem:[%s320 + $0x208] sm:$0xff]
    %v387 = vld [vmem:[%s320 + $0x210] sm:$0xff]
    %v388 = vld [vmem:[%s320 + $0x218] sm:$0xff]
    %v389 = vld [vmem:[%s320 + $0x220] sm:$0xff]
    %v390 = vld [vmem:[%s320 + $0x228] sm:$0xff]
    %v391 = vld [vmem:[%s320 + $0x230] sm:$0xff]
    %v392 = vld [vmem:[%s320 + $0x238] sm:$0xff]
    %v393 = vld [vmem:[%s320 + $0x240] sm:$0xff]
    %v394 = vld [vmem:[%s320 + $0x248] sm:$0xff]
    %v395 = vld [vmem:[%s320 + $0x250] sm:$0xff]
    %v396 = vld [vmem:[%s320 + $0x258] sm:$0xff]
    %v397 = vld [vmem:[%s320 + $0x260] sm:$0xff]
    %v398 = vld [vmem:[%s320 + $0x268] sm:$0xff]
    %v399 = vld [vmem:[%s320 + $0x270] sm:$0xff]
    %v400 = vld [vmem:[%s320 + $0x278] sm:$0xff]
    %v401 = vld [vmem:[%s320 + $0x280] sm:$0xff]
    %v402 = vld [vmem:[%s320 + $0x288] sm:$0xff]
    %v403 = vld [vmem:[%s320 + $0x290] sm:$0xff]
    %v404 = vld [vmem:[%s320 + $0x298] sm:$0xff]
    %v405 = vld [vmem:[%s320 + $0x2a0] sm:$0xff]
    %v406 = vld [vmem:[%s320 + $0x2a8] sm:$0xff]
    %v407 = vld [vmem:[%s320 + $0x2b0] sm:$0xff]
    %v408 = vld [vmem:[%s320 + $0x2b8] sm:$0xff]
    %v409 = vld [vmem:[%s320 + $0x2c0] sm:$0xff]
    %v410 = vld [vmem:[%s320 + $0x2c8] sm:$0xff]
    %v411 = vld [vmem:[%s320 + $0x2d0] sm:$0xff]
    %v412 = vld [vmem:[%s320 + $0x2d8] sm:$0xff]
    %v413 = vld [vmem:[%s320 + $0x2e0] sm:$0xff]
    %v414 = vld [vmem:[%s320 + $0x2e8] sm:$0xff]
    %v415 = vld [vmem:[%s320 + $0x2f0] sm:$0xff]
    %v416 = vld [vmem:[%s320 + $0x2f8] sm:$0xff]
    %v417 = vld [vmem:[%s320 + $0x300] sm:$0xff]
    %v418 = vld [vmem:[%s320 + $0x308] sm:$0xff]
    %v419 = vld [vmem:[%s320 + $0x310] sm:$0xff]
    %v420 = vld [vmem:[%s320 + $0x318] sm:$0xff]
    %v421 = vld [vmem:[%s320 + $0x320] sm:$0xff]
    %v422 = vld [vmem:[%s320 + $0x328] sm:$0xff]
    %v423 = vld [vmem:[%s320 + $0x330] sm:$0xff]
    %v424 = vld [vmem:[%s320 + $0x338] sm:$0xff]
    %v425 = vld [vmem:[%s320 + $0x340] sm:$0xff]
    %v426 = vld [vmem:[%s320 + $0x348] sm:$0xff]
    %v427 = vld [vmem:[%s320 + $0x350] sm:$0xff]
    %v428 = vld [vmem:[%s320 + $0x358] sm:$0xff]
    %v429 = vld [vmem:[%s320 + $0x360] sm:$0xff]
    %v430 = vld [vmem:[%s320 + $0x368] sm:$0xff]
    %v431 = vld [vmem:[%s320 + $0x370] sm:$0xff]
    %v432 = vld [vmem:[%s320 + $0x378] sm:$0xff]
    %v433 = vld [vmem:[%s320 + $0x380] sm:$0xff]
    %v434 = vld [vmem:[%s320 + $0x388] sm:$0xff]
    %v435 = vld [vmem:[%s320 + $0x390] sm:$0xff]
    %v436 = vld [vmem:[%s320 + $0x398] sm:$0xff]
    %v437 = vld [vmem:[%s320 + $0x3a0] sm:$0xff]
    %v438 = vld [vmem:[%s320 + $0x3a8] sm:$0xff]
    %v439 = vld [vmem:[%s320 + $0x3b0] sm:$0xff]
    %v440 = vld [vmem:[%s320 + $0x3b8] sm:$0xff]
    %v441 = vld [vmem:[%s320 + $0x3c0] sm:$0xff]
    %v442 = vld [vmem:[%s320 + $0x3c8] sm:$0xff]
    %v443 = vld [vmem:[%s320 + $0x3d0] sm:$0xff]
    %v444 = vld [vmem:[%s320 + $0x3d8] sm:$0xff]
    %v445 = vld [vmem:[%s320 + $0x3e0] sm:$0xff]
    %v446 = vld [vmem:[%s320 + $0x3e8] sm:$0xff]
    %v447 = vld [vmem:[%s320 + $0x3f0] sm:$0xff]
    %v448 = vld [vmem:[%s320 + $0x3f8] sm:$0xff]
    %v449 = vld [vmem:[%s8] sm:$0xf]
    %v451 = vlaneseq
    %v452 = vshrl.u32 %v451, 7
    %v453 = vsub.s32 0, %v452
    %v454 = vrot.slane %v449, %v453
    %v455 = vlaneseq
    %v456 = vshrl.u32 %v455, 7
    %v457 = vsub.s32 1, %v456
    %v458 = vrot.slane %v449, %v457
    %v459 = vlaneseq
    %v460 = vshrl.u32 %v459, 7
    %v461 = vsub.s32 2, %v460
    %v462 = vrot.slane %v449, %v461
    %v463 = vlaneseq
    %v464 = vshrl.u32 %v463, 7
    %v465 = vsub.s32 3, %v464
    %v466 = vrot.slane %v449, %v465
    %s471 = scalar_lea.vmem %s8, 4
    %v472 = vld [vmem:[%s471] sm:$0xf]
    %v474 = vlaneseq
    %v475 = vshrl.u32 %v474, 7
    %v476 = vsub.s32 0, %v475
    %v477 = vrot.slane %v472, %v476
    %v478 = vlaneseq
    %v479 = vshrl.u32 %v478, 7
    %v480 = vsub.s32 1, %v479
    %v481 = vrot.slane %v472, %v480
    %v482 = vlaneseq
    %v483 = vshrl.u32 %v482, 7
    %v484 = vsub.s32 2, %v483
    %v485 = vrot.slane %v472, %v484
    %v486 = vlaneseq
    %v487 = vshrl.u32 %v486, 7
    %v488 = vsub.s32 3, %v487
    %v489 = vrot.slane %v472, %v488
    %v494 = vlaneseq
    %v495 = vand.u32 %v494, 127
    %v496 = vcvt.s32.f32 %v495
    %v497 = vld [vmem:[%s6] sm:$0x3]
    %v499 = vlaneseq
    %v500 = vshrl.u32 %v499, 7
    %v501 = vsub.s32 0, %v500
    %v502 = vrot.slane %v497, %v501
    %v503 = vlaneseq
    %v504 = vshrl.u32 %v503, 7
    %v505 = vsub.s32 1, %v504
    %v506 = vrot.slane %v497, %v505
    %509 = vmatprep.subr.mxu0 %v145
    %510 = vmatpush1.msra.mxu0 %v144
    %511 = vmatprep.subr.mxu0 %v143
    %512 = vmatpush1.msra.mxu0 %v142
    %513 = vmatprep.subr.mxu0 %v141
    %514 = vmatpush1.msra.mxu0 %v140
    %515 = vmatprep.subr.mxu0 %v139
    %516 = vmatpush1.msra.mxu0 %v138
    %517 = vmatprep.subr.mxu0 %v137
    %518 = vmatpush1.msra.mxu0 %v136
    %519 = vmatprep.subr.mxu0 %v135
    %520 = vmatpush1.msra.mxu0 %v134
    %521 = vmatprep.subr.mxu0 %v133
    %522 = vmatpush1.msra.mxu0 %v132
    %523 = vmatprep.subr.mxu0 %v131
    %524 = vmatpush1.msra.mxu0 %v130
    %525 = vmatprep.subr.mxu0 %v129
    %526 = vmatpush1.msra.mxu0 %v128
    %527 = vmatprep.subr.mxu0 %v127
    %528 = vmatpush1.msra.mxu0 %v126
    %529 = vmatprep.subr.mxu0 %v125
    %530 = vmatpush1.msra.mxu0 %v124
    %531 = vmatprep.subr.mxu0 %v123
    %532 = vmatpush1.msra.mxu0 %v122
    %533 = vmatprep.subr.mxu0 %v121
    %534 = vmatpush1.msra.mxu0 %v120
    %535 = vmatprep.subr.mxu0 %v119
    %536 = vmatpush1.msra.mxu0 %v118
    %537 = vmatprep.subr.mxu0 %v117
    %538 = vmatpush1.msra.mxu0 %v116
    %539 = vmatprep.subr.mxu0 %v115
    %540 = vmatpush1.msra.mxu0 %v114
    %541 = vmatprep.subr.mxu0 0.0
    %542 = vmatpush2.msra.mxu0 0.0
    %543 = vmatprep.subr.mxu0 0.0
    %544 = vmatpush2.msra.mxu0 0.0
    %545 = vmatprep.subr.mxu0 0.0
    %546 = vmatpush2.msra.mxu0 0.0
    %547 = vmatprep.subr.mxu0 0.0
    %548 = vmatpush2.msra.mxu0 0.0
    %549 = vmatprep.subr.mxu0 0.0
    %550 = vmatpush2.msra.mxu0 0.0
    %551 = vmatprep.subr.mxu0 0.0
    %552 = vmatpush2.msra.mxu0 0.0
    %553 = vmatprep.subr.mxu0 0.0
    %554 = vmatpush2.msra.mxu0 0.0
    %555 = vmatprep.subr.mxu0 0.0
    %556 = vmatpush2.msra.mxu0 0.0
    %557 = vmatprep.subr.mxu0 0.0
    %558 = vmatpush2.msra.mxu0 0.0
    %559 = vmatprep.subr.mxu0 0.0
    %560 = vmatpush2.msra.mxu0 0.0
    %561 = vmatprep.subr.mxu0 0.0
    %562 = vmatpush2.msra.mxu0 0.0
    %563 = vmatprep.subr.mxu0 0.0
    %564 = vmatpush2.msra.mxu0 0.0
    %565 = vmatprep.subr.mxu0 0.0
    %566 = vmatpush2.msra.mxu0 0.0
    %567 = vmatprep.subr.mxu0 0.0
    %568 = vmatpush2.msra.mxu0 0.0
    %569 = vmatprep.subr.mxu0 0.0
    %570 = vmatpush2.msra.mxu0 0.0
    %571 = vmatprep.subr.mxu0 0.0
    %572 = vmatpush2.msra.mxu0 0.0
    %573 = vmatprep.mubr.f32.mxu0 0.0
    %574 = vmatmul.mubr.f32.gmra.mxu0 %v66
    %v575 = vpop.f32.mrf.mxu0
    %v576 = vadd.f32 %v502, %v575
    %v577 = vpop.f32.mrf.mxu0
    %v578 = vadd.f32 %v506, %v577
    %579 = vmatprep.mubr.f32.mxu0 0.0
    %580 = vmatmul.mubr.f32.gmra.mxu0 %v67
    %v581 = vpop.f32.mrf.mxu0
    %v582 = vadd.f32 %v502, %v581
    %v583 = vpop.f32.mrf.mxu0
    %v584 = vadd.f32 %v506, %v583
    %585 = vdwg.mxu0
    %v586 = vtanh.pop %v576
    %v587 = vtanh.pop %v578
    %v588 = vtanh.pop %v582
    %v589 = vtanh.pop %v584
    %vm590 = vcmp.eq.f32.partialorder %v496, 1.0
    %v591 = vsel %vm590, 1, 0
    %v592 = vcvt.s32.f32 %v591
    %vm593 = vcmask 261120
    %v595 = vsel %vm593, %v592, 0
    %597 = vmatprep.subr.mxu0 0.0
    %598 = vmatpush1.msra.mxu0 0.0
    %599 = vmatprep.subr.mxu0 0.0
    %600 = vmatpush1.msra.mxu0 0.0
    %601 = vmatprep.subr.mxu0 0.0
    %602 = vmatpush1.msra.mxu0 0.0
    %603 = vmatprep.subr.mxu0 0.0
    %604 = vmatpush1.msra.mxu0 0.0
    %605 = vmatprep.subr.mxu0 0.0
    %606 = vmatpush1.msra.mxu0 0.0
    %607 = vmatprep.subr.mxu0 0.0
    %608 = vmatpush1.msra.mxu0 0.0
    %609 = vmatprep.subr.mxu0 0.0
    %610 = vmatpush1.msra.mxu0 0.0
    %611 = vmatprep.subr.mxu0 0.0
    %612 = vmatpush1.msra.mxu0 0.0
    %613 = vmatprep.subr.mxu0 0.0
    %614 = vmatpush1.msra.mxu0 0.0
    %615 = vmatprep.subr.mxu0 0.0
    %616 = vmatpush1.msra.mxu0 0.0
    %617 = vmatprep.subr.mxu0 0.0
    %618 = vmatpush1.msra.mxu0 0.0
    %619 = vmatprep.subr.mxu0 0.0
    %620 = vmatpush1.msra.mxu0 0.0
    %621 = vmatprep.subr.mxu0 0.0
    %622 = vmatpush1.msra.mxu0 %v97
    %623 = vmatprep.subr.mxu0 0.0
    %624 = vmatpush1.msra.mxu0 %v96
    %625 = vmatprep.subr.mxu0 0.0
    %626 = vmatpush1.msra.mxu0 %v95
    %627 = vmatprep.subr.mxu0 0.0
    %628 = vmatpush1.msra.mxu0 %v94
    %629 = vmatprep.subr.mxu0 0.0
    %630 = vmatpush2.msra.mxu0 0.0
    %631 = vmatprep.subr.mxu0 0.0
    %632 = vmatpush2.msra.mxu0 0.0
    %633 = vmatprep.subr.mxu0 0.0
    %634 = vmatpush2.msra.mxu0 0.0
    %635 = vmatprep.subr.mxu0 0.0
    %636 = vmatpush2.msra.mxu0 0.0
    %637 = vmatprep.subr.mxu0 0.0
    %638 = vmatpush2.msra.mxu0 0.0
    %639 = vmatprep.subr.mxu0 0.0
    %640 = vmatpush2.msra.mxu0 0.0
    %641 = vmatprep.subr.mxu0 0.0
    %642 = vmatpush2.msra.mxu0 0.0
    %643 = vmatprep.subr.mxu0 0.0
    %644 = vmatpush2.msra.mxu0 0.0
    %645 = vmatprep.subr.mxu0 0.0
    %646 = vmatpush2.msra.mxu0 0.0
    %647 = vmatprep.subr.mxu0 0.0
    %648 = vmatpush2.msra.mxu0 0.0
    %649 = vmatprep.subr.mxu0 0.0
    %650 = vmatpush2.msra.mxu0 0.0
    %651 = vmatprep.subr.mxu0 0.0
    %652 = vmatpush2.msra.mxu0 0.0
    %653 = vmatprep.subr.mxu0 0.0
    %654 = vmatpush2.msra.mxu0 0.0
    %655 = vmatprep.subr.mxu0 0.0
    %656 = vmatpush2.msra.mxu0 0.0
    %657 = vmatprep.subr.mxu0 0.0
    %658 = vmatpush2.msra.mxu0 0.0
    %659 = vmatprep.subr.mxu0 0.0
    %660 = vmatpush2.msra.mxu0 0.0
    %661 = vmatprep.mubr.f32.mxu0 0.0
    %662 = vmatmul.mubr.f32.gmra.mxu0 %v595
    %v663 = vpop.f32.mrf.mxu0
    %v664 = vadd.f32 0.0, %v663
    %v665 = vpop.f32.mrf.mxu0
    %666 = vdwg.mxu0
    %667 = vmatprep.subr.mxu0 0.0
    %668 = vmatpush1.msra.mxu0 %v113
    %669 = vmatprep.subr.mxu0 0.0
    %670 = vmatpush1.msra.mxu0 %v112
    %671 = vmatprep.subr.mxu0 0.0
    %672 = vmatpush1.msra.mxu0 %v111
    %673 = vmatprep.subr.mxu0 0.0
    %674 = vmatpush1.msra.mxu0 %v110
    %675 = vmatprep.subr.mxu0 0.0
    %676 = vmatpush1.msra.mxu0 %v109
    %677 = vmatprep.subr.mxu0 0.0
    %678 = vmatpush1.msra.mxu0 %v108
    %679 = vmatprep.subr.mxu0 0.0
    %680 = vmatpush1.msra.mxu0 %v107
    %681 = vmatprep.subr.mxu0 0.0
    %682 = vmatpush1.msra.mxu0 %v106
    %683 = vmatprep.subr.mxu0 0.0
    %684 = vmatpush1.msra.mxu0 %v105
    %685 = vmatprep.subr.mxu0 0.0
    %686 = vmatpush1.msra.mxu0 %v104
    %687 = vmatprep.subr.mxu0 0.0
    %688 = vmatpush1.msra.mxu0 %v103
    %689 = vmatprep.subr.mxu0 0.0
    %690 = vmatpush1.msra.mxu0 %v102
    %691 = vmatprep.subr.mxu0 0.0
    %692 = vmatpush1.msra.mxu0 %v101
    %693 = vmatprep.subr.mxu0 0.0
    %694 = vmatpush1.msra.mxu0 %v100
    %695 = vmatprep.subr.mxu0 0.0
    %696 = vmatpush1.msra.mxu0 %v99
    %697 = vmatprep.subr.mxu0 0.0
    %698 = vmatpush1.msra.mxu0 %v98
    %699 = vmatprep.subr.mxu0 0.0
    %700 = vmatpush2.msra.mxu0 0.0
    %701 = vmatprep.subr.mxu0 0.0
    %702 = vmatpush2.msra.mxu0 0.0
    %703 = vmatprep.subr.mxu0 0.0
    %704 = vmatpush2.msra.mxu0 0.0
    %705 = vmatprep.subr.mxu0 0.0
    %706 = vmatpush2.msra.mxu0 0.0
    %707 = vmatprep.subr.mxu0 0.0
    %708 = vmatpush2.msra.mxu0 0.0
    %709 = vmatprep.subr.mxu0 0.0
    %710 = vmatpush2.msra.mxu0 0.0
    %711 = vmatprep.subr.mxu0 0.0
    %712 = vmatpush2.msra.mxu0 0.0
    %713 = vmatprep.subr.mxu0 0.0
    %714 = vmatpush2.msra.mxu0 0.0
    %715 = vmatprep.subr.mxu0 0.0
    %716 = vmatpush2.msra.mxu0 0.0
    %717 = vmatprep.subr.mxu0 0.0
    %718 = vmatpush2.msra.mxu0 0.0
    %719 = vmatprep.subr.mxu0 0.0
    %720 = vmatpush2.msra.mxu0 0.0
    %721 = vmatprep.subr.mxu0 0.0
    %722 = vmatpush2.msra.mxu0 0.0
    %723 = vmatprep.subr.mxu0 0.0
    %724 = vmatpush2.msra.mxu0 0.0
    %725 = vmatprep.subr.mxu0 0.0
    %726 = vmatpush2.msra.mxu0 0.0
    %727 = vmatprep.subr.mxu0 0.0
    %728 = vmatpush2.msra.mxu0 0.0
    %729 = vmatprep.subr.mxu0 0.0
    %730 = vmatpush2.msra.mxu0 0.0
    %731 = vmatprep.mubr.f32.mxu0 0.0
    %732 = vmatmul.mubr.f32.gmra.mxu0 %v664
    %v733 = vpop.f32.mrf.mxu0
    %v734 = vadd.f32 %v183, %v733
    %v735 = vpop.f32.mrf.mxu0
    %736 = vdwg.mxu0
    %v737 = vtanh.pop %v734
    %v740 = vunpack.c.l.s4 1966171168
    %v741 = vunpack.c.0.s8 %v740
    %v742 = vlaneseq
    %v743 = vshrl.u32 %v742, 7
    %v744 = vsub.s32 %v741, %v743
    %v745 = vrot.slane %v737, %v744
    %v746 = vcombine.high %v745, %v745
    %v748 = vunpack.c.l.s4 1966171168
    %v749 = vunpack.c.0.s8 %v748
    %v750 = vlaneseq
    %v751 = vshrl.u32 %v750, 7
    %v752 = vsub.s32 %v749, %v751
    %v753 = vrot.slane %v745, %v752
    %v755 = vunpack.c.l.s4 1966171168
    %v756 = vunpack.c.0.s8 %v755
    %v757 = vlaneseq
    %v758 = vshrl.u32 %v757, 7
    %v759 = vsub.s32 %v756, %v758
    %v760 = vrot.slane %v746, %v759
    %763 = vmatprep.subr.mxu0 0.0
    %764 = vmatpush1.xpose.msra.mxu0 0.0
    %765 = vmatprep.subr.mxu0 0.0
    %766 = vmatpush1.xpose.msra.mxu0 0.0
    %767 = vmatprep.subr.mxu0 0.0
    %768 = vmatpush1.xpose.msra.mxu0 0.0
    %769 = vmatprep.subr.mxu0 0.0
    %770 = vmatpush1.xpose.msra.mxu0 0.0
    %771 = vmatprep.subr.mxu0 0.0
    %772 = vmatpush1.xpose.msra.mxu0 0.0
    %773 = vmatprep.subr.mxu0 0.0
    %774 = vmatpush1.xpose.msra.mxu0 0.0
    %775 = vmatprep.subr.mxu0 0.0
    %776 = vmatpush1.xpose.msra.mxu0 0.0
    %777 = vmatprep.subr.mxu0 0.0
    %778 = vmatpush1.xpose.msra.mxu0 0.0
    %779 = vmatprep.subr.mxu0 0.0
    %780 = vmatpush1.xpose.msra.mxu0 0.0
    %781 = vmatprep.subr.mxu0 0.0
    %782 = vmatpush1.xpose.msra.mxu0 0.0
    %783 = vmatprep.subr.mxu0 0.0
    %784 = vmatpush1.xpose.msra.mxu0 0.0
    %785 = vmatprep.subr.mxu0 0.0
    %786 = vmatpush1.xpose.msra.mxu0 0.0
    %787 = vmatprep.subr.mxu0 0.0
    %788 = vmatpush1.xpose.msra.mxu0 0.0
    %789 = vmatprep.subr.mxu0 0.0
    %790 = vmatpush1.xpose.msra.mxu0 0.0
    %791 = vmatprep.subr.mxu0 0.0
    %792 = vmatpush1.xpose.msra.mxu0 0.0
    %793 = vmatprep.subr.mxu0 0.0
    %794 = vmatpush1.xpose.msra.mxu0 %v586
    %795 = vmatprep.subr.mxu0 0.0
    %796 = vmatpush2.xpose.msra.mxu0 0.0
    %797 = vmatprep.subr.mxu0 0.0
    %798 = vmatpush2.xpose.msra.mxu0 0.0
    %799 = vmatprep.subr.mxu0 0.0
    %800 = vmatpush2.xpose.msra.mxu0 0.0
    %801 = vmatprep.subr.mxu0 0.0
    %802 = vmatpush2.xpose.msra.mxu0 0.0
    %803 = vmatprep.subr.mxu0 0.0
    %804 = vmatpush2.xpose.msra.mxu0 0.0
    %805 = vmatprep.subr.mxu0 0.0
    %806 = vmatpush2.xpose.msra.mxu0 0.0
    %807 = vmatprep.subr.mxu0 0.0
    %808 = vmatpush2.xpose.msra.mxu0 0.0
    %809 = vmatprep.subr.mxu0 0.0
    %810 = vmatpush2.xpose.msra.mxu0 0.0
    %811 = vmatprep.subr.mxu0 0.0
    %812 = vmatpush2.xpose.msra.mxu0 0.0
    %813 = vmatprep.subr.mxu0 0.0
    %814 = vmatpush2.xpose.msra.mxu0 0.0
    %815 = vmatprep.subr.mxu0 0.0
    %816 = vmatpush2.xpose.msra.mxu0 0.0
    %817 = vmatprep.subr.mxu0 0.0
    %818 = vmatpush2.xpose.msra.mxu0 0.0
    %819 = vmatprep.subr.mxu0 0.0
    %820 = vmatpush2.xpose.msra.mxu0 0.0
    %821 = vmatprep.subr.mxu0 0.0
    %822 = vmatpush2.xpose.msra.mxu0 0.0
    %823 = vmatprep.subr.mxu0 0.0
    %824 = vmatpush2.xpose.msra.mxu0 0.0
    %825 = vmatprep.subr.mxu0 0.0
    %826 = vmatpush2.xpose.msra.mxu0 0.0
    %827 = vmatprep.mubr.f32.mxu0 0.0
    %828 = vmatmul.mubr.f32.gmra.mxu0 %v753
    %v829 = vpop.f32.mrf.mxu0
    %v830 = vadd.f32 0.0, %v829
    %v831 = vpop.f32.mrf.mxu0
    %832 = vdwg.mxu0
    %833 = vmatprep.subr.mxu0 0.0
    %834 = vmatpush1.xpose.msra.mxu0 0.0
    %835 = vmatprep.subr.mxu0 0.0
    %836 = vmatpush1.xpose.msra.mxu0 0.0
    %837 = vmatprep.subr.mxu0 0.0
    %838 = vmatpush1.xpose.msra.mxu0 0.0
    %839 = vmatprep.subr.mxu0 0.0
    %840 = vmatpush1.xpose.msra.mxu0 0.0
    %841 = vmatprep.subr.mxu0 0.0
    %842 = vmatpush1.xpose.msra.mxu0 0.0
    %843 = vmatprep.subr.mxu0 0.0
    %844 = vmatpush1.xpose.msra.mxu0 0.0
    %845 = vmatprep.subr.mxu0 0.0
    %846 = vmatpush1.xpose.msra.mxu0 0.0
    %847 = vmatprep.subr.mxu0 0.0
    %848 = vmatpush1.xpose.msra.mxu0 0.0
    %849 = vmatprep.subr.mxu0 0.0
    %850 = vmatpush1.xpose.msra.mxu0 0.0
    %851 = vmatprep.subr.mxu0 0.0
    %852 = vmatpush1.xpose.msra.mxu0 0.0
    %853 = vmatprep.subr.mxu0 0.0
    %854 = vmatpush1.xpose.msra.mxu0 0.0
    %855 = vmatprep.subr.mxu0 0.0
    %856 = vmatpush1.xpose.msra.mxu0 0.0
    %857 = vmatprep.subr.mxu0 0.0
    %858 = vmatpush1.xpose.msra.mxu0 0.0
    %859 = vmatprep.subr.mxu0 0.0
    %860 = vmatpush1.xpose.msra.mxu0 0.0
    %861 = vmatprep.subr.mxu0 0.0
    %862 = vmatpush1.xpose.msra.mxu0 0.0
    %863 = vmatprep.subr.mxu0 0.0
    %864 = vmatpush1.xpose.msra.mxu0 %v588
    %865 = vmatprep.subr.mxu0 0.0
    %866 = vmatpush2.xpose.msra.mxu0 0.0
    %867 = vmatprep.subr.mxu0 0.0
    %868 = vmatpush2.xpose.msra.mxu0 0.0
    %869 = vmatprep.subr.mxu0 0.0
    %870 = vmatpush2.xpose.msra.mxu0 0.0
    %871 = vmatprep.subr.mxu0 0.0
    %872 = vmatpush2.xpose.msra.mxu0 0.0
    %873 = vmatprep.subr.mxu0 0.0
    %874 = vmatpush2.xpose.msra.mxu0 0.0
    %875 = vmatprep.subr.mxu0 0.0
    %876 = vmatpush2.xpose.msra.mxu0 0.0
    %877 = vmatprep.subr.mxu0 0.0
    %878 = vmatpush2.xpose.msra.mxu0 0.0
    %879 = vmatprep.subr.mxu0 0.0
    %880 = vmatpush2.xpose.msra.mxu0 0.0
    %881 = vmatprep.subr.mxu0 0.0
    %882 = vmatpush2.xpose.msra.mxu0 0.0
    %883 = vmatprep.subr.mxu0 0.0
    %884 = vmatpush2.xpose.msra.mxu0 0.0
    %885 = vmatprep.subr.mxu0 0.0
    %886 = vmatpush2.xpose.msra.mxu0 0.0
    %887 = vmatprep.subr.mxu0 0.0
    %888 = vmatpush2.xpose.msra.mxu0 0.0
    %889 = vmatprep.subr.mxu0 0.0
    %890 = vmatpush2.xpose.msra.mxu0 0.0
    %891 = vmatprep.subr.mxu0 0.0
    %892 = vmatpush2.xpose.msra.mxu0 0.0
    %893 = vmatprep.subr.mxu0 0.0
    %894 = vmatpush2.xpose.msra.mxu0 0.0
    %895 = vmatprep.subr.mxu0 0.0
    %896 = vmatpush2.xpose.msra.mxu0 0.0
    %897 = vmatprep.mubr.f32.mxu0 0.0
    %898 = vmatmul.mubr.f32.gmra.mxu0 %v760
    %v899 = vpop.f32.mrf.mxu0
    %v900 = vadd.f32 0.0, %v899
    %v901 = vpop.f32.mrf.mxu0
    %902 = vdwg.mxu0
    %vm903 = vcmask 57344
    %v904 = vsel %vm903, %v830, -inf
    %905 = vmax.xlane.f32.xlu0 %v904
    %v906 = vpop.xlane.xlu0 %905
    %v907 = vsel %vm903, %v900, -inf
    %908 = vmax.xlane.f32.xlu0 %v907
    %v909 = vpop.xlane.xlu0 %908
    %v910 = vsub.f32 %v830, %v906
    %v911 = vsub.f32 %v900, %v909
    %v912 = vmul.f32 %v910, 1.442695
    %v913 = vpow.pop %v912
    %v914 = vmul.f32 %v911, 1.442695
    %v915 = vpow.pop %v914
    %v916 = vsel %vm903, %v913, 0.0
    %917 = vadd.xlane.f32.xlu0 %v916
    %v918 = vpop.xlane.xlu0 %917
    %v919 = vsel %vm903, %v915, 0.0
    %920 = vadd.xlane.f32.xlu0 %v919
    %v921 = vpop.xlane.xlu0 %920
    %v922 = vrcp.pop %v918
    %v923 = vmul.f32 %v913, %v922
    %v924 = vrcp.pop %v921
    %v925 = vmul.f32 %v915, %v924
    %v926 = vadd.f32 %v923, %v84
    %v927 = vadd.f32 %v925, %v91
    %vm928 = vcmask 64512
    %v930 = vsel %vm928, %v926, 0
    %932 = vmatprep.subr.mxu0 0.0
    %933 = vmatpush1.msra.mxu0 0.0
    %934 = vmatprep.subr.mxu0 0.0
    %935 = vmatpush1.msra.mxu0 0.0
    %936 = vmatprep.subr.mxu0 0.0
    %937 = vmatpush1.msra.mxu0 0.0
    %938 = vmatprep.subr.mxu0 0.0
    %939 = vmatpush1.msra.mxu0 0.0
    %940 = vmatprep.subr.mxu0 0.0
    %941 = vmatpush1.msra.mxu0 0.0
    %942 = vmatprep.subr.mxu0 0.0
    %943 = vmatpush1.msra.mxu0 0.0
    %944 = vmatprep.subr.mxu0 0.0
    %945 = vmatpush1.msra.mxu0 0.0
    %946 = vmatprep.subr.mxu0 0.0
    %947 = vmatpush1.msra.mxu0 0.0
    %948 = vmatprep.subr.mxu0 0.0
    %949 = vmatpush1.msra.mxu0 0.0
    %950 = vmatprep.subr.mxu0 0.0
    %951 = vmatpush1.msra.mxu0 0.0
    %952 = vmatprep.subr.mxu0 0.0
    %953 = vmatpush1.msra.mxu0 0.0
    %954 = vmatprep.subr.mxu0 0.0
    %955 = vmatpush1.msra.mxu0 0.0
    %956 = vmatprep.subr.mxu0 0.0
    %957 = vmatpush1.msra.mxu0 0.0
    %958 = vmatprep.subr.mxu0 0.0
    %959 = vmatpush1.msra.mxu0 0.0
    %960 = vmatprep.subr.mxu0 0.0
    %961 = vmatpush1.msra.mxu0 0.0
    %962 = vmatprep.subr.mxu0 0.0
    %963 = vmatpush1.msra.mxu0 %v587
    %964 = vmatprep.subr.mxu0 0.0
    %965 = vmatpush2.msra.mxu0 0.0
    %966 = vmatprep.subr.mxu0 0.0
    %967 = vmatpush2.msra.mxu0 0.0
    %968 = vmatprep.subr.mxu0 0.0
    %969 = vmatpush2.msra.mxu0 0.0
    %970 = vmatprep.subr.mxu0 0.0
    %971 = vmatpush2.msra.mxu0 0.0
    %972 = vmatprep.subr.mxu0 0.0
    %973 = vmatpush2.msra.mxu0 0.0
    %974 = vmatprep.subr.mxu0 0.0
    %975 = vmatpush2.msra.mxu0 0.0
    %976 = vmatprep.subr.mxu0 0.0
    %977 = vmatpush2.msra.mxu0 0.0
    %978 = vmatprep.subr.mxu0 0.0
    %979 = vmatpush2.msra.mxu0 0.0
    %980 = vmatprep.subr.mxu0 0.0
    %981 = vmatpush2.msra.mxu0 0.0
    %982 = vmatprep.subr.mxu0 0.0
    %983 = vmatpush2.msra.mxu0 0.0
    %984 = vmatprep.subr.mxu0 0.0
    %985 = vmatpush2.msra.mxu0 0.0
    %986 = vmatprep.subr.mxu0 0.0
    %987 = vmatpush2.msra.mxu0 0.0
    %988 = vmatprep.subr.mxu0 0.0
    %989 = vmatpush2.msra.mxu0 0.0
    %990 = vmatprep.subr.mxu0 0.0
    %991 = vmatpush2.msra.mxu0 0.0
    %992 = vmatprep.subr.mxu0 0.0
    %993 = vmatpush2.msra.mxu0 0.0
    %994 = vmatprep.subr.mxu0 0.0
    %995 = vmatpush2.msra.mxu0 0.0
    %996 = vmatprep.mubr.f32.mxu0 0.0
    %997 = vmatmul.mubr.f32.gmra.mxu0 %v930
    %v998 = vpop.f32.mrf.mxu0
    %v999 = vadd.f32 0.0, %v998
    %v1000 = vpop.f32.mrf.mxu0
    %1001 = vdwg.mxu0
    %v1003 = vsel %vm928, %v927, 0
    %1005 = vmatprep.subr.mxu0 0.0
    %1006 = vmatpush1.msra.mxu0 0.0
    %1007 = vmatprep.subr.mxu0 0.0
    %1008 = vmatpush1.msra.mxu0 0.0
    %1009 = vmatprep.subr.mxu0 0.0
    %1010 = vmatpush1.msra.mxu0 0.0
    %1011 = vmatprep.subr.mxu0 0.0
    %1012 = vmatpush1.msra.mxu0 0.0
    %1013 = vmatprep.subr.mxu0 0.0
    %1014 = vmatpush1.msra.mxu0 0.0
    %1015 = vmatprep.subr.mxu0 0.0
    %1016 = vmatpush1.msra.mxu0 0.0
    %1017 = vmatprep.subr.mxu0 0.0
    %1018 = vmatpush1.msra.mxu0 0.0
    %1019 = vmatprep.subr.mxu0 0.0
    %1020 = vmatpush1.msra.mxu0 0.0
    %1021 = vmatprep.subr.mxu0 0.0
    %1022 = vmatpush1.msra.mxu0 0.0
    %1023 = vmatprep.subr.mxu0 0.0
    %1024 = vmatpush1.msra.mxu0 0.0
    %1025 = vmatprep.subr.mxu0 0.0
    %1026 = vmatpush1.msra.mxu0 0.0
    %1027 = vmatprep.subr.mxu0 0.0
    %1028 = vmatpush1.msra.mxu0 0.0
    %1029 = vmatprep.subr.mxu0 0.0
    %1030 = vmatpush1.msra.mxu0 0.0
    %1031 = vmatprep.subr.mxu0 0.0
    %1032 = vmatpush1.msra.mxu0 0.0
    %1033 = vmatprep.subr.mxu0 0.0
    %1034 = vmatpush1.msra.mxu0 0.0
    %1035 = vmatprep.subr.mxu0 0.0
    %1036 = vmatpush1.msra.mxu0 %v589
    %1037 = vmatprep.subr.mxu0 0.0
    %1038 = vmatpush2.msra.mxu0 0.0
    %1039 = vmatprep.subr.mxu0 0.0
    %1040 = vmatpush2.msra.mxu0 0.0
    %1041 = vmatprep.subr.mxu0 0.0
    %1042 = vmatpush2.msra.mxu0 0.0
    %1043 = vmatprep.subr.mxu0 0.0
    %1044 = vmatpush2.msra.mxu0 0.0
    %1045 = vmatprep.subr.mxu0 0.0
    %1046 = vmatpush2.msra.mxu0 0.0
    %1047 = vmatprep.subr.mxu0 0.0
    %1048 = vmatpush2.msra.mxu0 0.0
    %1049 = vmatprep.subr.mxu0 0.0
    %1050 = vmatpush2.msra.mxu0 0.0
    %1051 = vmatprep.subr.mxu0 0.0
    %1052 = vmatpush2.msra.mxu0 0.0
    %1053 = vmatprep.subr.mxu0 0.0
    %1054 = vmatpush2.msra.mxu0 0.0
    %1055 = vmatprep.subr.mxu0 0.0
    %1056 = vmatpush2.msra.mxu0 0.0
    %1057 = vmatprep.subr.mxu0 0.0
    %1058 = vmatpush2.msra.mxu0 0.0
    %1059 = vmatprep.subr.mxu0 0.0
    %1060 = vmatpush2.msra.mxu0 0.0
    %1061 = vmatprep.subr.mxu0 0.0
    %1062 = vmatpush2.msra.mxu0 0.0
    %1063 = vmatprep.subr.mxu0 0.0
    %1064 = vmatpush2.msra.mxu0 0.0
    %1065 = vmatprep.subr.mxu0 0.0
    %1066 = vmatpush2.msra.mxu0 0.0
    %1067 = vmatprep.subr.mxu0 0.0
    %1068 = vmatpush2.msra.mxu0 0.0
    %1069 = vmatprep.mubr.f32.mxu0 0.0
    %1070 = vmatmul.mubr.f32.gmra.mxu0 %v1003
    %v1071 = vpop.f32.mrf.mxu0
    %v1072 = vadd.f32 0.0, %v1071
    %v1073 = vpop.f32.mrf.mxu0
    %1074 = vdwg.mxu0
    %v1077 = vrot.slane %v1072, 7
    %vm1078 = vcmask 1041409
    %v1079 = vsel %vm1078, %v1077, %v999
    %1081 = vmatprep.subr.mxu0 0.0
    %1082 = vmatpush1.msra.mxu0 %v161
    %1083 = vmatprep.subr.mxu0 0.0
    %1084 = vmatpush1.msra.mxu0 %v160
    %1085 = vmatprep.subr.mxu0 0.0
    %1086 = vmatpush1.msra.mxu0 %v159
    %1087 = vmatprep.subr.mxu0 0.0
    %1088 = vmatpush1.msra.mxu0 %v158
    %1089 = vmatprep.subr.mxu0 0.0
    %1090 = vmatpush1.msra.mxu0 %v157
    %1091 = vmatprep.subr.mxu0 0.0
    %1092 = vmatpush1.msra.mxu0 %v156
    %1093 = vmatprep.subr.mxu0 0.0
    %1094 = vmatpush1.msra.mxu0 %v155
    %1095 = vmatprep.subr.mxu0 0.0
    %1096 = vmatpush1.msra.mxu0 %v154
    %1097 = vmatprep.subr.mxu0 0.0
    %1098 = vmatpush1.msra.mxu0 %v153
    %1099 = vmatprep.subr.mxu0 0.0
    %1100 = vmatpush1.msra.mxu0 %v152
    %1101 = vmatprep.subr.mxu0 0.0
    %1102 = vmatpush1.msra.mxu0 %v151
    %1103 = vmatprep.subr.mxu0 0.0
    %1104 = vmatpush1.msra.mxu0 %v150
    %1105 = vmatprep.subr.mxu0 0.0
    %1106 = vmatpush1.msra.mxu0 %v149
    %1107 = vmatprep.subr.mxu0 0.0
    %1108 = vmatpush1.msra.mxu0 %v148
    %1109 = vmatprep.subr.mxu0 0.0
    %1110 = vmatpush1.msra.mxu0 %v147
    %1111 = vmatprep.subr.mxu0 0.0
    %1112 = vmatpush1.msra.mxu0 %v146
    %1113 = vmatprep.subr.mxu0 0.0
    %1114 = vmatpush2.msra.mxu0 %v177
    %1115 = vmatprep.subr.mxu0 0.0
    %1116 = vmatpush2.msra.mxu0 %v176
    %1117 = vmatprep.subr.mxu0 0.0
    %1118 = vmatpush2.msra.mxu0 %v175
    %1119 = vmatprep.subr.mxu0 0.0
    %1120 = vmatpush2.msra.mxu0 %v174
    %1121 = vmatprep.subr.mxu0 0.0
    %1122 = vmatpush2.msra.mxu0 %v173
    %1123 = vmatprep.subr.mxu0 0.0
    %1124 = vmatpush2.msra.mxu0 %v172
    %1125 = vmatprep.subr.mxu0 0.0
    %1126 = vmatpush2.msra.mxu0 %v171
    %1127 = vmatprep.subr.mxu0 0.0
    %1128 = vmatpush2.msra.mxu0 %v170
    %1129 = vmatprep.subr.mxu0 0.0
    %1130 = vmatpush2.msra.mxu0 %v169
    %1131 = vmatprep.subr.mxu0 0.0
    %1132 = vmatpush2.msra.mxu0 %v168
    %1133 = vmatprep.subr.mxu0 0.0
    %1134 = vmatpush2.msra.mxu0 %v167
    %1135 = vmatprep.subr.mxu0 0.0
    %1136 = vmatpush2.msra.mxu0 %v166
    %1137 = vmatprep.subr.mxu0 0.0
    %1138 = vmatpush2.msra.mxu0 %v165
    %1139 = vmatprep.subr.mxu0 0.0
    %1140 = vmatpush2.msra.mxu0 %v164
    %1141 = vmatprep.subr.mxu0 0.0
    %1142 = vmatpush2.msra.mxu0 %v163
    %1143 = vmatprep.subr.mxu0 0.0
    %1144 = vmatpush2.msra.mxu0 %v162
    %1145 = vmatprep.mubr.f32.mxu0 %v664
    %1146 = vmatmul.mubr.f32.gmra.mxu0 %v1079
    %v1147 = vpop.f32.mrf.mxu0
    %v1148 = vadd.f32 %v190, %v1147
    %v1149 = vpop.f32.mrf.mxu0
    %1150 = vdwg.mxu0
    %1151 = vmatprep.subr.mxu0 %v253
    %1152 = vmatpush1.msra.mxu0 %v252
    %1153 = vmatprep.subr.mxu0 %v249
    %1154 = vmatpush1.msra.mxu0 %v248
    %1155 = vmatprep.subr.mxu0 %v245
    %1156 = vmatpush1.msra.mxu0 %v244
    %1157 = vmatprep.subr.mxu0 %v241
    %1158 = vmatpush1.msra.mxu0 %v240
    %1159 = vmatprep.subr.mxu0 %v237
    %1160 = vmatpush1.msra.mxu0 %v236
    %1161 = vmatprep.subr.mxu0 %v233
    %1162 = vmatpush1.msra.mxu0 %v232
    %1163 = vmatprep.subr.mxu0 %v229
    %1164 = vmatpush1.msra.mxu0 %v228
    %1165 = vmatprep.subr.mxu0 %v225
    %1166 = vmatpush1.msra.mxu0 %v224
    %1167 = vmatprep.subr.mxu0 %v221
    %1168 = vmatpush1.msra.mxu0 %v220
    %1169 = vmatprep.subr.mxu0 %v217
    %1170 = vmatpush1.msra.mxu0 %v216
    %1171 = vmatprep.subr.mxu0 %v213
    %1172 = vmatpush1.msra.mxu0 %v212
    %1173 = vmatprep.subr.mxu0 %v209
    %1174 = vmatpush1.msra.mxu0 %v208
    %1175 = vmatprep.subr.mxu0 %v205
    %1176 = vmatpush1.msra.mxu0 %v204
    %1177 = vmatprep.subr.mxu0 %v201
    %1178 = vmatpush1.msra.mxu0 %v200
    %1179 = vmatprep.subr.mxu0 %v197
    %1180 = vmatpush1.msra.mxu0 %v196
    %1181 = vmatprep.subr.mxu0 %v193
    %1182 = vmatpush1.msra.mxu0 %v192
    %1183 = vmatprep.subr.mxu0 %v317
    %1184 = vmatpush2.msra.mxu0 %v316
    %1185 = vmatprep.subr.mxu0 %v313
    %1186 = vmatpush2.msra.mxu0 %v312
    %1187 = vmatprep.subr.mxu0 %v309
    %1188 = vmatpush2.msra.mxu0 %v308
    %1189 = vmatprep.subr.mxu0 %v305
    %1190 = vmatpush2.msra.mxu0 %v304
    %1191 = vmatprep.subr.mxu0 %v301
    %1192 = vmatpush2.msra.mxu0 %v300
    %1193 = vmatprep.subr.mxu0 %v297
    %1194 = vmatpush2.msra.mxu0 %v296
    %1195 = vmatprep.subr.mxu0 %v293
    %1196 = vmatpush2.msra.mxu0 %v292
    %1197 = vmatprep.subr.mxu0 %v289
    %1198 = vmatpush2.msra.mxu0 %v288
    %1199 = vmatprep.subr.mxu0 %v285
    %1200 = vmatpush2.msra.mxu0 %v284
    %1201 = vmatprep.subr.mxu0 %v281
    %1202 = vmatpush2.msra.mxu0 %v280
    %1203 = vmatprep.subr.mxu0 %v277
    %1204 = vmatpush2.msra.mxu0 %v276
    %1205 = vmatprep.subr.mxu0 %v273
    %1206 = vmatpush2.msra.mxu0 %v272
    %1207 = vmatprep.subr.mxu0 %v269
    %1208 = vmatpush2.msra.mxu0 %v268
    %1209 = vmatprep.subr.mxu0 %v265
    %1210 = vmatpush2.msra.mxu0 %v264
    %1211 = vmatprep.subr.mxu0 %v261
    %1212 = vmatpush2.msra.mxu0 %v260
    %1213 = vmatprep.subr.mxu0 %v257
    %1214 = vmatpush2.msra.mxu0 %v256
    %1215 = vmatprep.mubr.f32.mxu0 %v1079
    %1216 = vmatmul.mubr.f32.gmra.mxu0 %v664
    %v1217 = vpop.f32.mrf.mxu0
    %v1218 = vadd.f32 %v454, %v1217
    %v1219 = vpop.f32.mrf.mxu0
    %v1220 = vadd.f32 %v458, %v1219
    %1221 = vdwg.mxu0
    %1222 = vmatprep.subr.mxu0 %v255
    %1223 = vmatpush1.msra.mxu0 %v254
    %1224 = vmatprep.subr.mxu0 %v251
    %1225 = vmatpush1.msra.mxu0 %v250
    %1226 = vmatprep.subr.mxu0 %v247
    %1227 = vmatpush1.msra.mxu0 %v246
    %1228 = vmatprep.subr.mxu0 %v243
    %1229 = vmatpush1.msra.mxu0 %v242
    %1230 = vmatprep.subr.mxu0 %v239
    %1231 = vmatpush1.msra.mxu0 %v238
    %1232 = vmatprep.subr.mxu0 %v235
    %1233 = vmatpush1.msra.mxu0 %v234
    %1234 = vmatprep.subr.mxu0 %v231
    %1235 = vmatpush1.msra.mxu0 %v230
    %1236 = vmatprep.subr.mxu0 %v227
    %1237 = vmatpush1.msra.mxu0 %v226
    %1238 = vmatprep.subr.mxu0 %v223
    %1239 = vmatpush1.msra.mxu0 %v222
    %1240 = vmatprep.subr.mxu0 %v219
    %1241 = vmatpush1.msra.mxu0 %v218
    %1242 = vmatprep.subr.mxu0 %v215
    %1243 = vmatpush1.msra.mxu0 %v214
    %1244 = vmatprep.subr.mxu0 %v211
    %1245 = vmatpush1.msra.mxu0 %v210
    %1246 = vmatprep.subr.mxu0 %v207
    %1247 = vmatpush1.msra.mxu0 %v206
    %1248 = vmatprep.subr.mxu0 %v203
    %1249 = vmatpush1.msra.mxu0 %v202
    %1250 = vmatprep.subr.mxu0 %v199
    %1251 = vmatpush1.msra.mxu0 %v198
    %1252 = vmatprep.subr.mxu0 %v195
    %1253 = vmatpush1.msra.mxu0 %v194
    %1254 = vmatprep.subr.mxu0 %v319
    %1255 = vmatpush2.msra.mxu0 %v318
    %1256 = vmatprep.subr.mxu0 %v315
    %1257 = vmatpush2.msra.mxu0 %v314
    %1258 = vmatprep.subr.mxu0 %v311
    %1259 = vmatpush2.msra.mxu0 %v310
    %1260 = vmatprep.subr.mxu0 %v307
    %1261 = vmatpush2.msra.mxu0 %v306
    %1262 = vmatprep.subr.mxu0 %v303
    %1263 = vmatpush2.msra.mxu0 %v302
    %1264 = vmatprep.subr.mxu0 %v299
    %1265 = vmatpush2.msra.mxu0 %v298
    %1266 = vmatprep.subr.mxu0 %v295
    %1267 = vmatpush2.msra.mxu0 %v294
    %1268 = vmatprep.subr.mxu0 %v291
    %1269 = vmatpush2.msra.mxu0 %v290
    %1270 = vmatprep.subr.mxu0 %v287
    %1271 = vmatpush2.msra.mxu0 %v286
    %1272 = vmatprep.subr.mxu0 %v283
    %1273 = vmatpush2.msra.mxu0 %v282
    %1274 = vmatprep.subr.mxu0 %v279
    %1275 = vmatpush2.msra.mxu0 %v278
    %1276 = vmatprep.subr.mxu0 %v275
    %1277 = vmatpush2.msra.mxu0 %v274
    %1278 = vmatprep.subr.mxu0 %v271
    %1279 = vmatpush2.msra.mxu0 %v270
    %1280 = vmatprep.subr.mxu0 %v267
    %1281 = vmatpush2.msra.mxu0 %v266
    %1282 = vmatprep.subr.mxu0 %v263
    %1283 = vmatpush2.msra.mxu0 %v262
    %1284 = vmatprep.subr.mxu0 %v259
    %1285 = vmatpush2.msra.mxu0 %v258
    %1286 = vmatprep.mubr.f32.mxu0 %v1079
    %1287 = vmatmul.mubr.f32.gmra.mxu0 %v664
    %v1288 = vpop.f32.mrf.mxu0
    %v1289 = vadd.f32 %v462, %v1288
    %v1290 = vpop.f32.mrf.mxu0
    %v1291 = vadd.f32 %v466, %v1290
    %1292 = vdwg.mxu0
    %v1293 = vxor.u32 %v1218, 2147483648
    %v1294 = vmul.f32 %v1293, 1.442695
    %v1295 = vpow.pop %v1294
    %v1296 = vadd.f32 %v1295, 1.0
    %v1297 = vrcp.pop %v1296
    %v1298 = vmul.f32 1.0, %v1297
    %v1299 = vxor.u32 %v1220, 2147483648
    %v1300 = vmul.f32 %v1299, 1.442695
    %v1301 = vpow.pop %v1300
    %v1302 = vadd.f32 %v1301, 1.0
    %v1303 = vrcp.pop %v1302
    %v1304 = vmul.f32 1.0, %v1303
    %v1305 = vtanh.pop %v1289
    %v1306 = vxor.u32 %v1291, 2147483648
    %v1307 = vmul.f32 %v1306, 1.442695
    %v1308 = vpow.pop %v1307
    %v1309 = vadd.f32 %v1308, 1.0
    %v1310 = vrcp.pop %v1309
    %v1311 = vmul.f32 1.0, %v1310
    %v1312 = vmul.f32 %v1304, 0.0
    %v1313 = vmul.f32 %v1298, %v1305
    %v1314 = vadd.f32 %v1312, %v1313
    %v1315 = vtanh.pop %v1314
    %v1316 = vmul.f32 %v1311, %v1315
    %1317 = vmatprep.subr.mxu0 %v382
    %1318 = vmatpush1.msra.mxu0 %v381
    %1319 = vmatprep.subr.mxu0 %v378
    %1320 = vmatpush1.msra.mxu0 %v377
    %1321 = vmatprep.subr.mxu0 %v374
    %1322 = vmatpush1.msra.mxu0 %v373
    %1323 = vmatprep.subr.mxu0 %v370
    %1324 = vmatpush1.msra.mxu0 %v369
    %1325 = vmatprep.subr.mxu0 %v366
    %1326 = vmatpush1.msra.mxu0 %v365
    %1327 = vmatprep.subr.mxu0 %v362
    %1328 = vmatpush1.msra.mxu0 %v361
    %1329 = vmatprep.subr.mxu0 %v358
    %1330 = vmatpush1.msra.mxu0 %v357
    %1331 = vmatprep.subr.mxu0 %v354
    %1332 = vmatpush1.msra.mxu0 %v353
    %1333 = vmatprep.subr.mxu0 %v350
    %1334 = vmatpush1.msra.mxu0 %v349
    %1335 = vmatprep.subr.mxu0 %v346
    %1336 = vmatpush1.msra.mxu0 %v345
    %1337 = vmatprep.subr.mxu0 %v342
    %1338 = vmatpush1.msra.mxu0 %v341
    %1339 = vmatprep.subr.mxu0 %v338
    %1340 = vmatpush1.msra.mxu0 %v337
    %1341 = vmatprep.subr.mxu0 %v334
    %1342 = vmatpush1.msra.mxu0 %v333
    %1343 = vmatprep.subr.mxu0 %v330
    %1344 = vmatpush1.msra.mxu0 %v329
    %1345 = vmatprep.subr.mxu0 %v326
    %1346 = vmatpush1.msra.mxu0 %v325
    %1347 = vmatprep.subr.mxu0 %v322
    %1348 = vmatpush1.msra.mxu0 %v321
    %1349 = vmatprep.subr.mxu0 %v446
    %1350 = vmatpush2.msra.mxu0 %v445
    %1351 = vmatprep.subr.mxu0 %v442
    %1352 = vmatpush2.msra.mxu0 %v441
    %1353 = vmatprep.subr.mxu0 %v438
    %1354 = vmatpush2.msra.mxu0 %v437
    %1355 = vmatprep.subr.mxu0 %v434
    %1356 = vmatpush2.msra.mxu0 %v433
    %1357 = vmatprep.subr.mxu0 %v430
    %1358 = vmatpush2.msra.mxu0 %v429
    %1359 = vmatprep.subr.mxu0 %v426
    %1360 = vmatpush2.msra.mxu0 %v425
    %1361 = vmatprep.subr.mxu0 %v422
    %1362 = vmatpush2.msra.mxu0 %v421
    %1363 = vmatprep.subr.mxu0 %v418
    %1364 = vmatpush2.msra.mxu0 %v417
    %1365 = vmatprep.subr.mxu0 %v414
    %1366 = vmatpush2.msra.mxu0 %v413
    %1367 = vmatprep.subr.mxu0 %v410
    %1368 = vmatpush2.msra.mxu0 %v409
    %1369 = vmatprep.subr.mxu0 %v406
    %1370 = vmatpush2.msra.mxu0 %v405
    %1371 = vmatprep.subr.mxu0 %v402
    %1372 = vmatpush2.msra.mxu0 %v401
    %1373 = vmatprep.subr.mxu0 %v398
    %1374 = vmatpush2.msra.mxu0 %v397
    %1375 = vmatprep.subr.mxu0 %v394
    %1376 = vmatpush2.msra.mxu0 %v393
    %1377 = vmatprep.subr.mxu0 %v390
    %1378 = vmatpush2.msra.mxu0 %v389
    %1379 = vmatprep.subr.mxu0 %v386
    %1380 = vmatpush2.msra.mxu0 %v385
    %1381 = vmatprep.mubr.f32.mxu0 %v1079
    %1382 = vmatmul.mubr.f32.gmra.mxu0 %v1316
    %v1383 = vpop.f32.mrf.mxu0
    %v1384 = vadd.f32 %v477, %v1383
    %v1385 = vpop.f32.mrf.mxu0
    %v1386 = vadd.f32 %v481, %v1385
    %1387 = vdwg.mxu0
    %1388 = vmatprep.subr.mxu0 %v384
    %1389 = vmatpush1.msra.mxu0 %v383
    %1390 = vmatprep.subr.mxu0 %v380
    %1391 = vmatpush1.msra.mxu0 %v379
    %1392 = vmatprep.subr.mxu0 %v376
    %1393 = vmatpush1.msra.mxu0 %v375
    %1394 = vmatprep.subr.mxu0 %v372
    %1395 = vmatpush1.msra.mxu0 %v371
    %1396 = vmatprep.subr.mxu0 %v368
    %1397 = vmatpush1.msra.mxu0 %v367
    %1398 = vmatprep.subr.mxu0 %v364
    %1399 = vmatpush1.msra.mxu0 %v363
    %1400 = vmatprep.subr.mxu0 %v360
    %1401 = vmatpush1.msra.mxu0 %v359
    %1402 = vmatprep.subr.mxu0 %v356
    %1403 = vmatpush1.msra.mxu0 %v355
    %1404 = vmatprep.subr.mxu0 %v352
    %1405 = vmatpush1.msra.mxu0 %v351
    %1406 = vmatprep.subr.mxu0 %v348
    %1407 = vmatpush1.msra.mxu0 %v347
    %1408 = vmatprep.subr.mxu0 %v344
    %1409 = vmatpush1.msra.mxu0 %v343
    %1410 = vmatprep.subr.mxu0 %v340
    %1411 = vmatpush1.msra.mxu0 %v339
    %1412 = vmatprep.subr.mxu0 %v336
    %1413 = vmatpush1.msra.mxu0 %v335
    %1414 = vmatprep.subr.mxu0 %v332
    %1415 = vmatpush1.msra.mxu0 %v331
    %1416 = vmatprep.subr.mxu0 %v328
    %1417 = vmatpush1.msra.mxu0 %v327
    %1418 = vmatprep.subr.mxu0 %v324
    %1419 = vmatpush1.msra.mxu0 %v323
    %1420 = vmatprep.subr.mxu0 %v448
    %1421 = vmatpush2.msra.mxu0 %v447
    %1422 = vmatprep.subr.mxu0 %v444
    %1423 = vmatpush2.msra.mxu0 %v443
    %1424 = vmatprep.subr.mxu0 %v440
    %1425 = vmatpush2.msra.mxu0 %v439
    %1426 = vmatprep.subr.mxu0 %v436
    %1427 = vmatpush2.msra.mxu0 %v435
    %1428 = vmatprep.subr.mxu0 %v432
    %1429 = vmatpush2.msra.mxu0 %v431
    %1430 = vmatprep.subr.mxu0 %v428
    %1431 = vmatpush2.msra.mxu0 %v427
    %1432 = vmatprep.subr.mxu0 %v424
    %1433 = vmatpush2.msra.mxu0 %v423
    %1434 = vmatprep.subr.mxu0 %v420
    %1435 = vmatpush2.msra.mxu0 %v419
    %1436 = vmatprep.subr.mxu0 %v416
    %1437 = vmatpush2.msra.mxu0 %v415
    %1438 = vmatprep.subr.mxu0 %v412
    %1439 = vmatpush2.msra.mxu0 %v411
    %1440 = vmatprep.subr.mxu0 %v408
    %1441 = vmatpush2.msra.mxu0 %v407
    %1442 = vmatprep.subr.mxu0 %v404
    %1443 = vmatpush2.msra.mxu0 %v403
    %1444 = vmatprep.subr.mxu0 %v400
    %1445 = vmatpush2.msra.mxu0 %v399
    %1446 = vmatprep.subr.mxu0 %v396
    %1447 = vmatpush2.msra.mxu0 %v395
    %1448 = vmatprep.subr.mxu0 %v392
    %1449 = vmatpush2.msra.mxu0 %v391
    %1450 = vmatprep.subr.mxu0 %v388
    %1451 = vmatpush2.msra.mxu0 %v387
    %1452 = vmatprep.mubr.f32.mxu0 %v1079
    %1453 = vmatmul.mubr.f32.gmra.mxu0 %v1316
    %v1454 = vpop.f32.mrf.mxu0
    %v1455 = vadd.f32 %v485, %v1454
    %v1456 = vpop.f32.mrf.mxu0
    %v1457 = vadd.f32 %v489, %v1456
    %1458 = vdwg.mxu0
    %v1459 = vxor.u32 %v1384, 2147483648
    %v1460 = vmul.f32 %v1459, 1.442695
    %v1461 = vpow.pop %v1460
    %v1462 = vadd.f32 %v1461, 1.0
    %v1463 = vrcp.pop %v1462
    %v1464 = vmul.f32 1.0, %v1463
    %v1465 = vxor.u32 %v1386, 2147483648
    %v1466 = vmul.f32 %v1465, 1.442695
    %v1467 = vpow.pop %v1466
    %v1468 = vadd.f32 %v1467, 1.0
    %v1469 = vrcp.pop %v1468
    %v1470 = vmul.f32 1.0, %v1469
    %v1471 = vtanh.pop %v1455
    %v1472 = vxor.u32 %v1457, 2147483648
    %v1473 = vmul.f32 %v1472, 1.442695
    %v1474 = vpow.pop %v1473
    %v1475 = vadd.f32 %v1474, 1.0
    %v1476 = vrcp.pop %v1475
    %v1477 = vmul.f32 1.0, %v1476
    %v1478 = vmul.f32 %v1470, 0.0
    %v1479 = vmul.f32 %v1464, %v1471
    %v1480 = vadd.f32 %v1478, %v1479
    %v1481 = vtanh.pop %v1480
    %v1482 = vmul.f32 %v1477, %v1481
    %1483 = vmatprep.subr.mxu0 0.0
    %1484 = vmatpush1.msra.mxu0 %v113
    %1485 = vmatprep.subr.mxu0 0.0
    %1486 = vmatpush1.msra.mxu0 %v112
    %1487 = vmatprep.subr.mxu0 0.0
    %1488 = vmatpush1.msra.mxu0 %v111
    %1489 = vmatprep.subr.mxu0 0.0
    %1490 = vmatpush1.msra.mxu0 %v110
    %1491 = vmatprep.subr.mxu0 0.0
    %1492 = vmatpush1.msra.mxu0 %v109
    %1493 = vmatprep.subr.mxu0 0.0
    %1494 = vmatpush1.msra.mxu0 %v108
    %1495 = vmatprep.subr.mxu0 0.0
    %1496 = vmatpush1.msra.mxu0 %v107
    %1497 = vmatprep.subr.mxu0 0.0
    %1498 = vmatpush1.msra.mxu0 %v106
    %1499 = vmatprep.subr.mxu0 0.0
    %1500 = vmatpush1.msra.mxu0 %v105
    %1501 = vmatprep.subr.mxu0 0.0
    %1502 = vmatpush1.msra.mxu0 %v104
    %1503 = vmatprep.subr.mxu0 0.0
    %1504 = vmatpush1.msra.mxu0 %v103
    %1505 = vmatprep.subr.mxu0 0.0
    %1506 = vmatpush1.msra.mxu0 %v102
    %1507 = vmatprep.subr.mxu0 0.0
    %1508 = vmatpush1.msra.mxu0 %v101
    %1509 = vmatprep.subr.mxu0 0.0
    %1510 = vmatpush1.msra.mxu0 %v100
    %1511 = vmatprep.subr.mxu0 0.0
    %1512 = vmatpush1.msra.mxu0 %v99
    %1513 = vmatprep.subr.mxu0 0.0
    %1514 = vmatpush1.msra.mxu0 %v98
    %1515 = vmatprep.subr.mxu0 0.0
    %1516 = vmatpush2.msra.mxu0 0.0
    %1517 = vmatprep.subr.mxu0 0.0
    %1518 = vmatpush2.msra.mxu0 0.0
    %1519 = vmatprep.subr.mxu0 0.0
    %1520 = vmatpush2.msra.mxu0 0.0
    %1521 = vmatprep.subr.mxu0 0.0
    %1522 = vmatpush2.msra.mxu0 0.0
    %1523 = vmatprep.subr.mxu0 0.0
    %1524 = vmatpush2.msra.mxu0 0.0
    %1525 = vmatprep.subr.mxu0 0.0
    %1526 = vmatpush2.msra.mxu0 0.0
    %1527 = vmatprep.subr.mxu0 0.0
    %1528 = vmatpush2.msra.mxu0 0.0
    %1529 = vmatprep.subr.mxu0 0.0
    %1530 = vmatpush2.msra.mxu0 0.0
    %1531 = vmatprep.subr.mxu0 0.0
    %1532 = vmatpush2.msra.mxu0 0.0
    %1533 = vmatprep.subr.mxu0 0.0
    %1534 = vmatpush2.msra.mxu0 0.0
    %1535 = vmatprep.subr.mxu0 0.0
    %1536 = vmatpush2.msra.mxu0 0.0
    %1537 = vmatprep.subr.mxu0 0.0
    %1538 = vmatpush2.msra.mxu0 0.0
    %1539 = vmatprep.subr.mxu0 0.0
    %1540 = vmatpush2.msra.mxu0 0.0
    %1541 = vmatprep.subr.mxu0 0.0
    %1542 = vmatpush2.msra.mxu0 0.0
    %1543 = vmatprep.subr.mxu0 0.0
    %1544 = vmatpush2.msra.mxu0 0.0
    %1545 = vmatprep.subr.mxu0 0.0
    %1546 = vmatpush2.msra.mxu0 0.0
    %1547 = vmatprep.mubr.f32.mxu0 0.0
    %1548 = vmatmul.mubr.f32.gmra.mxu0 %v1482
    %v1549 = vpop.f32.mrf.mxu0
    %v1550 = vadd.f32 %v183, %v1549
    %v1551 = vpop.f32.mrf.mxu0
    %1552 = vdwg.mxu0
    %v1553 = vtanh.pop %v1550
    %v1556 = vunpack.c.l.s4 1966171168
    %v1557 = vunpack.c.0.s8 %v1556
    %v1558 = vlaneseq
    %v1559 = vshrl.u32 %v1558, 7
    %v1560 = vsub.s32 %v1557, %v1559
    %v1561 = vrot.slane %v1553, %v1560
    %v1562 = vcombine.high %v1561, %v1561
    %v1564 = vunpack.c.l.s4 1966171168
    %v1565 = vunpack.c.0.s8 %v1564
    %v1566 = vlaneseq
    %v1567 = vshrl.u32 %v1566, 7
    %v1568 = vsub.s32 %v1565, %v1567
    %v1569 = vrot.slane %v1561, %v1568
    %v1571 = vunpack.c.l.s4 1966171168
    %v1572 = vunpack.c.0.s8 %v1571
    %v1573 = vlaneseq
    %v1574 = vshrl.u32 %v1573, 7
    %v1575 = vsub.s32 %v1572, %v1574
    %v1576 = vrot.slane %v1562, %v1575
    %1579 = vmatprep.subr.mxu0 0.0
    %1580 = vmatpush1.xpose.msra.mxu0 0.0
    %1581 = vmatprep.subr.mxu0 0.0
    %1582 = vmatpush1.xpose.msra.mxu0 0.0
    %1583 = vmatprep.subr.mxu0 0.0
    %1584 = vmatpush1.xpose.msra.mxu0 0.0
    %1585 = vmatprep.subr.mxu0 0.0
    %1586 = vmatpush1.xpose.msra.mxu0 0.0
    %1587 = vmatprep.subr.mxu0 0.0
    %1588 = vmatpush1.xpose.msra.mxu0 0.0
    %1589 = vmatprep.subr.mxu0 0.0
    %1590 = vmatpush1.xpose.msra.mxu0 0.0
    %1591 = vmatprep.subr.mxu0 0.0
    %1592 = vmatpush1.xpose.msra.mxu0 0.0
    %1593 = vmatprep.subr.mxu0 0.0
    %1594 = vmatpush1.xpose.msra.mxu0 0.0
    %1595 = vmatprep.subr.mxu0 0.0
    %1596 = vmatpush1.xpose.msra.mxu0 0.0
    %1597 = vmatprep.subr.mxu0 0.0
    %1598 = vmatpush1.xpose.msra.mxu0 0.0
    %1599 = vmatprep.subr.mxu0 0.0
    %1600 = vmatpush1.xpose.msra.mxu0 0.0
    %1601 = vmatprep.subr.mxu0 0.0
    %1602 = vmatpush1.xpose.msra.mxu0 0.0
    %1603 = vmatprep.subr.mxu0 0.0
    %1604 = vmatpush1.xpose.msra.mxu0 0.0
    %1605 = vmatprep.subr.mxu0 0.0
    %1606 = vmatpush1.xpose.msra.mxu0 0.0
    %1607 = vmatprep.subr.mxu0 0.0
    %1608 = vmatpush1.xpose.msra.mxu0 0.0
    %1609 = vmatprep.subr.mxu0 0.0
    %1610 = vmatpush1.xpose.msra.mxu0 %v586
    %1611 = vmatprep.subr.mxu0 0.0
    %1612 = vmatpush2.xpose.msra.mxu0 0.0
    %1613 = vmatprep.subr.mxu0 0.0
    %1614 = vmatpush2.xpose.msra.mxu0 0.0
    %1615 = vmatprep.subr.mxu0 0.0
    %1616 = vmatpush2.xpose.msra.mxu0 0.0
    %1617 = vmatprep.subr.mxu0 0.0
    %1618 = vmatpush2.xpose.msra.mxu0 0.0
    %1619 = vmatprep.subr.mxu0 0.0
    %1620 = vmatpush2.xpose.msra.mxu0 0.0
    %1621 = vmatprep.subr.mxu0 0.0
    %1622 = vmatpush2.xpose.msra.mxu0 0.0
    %1623 = vmatprep.subr.mxu0 0.0
    %1624 = vmatpush2.xpose.msra.mxu0 0.0
    %1625 = vmatprep.subr.mxu0 0.0
    %1626 = vmatpush2.xpose.msra.mxu0 0.0
    %1627 = vmatprep.subr.mxu0 0.0
    %1628 = vmatpush2.xpose.msra.mxu0 0.0
    %1629 = vmatprep.subr.mxu0 0.0
    %1630 = vmatpush2.xpose.msra.mxu0 0.0
    %1631 = vmatprep.subr.mxu0 0.0
    %1632 = vmatpush2.xpose.msra.mxu0 0.0
    %1633 = vmatprep.subr.mxu0 0.0
    %1634 = vmatpush2.xpose.msra.mxu0 0.0
    %1635 = vmatprep.subr.mxu0 0.0
    %1636 = vmatpush2.xpose.msra.mxu0 0.0
    %1637 = vmatprep.subr.mxu0 0.0
    %1638 = vmatpush2.xpose.msra.mxu0 0.0
    %1639 = vmatprep.subr.mxu0 0.0
    %1640 = vmatpush2.xpose.msra.mxu0 0.0
    %1641 = vmatprep.subr.mxu0 0.0
    %1642 = vmatpush2.xpose.msra.mxu0 0.0
    %1643 = vmatprep.mubr.f32.mxu0 0.0
    %1644 = vmatmul.mubr.f32.gmra.mxu0 %v1569
    %v1645 = vpop.f32.mrf.mxu0
    %v1646 = vadd.f32 0.0, %v1645
    %v1647 = vpop.f32.mrf.mxu0
    %1648 = vdwg.mxu0
    %1649 = vmatprep.subr.mxu0 0.0
    %1650 = vmatpush1.xpose.msra.mxu0 0.0
    %1651 = vmatprep.subr.mxu0 0.0
    %1652 = vmatpush1.xpose.msra.mxu0 0.0
    %1653 = vmatprep.subr.mxu0 0.0
    %1654 = vmatpush1.xpose.msra.mxu0 0.0
    %1655 = vmatprep.subr.mxu0 0.0
    %1656 = vmatpush1.xpose.msra.mxu0 0.0
    %1657 = vmatprep.subr.mxu0 0.0
    %1658 = vmatpush1.xpose.msra.mxu0 0.0
    %1659 = vmatprep.subr.mxu0 0.0
    %1660 = vmatpush1.xpose.msra.mxu0 0.0
    %1661 = vmatprep.subr.mxu0 0.0
    %1662 = vmatpush1.xpose.msra.mxu0 0.0
    %1663 = vmatprep.subr.mxu0 0.0
    %1664 = vmatpush1.xpose.msra.mxu0 0.0
    %1665 = vmatprep.subr.mxu0 0.0
    %1666 = vmatpush1.xpose.msra.mxu0 0.0
    %1667 = vmatprep.subr.mxu0 0.0
    %1668 = vmatpush1.xpose.msra.mxu0 0.0
    %1669 = vmatprep.subr.mxu0 0.0
    %1670 = vmatpush1.xpose.msra.mxu0 0.0
    %1671 = vmatprep.subr.mxu0 0.0
    %1672 = vmatpush1.xpose.msra.mxu0 0.0
    %1673 = vmatprep.subr.mxu0 0.0
    %1674 = vmatpush1.xpose.msra.mxu0 0.0
    %1675 = vmatprep.subr.mxu0 0.0
    %1676 = vmatpush1.xpose.msra.mxu0 0.0
    %1677 = vmatprep.subr.mxu0 0.0
    %1678 = vmatpush1.xpose.msra.mxu0 0.0
    %1679 = vmatprep.subr.mxu0 0.0
    %1680 = vmatpush1.xpose.msra.mxu0 %v588
    %1681 = vmatprep.subr.mxu0 0.0
    %1682 = vmatpush2.xpose.msra.mxu0 0.0
    %1683 = vmatprep.subr.mxu0 0.0
    %1684 = vmatpush2.xpose.msra.mxu0 0.0
    %1685 = vmatprep.subr.mxu0 0.0
    %1686 = vmatpush2.xpose.msra.mxu0 0.0
    %1687 = vmatprep.subr.mxu0 0.0
    %1688 = vmatpush2.xpose.msra.mxu0 0.0
    %1689 = vmatprep.subr.mxu0 0.0
    %1690 = vmatpush2.xpose.msra.mxu0 0.0
    %1691 = vmatprep.subr.mxu0 0.0
    %1692 = vmatpush2.xpose.msra.mxu0 0.0
    %1693 = vmatprep.subr.mxu0 0.0
    %1694 = vmatpush2.xpose.msra.mxu0 0.0
    %1695 = vmatprep.subr.mxu0 0.0
    %1696 = vmatpush2.xpose.msra.mxu0 0.0
    %1697 = vmatprep.subr.mxu0 0.0
    %1698 = vmatpush2.xpose.msra.mxu0 0.0
    %1699 = vmatprep.subr.mxu0 0.0
    %1700 = vmatpush2.xpose.msra.mxu0 0.0
    %1701 = vmatprep.subr.mxu0 0.0
    %1702 = vmatpush2.xpose.msra.mxu0 0.0
    %1703 = vmatprep.subr.mxu0 0.0
    %1704 = vmatpush2.xpose.msra.mxu0 0.0
    %1705 = vmatprep.subr.mxu0 0.0
    %1706 = vmatpush2.xpose.msra.mxu0 0.0
    %1707 = vmatprep.subr.mxu0 0.0
    %1708 = vmatpush2.xpose.msra.mxu0 0.0
    %1709 = vmatprep.subr.mxu0 0.0
    %1710 = vmatpush2.xpose.msra.mxu0 0.0
    %1711 = vmatprep.subr.mxu0 0.0
    %1712 = vmatpush2.xpose.msra.mxu0 0.0
    %1713 = vmatprep.mubr.f32.mxu0 0.0
    %1714 = vmatmul.mubr.f32.gmra.mxu0 %v1576
    %v1715 = vpop.f32.mrf.mxu0
    %v1716 = vadd.f32 0.0, %v1715
    %v1717 = vpop.f32.mrf.mxu0
    %1718 = vdwg.mxu0
    %v1719 = vsel %vm903, %v1646, -inf
    %1720 = vmax.xlane.f32.xlu0 %v1719
    %v1721 = vpop.xlane.xlu0 %1720
    %v1722 = vsel %vm903, %v1716, -inf
    %1723 = vmax.xlane.f32.xlu0 %v1722
    %v1724 = vpop.xlane.xlu0 %1723
    %v1725 = vsub.f32 %v1646, %v1721
    %v1726 = vsub.f32 %v1716, %v1724
    %v1727 = vmul.f32 %v1725, 1.442695
    %v1728 = vpow.pop %v1727
    %v1729 = vmul.f32 %v1726, 1.442695
    %v1730 = vpow.pop %v1729
    %v1731 = vsel %vm903, %v1728, 0.0
    %1732 = vadd.xlane.f32.xlu0 %v1731
    %v1733 = vpop.xlane.xlu0 %1732
    %v1734 = vsel %vm903, %v1730, 0.0
    %1735 = vadd.xlane.f32.xlu0 %v1734
    %v1736 = vpop.xlane.xlu0 %1735
    %v1737 = vrcp.pop %v1733
    %v1738 = vmul.f32 %v1728, %v1737
    %v1739 = vrcp.pop %v1736
    %v1740 = vmul.f32 %v1730, %v1739
    %v1741 = vadd.f32 %v1738, %v84
    %v1742 = vadd.f32 %v1740, %v91
    %v1744 = vsel %vm928, %v1741, 0
    %1746 = vmatprep.subr.mxu0 0.0
    %1747 = vmatpush1.msra.mxu0 0.0
    %1748 = vmatprep.subr.mxu0 0.0
    %1749 = vmatpush1.msra.mxu0 0.0
    %1750 = vmatprep.subr.mxu0 0.0
    %1751 = vmatpush1.msra.mxu0 0.0
    %1752 = vmatprep.subr.mxu0 0.0
    %1753 = vmatpush1.msra.mxu0 0.0
    %1754 = vmatprep.subr.mxu0 0.0
    %1755 = vmatpush1.msra.mxu0 0.0
    %1756 = vmatprep.subr.mxu0 0.0
    %1757 = vmatpush1.msra.mxu0 0.0
    %1758 = vmatprep.subr.mxu0 0.0
    %1759 = vmatpush1.msra.mxu0 0.0
    %1760 = vmatprep.subr.mxu0 0.0
    %1761 = vmatpush1.msra.mxu0 0.0
    %1762 = vmatprep.subr.mxu0 0.0
    %1763 = vmatpush1.msra.mxu0 0.0
    %1764 = vmatprep.subr.mxu0 0.0
    %1765 = vmatpush1.msra.mxu0 0.0
    %1766 = vmatprep.subr.mxu0 0.0
    %1767 = vmatpush1.msra.mxu0 0.0
    %1768 = vmatprep.subr.mxu0 0.0
    %1769 = vmatpush1.msra.mxu0 0.0
    %1770 = vmatprep.subr.mxu0 0.0
    %1771 = vmatpush1.msra.mxu0 0.0
    %1772 = vmatprep.subr.mxu0 0.0
    %1773 = vmatpush1.msra.mxu0 0.0
    %1774 = vmatprep.subr.mxu0 0.0
    %1775 = vmatpush1.msra.mxu0 0.0
    %1776 = vmatprep.subr.mxu0 0.0
    %1777 = vmatpush1.msra.mxu0 %v587
    %1778 = vmatprep.subr.mxu0 0.0
    %1779 = vmatpush2.msra.mxu0 0.0
    %1780 = vmatprep.subr.mxu0 0.0
    %1781 = vmatpush2.msra.mxu0 0.0
    %1782 = vmatprep.subr.mxu0 0.0
    %1783 = vmatpush2.msra.mxu0 0.0
    %1784 = vmatprep.subr.mxu0 0.0
    %1785 = vmatpush2.msra.mxu0 0.0
    %1786 = vmatprep.subr.mxu0 0.0
    %1787 = vmatpush2.msra.mxu0 0.0
    %1788 = vmatprep.subr.mxu0 0.0
    %1789 = vmatpush2.msra.mxu0 0.0
    %1790 = vmatprep.subr.mxu0 0.0
    %1791 = vmatpush2.msra.mxu0 0.0
    %1792 = vmatprep.subr.mxu0 0.0
    %1793 = vmatpush2.msra.mxu0 0.0
    %1794 = vmatprep.subr.mxu0 0.0
    %1795 = vmatpush2.msra.mxu0 0.0
    %1796 = vmatprep.subr.mxu0 0.0
    %1797 = vmatpush2.msra.mxu0 0.0
    %1798 = vmatprep.subr.mxu0 0.0
    %1799 = vmatpush2.msra.mxu0 0.0
    %1800 = vmatprep.subr.mxu0 0.0
    %1801 = vmatpush2.msra.mxu0 0.0
    %1802 = vmatprep.subr.mxu0 0.0
    %1803 = vmatpush2.msra.mxu0 0.0
    %1804 = vmatprep.subr.mxu0 0.0
    %1805 = vmatpush2.msra.mxu0 0.0
    %1806 = vmatprep.subr.mxu0 0.0
    %1807 = vmatpush2.msra.mxu0 0.0
    %1808 = vmatprep.subr.mxu0 0.0
    %1809 = vmatpush2.msra.mxu0 0.0
    %1810 = vmatprep.mubr.f32.mxu0 0.0
    %1811 = vmatmul.mubr.f32.gmra.mxu0 %v1744
    %v1812 = vpop.f32.mrf.mxu0
    %v1813 = vadd.f32 0.0, %v1812
    %v1814 = vpop.f32.mrf.mxu0
    %1815 = vdwg.mxu0
    %v1817 = vsel %vm928, %v1742, 0
    %1819 = vmatprep.subr.mxu0 0.0
    %1820 = vmatpush1.msra.mxu0 0.0
    %1821 = vmatprep.subr.mxu0 0.0
    %1822 = vmatpush1.msra.mxu0 0.0
    %1823 = vmatprep.subr.mxu0 0.0
    %1824 = vmatpush1.msra.mxu0 0.0
    %1825 = vmatprep.subr.mxu0 0.0
    %1826 = vmatpush1.msra.mxu0 0.0
    %1827 = vmatprep.subr.mxu0 0.0
    %1828 = vmatpush1.msra.mxu0 0.0
    %1829 = vmatprep.subr.mxu0 0.0
    %1830 = vmatpush1.msra.mxu0 0.0
    %1831 = vmatprep.subr.mxu0 0.0
    %1832 = vmatpush1.msra.mxu0 0.0
    %1833 = vmatprep.subr.mxu0 0.0
    %1834 = vmatpush1.msra.mxu0 0.0
    %1835 = vmatprep.subr.mxu0 0.0
    %1836 = vmatpush1.msra.mxu0 0.0
    %1837 = vmatprep.subr.mxu0 0.0
    %1838 = vmatpush1.msra.mxu0 0.0
    %1839 = vmatprep.subr.mxu0 0.0
    %1840 = vmatpush1.msra.mxu0 0.0
    %1841 = vmatprep.subr.mxu0 0.0
    %1842 = vmatpush1.msra.mxu0 0.0
    %1843 = vmatprep.subr.mxu0 0.0
    %1844 = vmatpush1.msra.mxu0 0.0
    %1845 = vmatprep.subr.mxu0 0.0
    %1846 = vmatpush1.msra.mxu0 0.0
    %1847 = vmatprep.subr.mxu0 0.0
    %1848 = vmatpush1.msra.mxu0 0.0
    %1849 = vmatprep.subr.mxu0 0.0
    %1850 = vmatpush1.msra.mxu0 %v589
    %1851 = vmatprep.subr.mxu0 0.0
    %1852 = vmatpush2.msra.mxu0 0.0
    %1853 = vmatprep.subr.mxu0 0.0
    %1854 = vmatpush2.msra.mxu0 0.0
    %1855 = vmatprep.subr.mxu0 0.0
    %1856 = vmatpush2.msra.mxu0 0.0
    %1857 = vmatprep.subr.mxu0 0.0
    %1858 = vmatpush2.msra.mxu0 0.0
    %1859 = vmatprep.subr.mxu0 0.0
    %1860 = vmatpush2.msra.mxu0 0.0
    %1861 = vmatprep.subr.mxu0 0.0
    %1862 = vmatpush2.msra.mxu0 0.0
    %1863 = vmatprep.subr.mxu0 0.0
    %1864 = vmatpush2.msra.mxu0 0.0
    %1865 = vmatprep.subr.mxu0 0.0
    %1866 = vmatpush2.msra.mxu0 0.0
    %1867 = vmatprep.subr.mxu0 0.0
    %1868 = vmatpush2.msra.mxu0 0.0
    %1869 = vmatprep.subr.mxu0 0.0
    %1870 = vmatpush2.msra.mxu0 0.0
    %1871 = vmatprep.subr.mxu0 0.0
    %1872 = vmatpush2.msra.mxu0 0.0
    %1873 = vmatprep.subr.mxu0 0.0
    %1874 = vmatpush2.msra.mxu0 0.0
    %1875 = vmatprep.subr.mxu0 0.0
    %1876 = vmatpush2.msra.mxu0 0.0
    %1877 = vmatprep.subr.mxu0 0.0
    %1878 = vmatpush2.msra.mxu0 0.0
    %1879 = vmatprep.subr.mxu0 0.0
    %1880 = vmatpush2.msra.mxu0 0.0
    %1881 = vmatprep.subr.mxu0 0.0
    %1882 = vmatpush2.msra.mxu0 0.0
    %1883 = vmatprep.mubr.f32.mxu0 0.0
    %1884 = vmatmul.mubr.f32.gmra.mxu0 %v1817
    %v1885 = vpop.f32.mrf.mxu0
    %v1886 = vadd.f32 0.0, %v1885
    %v1887 = vpop.f32.mrf.mxu0
    %1888 = vdwg.mxu0
    %v1891 = vrot.slane %v1886, 7
    %v1892 = vsel %vm1078, %v1891, %v1813
    %1894 = vmatprep.subr.mxu0 0.0
    %1895 = vmatpush1.msra.mxu0 %v161
    %1896 = vmatprep.subr.mxu0 0.0
    %1897 = vmatpush1.msra.mxu0 %v160
    %1898 = vmatprep.subr.mxu0 0.0
    %1899 = vmatpush1.msra.mxu0 %v159
    %1900 = vmatprep.subr.mxu0 0.0
    %1901 = vmatpush1.msra.mxu0 %v158
    %1902 = vmatprep.subr.mxu0 0.0
    %1903 = vmatpush1.msra.mxu0 %v157
    %1904 = vmatprep.subr.mxu0 0.0
    %1905 = vmatpush1.msra.mxu0 %v156
    %1906 = vmatprep.subr.mxu0 0.0
    %1907 = vmatpush1.msra.mxu0 %v155
    %1908 = vmatprep.subr.mxu0 0.0
    %1909 = vmatpush1.msra.mxu0 %v154
    %1910 = vmatprep.subr.mxu0 0.0
    %1911 = vmatpush1.msra.mxu0 %v153
    %1912 = vmatprep.subr.mxu0 0.0
    %1913 = vmatpush1.msra.mxu0 %v152
    %1914 = vmatprep.subr.mxu0 0.0
    %1915 = vmatpush1.msra.mxu0 %v151
    %1916 = vmatprep.subr.mxu0 0.0
    %1917 = vmatpush1.msra.mxu0 %v150
    %1918 = vmatprep.subr.mxu0 0.0
    %1919 = vmatpush1.msra.mxu0 %v149
    %1920 = vmatprep.subr.mxu0 0.0
    %1921 = vmatpush1.msra.mxu0 %v148
    %1922 = vmatprep.subr.mxu0 0.0
    %1923 = vmatpush1.msra.mxu0 %v147
    %1924 = vmatprep.subr.mxu0 0.0
    %1925 = vmatpush1.msra.mxu0 %v146
    %1926 = vmatprep.subr.mxu0 0.0
    %1927 = vmatpush2.msra.mxu0 %v177
    %1928 = vmatprep.subr.mxu0 0.0
    %1929 = vmatpush2.msra.mxu0 %v176
    %1930 = vmatprep.subr.mxu0 0.0
    %1931 = vmatpush2.msra.mxu0 %v175
    %1932 = vmatprep.subr.mxu0 0.0
    %1933 = vmatpush2.msra.mxu0 %v174
    %1934 = vmatprep.subr.mxu0 0.0
    %1935 = vmatpush2.msra.mxu0 %v173
    %1936 = vmatprep.subr.mxu0 0.0
    %1937 = vmatpush2.msra.mxu0 %v172
    %1938 = vmatprep.subr.mxu0 0.0
    %1939 = vmatpush2.msra.mxu0 %v171
    %1940 = vmatprep.subr.mxu0 0.0
    %1941 = vmatpush2.msra.mxu0 %v170
    %1942 = vmatprep.subr.mxu0 0.0
    %1943 = vmatpush2.msra.mxu0 %v169
    %1944 = vmatprep.subr.mxu0 0.0
    %1945 = vmatpush2.msra.mxu0 %v168
    %1946 = vmatprep.subr.mxu0 0.0
    %1947 = vmatpush2.msra.mxu0 %v167
    %1948 = vmatprep.subr.mxu0 0.0
    %1949 = vmatpush2.msra.mxu0 %v166
    %1950 = vmatprep.subr.mxu0 0.0
    %1951 = vmatpush2.msra.mxu0 %v165
    %1952 = vmatprep.subr.mxu0 0.0
    %1953 = vmatpush2.msra.mxu0 %v164
    %1954 = vmatprep.subr.mxu0 0.0
    %1955 = vmatpush2.msra.mxu0 %v163
    %1956 = vmatprep.subr.mxu0 0.0
    %1957 = vmatpush2.msra.mxu0 %v162
    %1958 = vmatprep.mubr.f32.mxu0 %v1482
    %1959 = vmatmul.mubr.f32.gmra.mxu0 %v1892
    %v1960 = vpop.f32.mrf.mxu0
    %v1961 = vadd.f32 %v190, %v1960
    %v1962 = vpop.f32.mrf.mxu0
    %1963 = vdwg.mxu0
    %vm1964 = vcmask 254976
    %v1965 = vsel %vm1964, %v1961, -inf
    %1966 = vmax.xlane.f32.xlu0 %v1965
    %v1967 = vpop.xlane.xlu0 %1966
    %vm1968 = vcmp.eq.f32.partialorder %v1961, %v1967
    %v1969 = vsel %vm1968, %v496, 32.0
    %v1970 = vsel %vm1964, %v1969, inf
    %1971 = vmin.xlane.f32.xlu0 %v1970
    %v1972 = vpop.xlane.xlu0 %1971
    %vm1973 = vcmp.eq.f32.partialorder %v496, %v1972
    %v1974 = vsel %vm1973, 1, 0
    %v1975 = vcvt.s32.f32 %v1974
    %v1977 = vsel %vm593, %v1975, 0
    %1979 = vmatprep.subr.mxu0 0.0
    %1980 = vmatpush1.msra.mxu0 0.0
    %1981 = vmatprep.subr.mxu0 0.0
    %1982 = vmatpush1.msra.mxu0 0.0
    %1983 = vmatprep.subr.mxu0 0.0
    %1984 = vmatpush1.msra.mxu0 0.0
    %1985 = vmatprep.subr.mxu0 0.0
    %1986 = vmatpush1.msra.mxu0 0.0
    %1987 = vmatprep.subr.mxu0 0.0
    %1988 = vmatpush1.msra.mxu0 0.0
    %1989 = vmatprep.subr.mxu0 0.0
    %1990 = vmatpush1.msra.mxu0 0.0
    %1991 = vmatprep.subr.mxu0 0.0
    %1992 = vmatpush1.msra.mxu0 0.0
    %1993 = vmatprep.subr.mxu0 0.0
    %1994 = vmatpush1.msra.mxu0 0.0
    %1995 = vmatprep.subr.mxu0 0.0
    %1996 = vmatpush1.msra.mxu0 0.0
    %1997 = vmatprep.subr.mxu0 0.0
    %1998 = vmatpush1.msra.mxu0 0.0
    %1999 = vmatprep.subr.mxu0 0.0
    %2000 = vmatpush1.msra.mxu0 0.0
    %2001 = vmatprep.subr.mxu0 0.0
    %2002 = vmatpush1.msra.mxu0 0.0
    %2003 = vmatprep.subr.mxu0 0.0
    %2004 = vmatpush1.msra.mxu0 %v97
    %2005 = vmatprep.subr.mxu0 0.0
    %2006 = vmatpush1.msra.mxu0 %v96
    %2007 = vmatprep.subr.mxu0 0.0
    %2008 = vmatpush1.msra.mxu0 %v95
    %2009 = vmatprep.subr.mxu0 0.0
    %2010 = vmatpush1.msra.mxu0 %v94
    %2011 = vmatprep.subr.mxu0 0.0
    %2012 = vmatpush2.msra.mxu0 0.0
    %2013 = vmatprep.subr.mxu0 0.0
    %2014 = vmatpush2.msra.mxu0 0.0
    %2015 = vmatprep.subr.mxu0 0.0
    %2016 = vmatpush2.msra.mxu0 0.0
    %2017 = vmatprep.subr.mxu0 0.0
    %2018 = vmatpush2.msra.mxu0 0.0
    %2019 = vmatprep.subr.mxu0 0.0
    %2020 = vmatpush2.msra.mxu0 0.0
    %2021 = vmatprep.subr.mxu0 0.0
    %2022 = vmatpush2.msra.mxu0 0.0
    %2023 = vmatprep.subr.mxu0 0.0
    %2024 = vmatpush2.msra.mxu0 0.0
    %2025 = vmatprep.subr.mxu0 0.0
    %2026 = vmatpush2.msra.mxu0 0.0
    %2027 = vmatprep.subr.mxu0 0.0
    %2028 = vmatpush2.msra.mxu0 0.0
    %2029 = vmatprep.subr.mxu0 0.0
    %2030 = vmatpush2.msra.mxu0 0.0
    %2031 = vmatprep.subr.mxu0 0.0
    %2032 = vmatpush2.msra.mxu0 0.0
    %2033 = vmatprep.subr.mxu0 0.0
    %2034 = vmatpush2.msra.mxu0 0.0
    %2035 = vmatprep.subr.mxu0 0.0
    %2036 = vmatpush2.msra.mxu0 0.0
    %2037 = vmatprep.subr.mxu0 0.0
    %2038 = vmatpush2.msra.mxu0 0.0
    %2039 = vmatprep.subr.mxu0 0.0
    %2040 = vmatpush2.msra.mxu0 0.0
    %2041 = vmatprep.subr.mxu0 0.0
    %2042 = vmatpush2.msra.mxu0 0.0
    %2043 = vmatprep.mubr.f32.mxu0 0.0
    %2044 = vmatmul.mubr.f32.gmra.mxu0 %v1977
    %v2045 = vpop.f32.mrf.mxu0
    %v2046 = vadd.f32 0.0, %v2045
    %v2047 = vpop.f32.mrf.mxu0
    %2048 = vdwg.mxu0
    %2049 = vmatprep.subr.mxu0 %v253
    %2050 = vmatpush1.msra.mxu0 %v252
    %2051 = vmatprep.subr.mxu0 %v249
    %2052 = vmatpush1.msra.mxu0 %v248
    %2053 = vmatprep.subr.mxu0 %v245
    %2054 = vmatpush1.msra.mxu0 %v244
    %2055 = vmatprep.subr.mxu0 %v241
    %2056 = vmatpush1.msra.mxu0 %v240
    %2057 = vmatprep.subr.mxu0 %v237
    %2058 = vmatpush1.msra.mxu0 %v236
    %2059 = vmatprep.subr.mxu0 %v233
    %2060 = vmatpush1.msra.mxu0 %v232
    %2061 = vmatprep.subr.mxu0 %v229
    %2062 = vmatpush1.msra.mxu0 %v228
    %2063 = vmatprep.subr.mxu0 %v225
    %2064 = vmatpush1.msra.mxu0 %v224
    %2065 = vmatprep.subr.mxu0 %v221
    %2066 = vmatpush1.msra.mxu0 %v220
    %2067 = vmatprep.subr.mxu0 %v217
    %2068 = vmatpush1.msra.mxu0 %v216
    %2069 = vmatprep.subr.mxu0 %v213
    %2070 = vmatpush1.msra.mxu0 %v212
    %2071 = vmatprep.subr.mxu0 %v209
    %2072 = vmatpush1.msra.mxu0 %v208
    %2073 = vmatprep.subr.mxu0 %v205
    %2074 = vmatpush1.msra.mxu0 %v204
    %2075 = vmatprep.subr.mxu0 %v201
    %2076 = vmatpush1.msra.mxu0 %v200
    %2077 = vmatprep.subr.mxu0 %v197
    %2078 = vmatpush1.msra.mxu0 %v196
    %2079 = vmatprep.subr.mxu0 %v193
    %2080 = vmatpush1.msra.mxu0 %v192
    %2081 = vmatprep.subr.mxu0 %v317
    %2082 = vmatpush2.msra.mxu0 %v316
    %2083 = vmatprep.subr.mxu0 %v313
    %2084 = vmatpush2.msra.mxu0 %v312
    %2085 = vmatprep.subr.mxu0 %v309
    %2086 = vmatpush2.msra.mxu0 %v308
    %2087 = vmatprep.subr.mxu0 %v305
    %2088 = vmatpush2.msra.mxu0 %v304
    %2089 = vmatprep.subr.mxu0 %v301
    %2090 = vmatpush2.msra.mxu0 %v300
    %2091 = vmatprep.subr.mxu0 %v297
    %2092 = vmatpush2.msra.mxu0 %v296
    %2093 = vmatprep.subr.mxu0 %v293
    %2094 = vmatpush2.msra.mxu0 %v292
    %2095 = vmatprep.subr.mxu0 %v289
    %2096 = vmatpush2.msra.mxu0 %v288
    %2097 = vmatprep.subr.mxu0 %v285
    %2098 = vmatpush2.msra.mxu0 %v284
    %2099 = vmatprep.subr.mxu0 %v281
    %2100 = vmatpush2.msra.mxu0 %v280
    %2101 = vmatprep.subr.mxu0 %v277
    %2102 = vmatpush2.msra.mxu0 %v276
    %2103 = vmatprep.subr.mxu0 %v273
    %2104 = vmatpush2.msra.mxu0 %v272
    %2105 = vmatprep.subr.mxu0 %v269
    %2106 = vmatpush2.msra.mxu0 %v268
    %2107 = vmatprep.subr.mxu0 %v265
    %2108 = vmatpush2.msra.mxu0 %v264
    %2109 = vmatprep.subr.mxu0 %v261
    %2110 = vmatpush2.msra.mxu0 %v260
    %2111 = vmatprep.subr.mxu0 %v257
    %2112 = vmatpush2.msra.mxu0 %v256
    %2113 = vmatprep.mubr.f32.mxu0 %v1316
    %2114 = vmatmul.mubr.f32.gmra.mxu0 %v2046
    %v2115 = vpop.f32.mrf.mxu0
    %v2116 = vadd.f32 %v454, %v2115
    %v2117 = vpop.f32.mrf.mxu0
    %v2118 = vadd.f32 %v458, %v2117
    %2119 = vdwg.mxu0
    %2120 = vmatprep.subr.mxu0 %v255
    %2121 = vmatpush1.msra.mxu0 %v254
    %2122 = vmatprep.subr.mxu0 %v251
    %2123 = vmatpush1.msra.mxu0 %v250
    %2124 = vmatprep.subr.mxu0 %v247
    %2125 = vmatpush1.msra.mxu0 %v246
    %2126 = vmatprep.subr.mxu0 %v243
    %2127 = vmatpush1.msra.mxu0 %v242
    %2128 = vmatprep.subr.mxu0 %v239
    %2129 = vmatpush1.msra.mxu0 %v238
    %2130 = vmatprep.subr.mxu0 %v235
    %2131 = vmatpush1.msra.mxu0 %v234
    %2132 = vmatprep.subr.mxu0 %v231
    %2133 = vmatpush1.msra.mxu0 %v230
    %2134 = vmatprep.subr.mxu0 %v227
    %2135 = vmatpush1.msra.mxu0 %v226
    %2136 = vmatprep.subr.mxu0 %v223
    %2137 = vmatpush1.msra.mxu0 %v222
    %2138 = vmatprep.subr.mxu0 %v219
    %2139 = vmatpush1.msra.mxu0 %v218
    %2140 = vmatprep.subr.mxu0 %v215
    %2141 = vmatpush1.msra.mxu0 %v214
    %2142 = vmatprep.subr.mxu0 %v211
    %2143 = vmatpush1.msra.mxu0 %v210
    %2144 = vmatprep.subr.mxu0 %v207
    %2145 = vmatpush1.msra.mxu0 %v206
    %2146 = vmatprep.subr.mxu0 %v203
    %2147 = vmatpush1.msra.mxu0 %v202
    %2148 = vmatprep.subr.mxu0 %v199
    %2149 = vmatpush1.msra.mxu0 %v198
    %2150 = vmatprep.subr.mxu0 %v195
    %2151 = vmatpush1.msra.mxu0 %v194
    %2152 = vmatprep.subr.mxu0 %v319
    %2153 = vmatpush2.msra.mxu0 %v318
    %2154 = vmatprep.subr.mxu0 %v315
    %2155 = vmatpush2.msra.mxu0 %v314
    %2156 = vmatprep.subr.mxu0 %v311
    %2157 = vmatpush2.msra.mxu0 %v310
    %2158 = vmatprep.subr.mxu0 %v307
    %2159 = vmatpush2.msra.mxu0 %v306
    %2160 = vmatprep.subr.mxu0 %v303
    %2161 = vmatpush2.msra.mxu0 %v302
    %2162 = vmatprep.subr.mxu0 %v299
    %2163 = vmatpush2.msra.mxu0 %v298
    %2164 = vmatprep.subr.mxu0 %v295
    %2165 = vmatpush2.msra.mxu0 %v294
    %2166 = vmatprep.subr.mxu0 %v291
    %2167 = vmatpush2.msra.mxu0 %v290
    %2168 = vmatprep.subr.mxu0 %v287
    %2169 = vmatpush2.msra.mxu0 %v286
    %2170 = vmatprep.subr.mxu0 %v283
    %2171 = vmatpush2.msra.mxu0 %v282
    %2172 = vmatprep.subr.mxu0 %v279
    %2173 = vmatpush2.msra.mxu0 %v278
    %2174 = vmatprep.subr.mxu0 %v275
    %2175 = vmatpush2.msra.mxu0 %v274
    %2176 = vmatprep.subr.mxu0 %v271
    %2177 = vmatpush2.msra.mxu0 %v270
    %2178 = vmatprep.subr.mxu0 %v267
    %2179 = vmatpush2.msra.mxu0 %v266
    %2180 = vmatprep.subr.mxu0 %v263
    %2181 = vmatpush2.msra.mxu0 %v262
    %2182 = vmatprep.subr.mxu0 %v259
    %2183 = vmatpush2.msra.mxu0 %v258
    %2184 = vmatprep.mubr.f32.mxu0 %v1316
    %2185 = vmatmul.mubr.f32.gmra.mxu0 %v2046
    %v2186 = vpop.f32.mrf.mxu0
    %v2187 = vadd.f32 %v462, %v2186
    %v2188 = vpop.f32.mrf.mxu0
    %v2189 = vadd.f32 %v466, %v2188
    %2190 = vdwg.mxu0
    %v2191 = vxor.u32 %v2116, 2147483648
    %v2192 = vmul.f32 %v2191, 1.442695
    %v2193 = vpow.pop %v2192
    %v2194 = vadd.f32 %v2193, 1.0
    %v2195 = vrcp.pop %v2194
    %v2196 = vmul.f32 1.0, %v2195
    %v2197 = vxor.u32 %v2118, 2147483648
    %v2198 = vmul.f32 %v2197, 1.442695
    %v2199 = vpow.pop %v2198
    %v2200 = vadd.f32 %v2199, 1.0
    %v2201 = vrcp.pop %v2200
    %v2202 = vmul.f32 1.0, %v2201
    %v2203 = vtanh.pop %v2187
    %v2204 = vxor.u32 %v2189, 2147483648
    %v2205 = vmul.f32 %v2204, 1.442695
    %v2206 = vpow.pop %v2205
    %v2207 = vadd.f32 %v2206, 1.0
    %v2208 = vrcp.pop %v2207
    %v2209 = vmul.f32 1.0, %v2208
    %v2210 = vmul.f32 %v2202, %v1314
    %v2211 = vmul.f32 %v2196, %v2203
    %v2212 = vadd.f32 %v2210, %v2211
    %v2213 = vtanh.pop %v2212
    %v2214 = vmul.f32 %v2209, %v2213
    %2215 = vmatprep.subr.mxu0 %v382
    %2216 = vmatpush1.msra.mxu0 %v381
    %2217 = vmatprep.subr.mxu0 %v378
    %2218 = vmatpush1.msra.mxu0 %v377
    %2219 = vmatprep.subr.mxu0 %v374
    %2220 = vmatpush1.msra.mxu0 %v373
    %2221 = vmatprep.subr.mxu0 %v370
    %2222 = vmatpush1.msra.mxu0 %v369
    %2223 = vmatprep.subr.mxu0 %v366
    %2224 = vmatpush1.msra.mxu0 %v365
    %2225 = vmatprep.subr.mxu0 %v362
    %2226 = vmatpush1.msra.mxu0 %v361
    %2227 = vmatprep.subr.mxu0 %v358
    %2228 = vmatpush1.msra.mxu0 %v357
    %2229 = vmatprep.subr.mxu0 %v354
    %2230 = vmatpush1.msra.mxu0 %v353
    %2231 = vmatprep.subr.mxu0 %v350
    %2232 = vmatpush1.msra.mxu0 %v349
    %2233 = vmatprep.subr.mxu0 %v346
    %2234 = vmatpush1.msra.mxu0 %v345
    %2235 = vmatprep.subr.mxu0 %v342
    %2236 = vmatpush1.msra.mxu0 %v341
    %2237 = vmatprep.subr.mxu0 %v338
    %2238 = vmatpush1.msra.mxu0 %v337
    %2239 = vmatprep.subr.mxu0 %v334
    %2240 = vmatpush1.msra.mxu0 %v333
    %2241 = vmatprep.subr.mxu0 %v330
    %2242 = vmatpush1.msra.mxu0 %v329
    %2243 = vmatprep.subr.mxu0 %v326
    %2244 = vmatpush1.msra.mxu0 %v325
    %2245 = vmatprep.subr.mxu0 %v322
    %2246 = vmatpush1.msra.mxu0 %v321
    %2247 = vmatprep.subr.mxu0 %v446
    %2248 = vmatpush2.msra.mxu0 %v445
    %2249 = vmatprep.subr.mxu0 %v442
    %2250 = vmatpush2.msra.mxu0 %v441
    %2251 = vmatprep.subr.mxu0 %v438
    %2252 = vmatpush2.msra.mxu0 %v437
    %2253 = vmatprep.subr.mxu0 %v434
    %2254 = vmatpush2.msra.mxu0 %v433
    %2255 = vmatprep.subr.mxu0 %v430
    %2256 = vmatpush2.msra.mxu0 %v429
    %2257 = vmatprep.subr.mxu0 %v426
    %2258 = vmatpush2.msra.mxu0 %v425
    %2259 = vmatprep.subr.mxu0 %v422
    %2260 = vmatpush2.msra.mxu0 %v421
    %2261 = vmatprep.subr.mxu0 %v418
    %2262 = vmatpush2.msra.mxu0 %v417
    %2263 = vmatprep.subr.mxu0 %v414
    %2264 = vmatpush2.msra.mxu0 %v413
    %2265 = vmatprep.subr.mxu0 %v410
    %2266 = vmatpush2.msra.mxu0 %v409
    %2267 = vmatprep.subr.mxu0 %v406
    %2268 = vmatpush2.msra.mxu0 %v405
    %2269 = vmatprep.subr.mxu0 %v402
    %2270 = vmatpush2.msra.mxu0 %v401
    %2271 = vmatprep.subr.mxu0 %v398
    %2272 = vmatpush2.msra.mxu0 %v397
    %2273 = vmatprep.subr.mxu0 %v394
    %2274 = vmatpush2.msra.mxu0 %v393
    %2275 = vmatprep.subr.mxu0 %v390
    %2276 = vmatpush2.msra.mxu0 %v389
    %2277 = vmatprep.subr.mxu0 %v386
    %2278 = vmatpush2.msra.mxu0 %v385
    %2279 = vmatprep.mubr.f32.mxu0 %v1482
    %2280 = vmatmul.mubr.f32.gmra.mxu0 %v2214
    %v2281 = vpop.f32.mrf.mxu0
    %v2282 = vadd.f32 %v477, %v2281
    %v2283 = vpop.f32.mrf.mxu0
    %v2284 = vadd.f32 %v481, %v2283
    %2285 = vdwg.mxu0
    %2286 = vmatprep.subr.mxu0 %v384
    %2287 = vmatpush1.msra.mxu0 %v383
    %2288 = vmatprep.subr.mxu0 %v380
    %2289 = vmatpush1.msra.mxu0 %v379
    %2290 = vmatprep.subr.mxu0 %v376
    %2291 = vmatpush1.msra.mxu0 %v375
    %2292 = vmatprep.subr.mxu0 %v372
    %2293 = vmatpush1.msra.mxu0 %v371
    %2294 = vmatprep.subr.mxu0 %v368
    %2295 = vmatpush1.msra.mxu0 %v367
    %2296 = vmatprep.subr.mxu0 %v364
    %2297 = vmatpush1.msra.mxu0 %v363
    %2298 = vmatprep.subr.mxu0 %v360
    %2299 = vmatpush1.msra.mxu0 %v359
    %2300 = vmatprep.subr.mxu0 %v356
    %2301 = vmatpush1.msra.mxu0 %v355
    %2302 = vmatprep.subr.mxu0 %v352
    %2303 = vmatpush1.msra.mxu0 %v351
    %2304 = vmatprep.subr.mxu0 %v348
    %2305 = vmatpush1.msra.mxu0 %v347
    %2306 = vmatprep.subr.mxu0 %v344
    %2307 = vmatpush1.msra.mxu0 %v343
    %2308 = vmatprep.subr.mxu0 %v340
    %2309 = vmatpush1.msra.mxu0 %v339
    %2310 = vmatprep.subr.mxu0 %v336
    %2311 = vmatpush1.msra.mxu0 %v335
    %2312 = vmatprep.subr.mxu0 %v332
    %2313 = vmatpush1.msra.mxu0 %v331
    %2314 = vmatprep.subr.mxu0 %v328
    %2315 = vmatpush1.msra.mxu0 %v327
    %2316 = vmatprep.subr.mxu0 %v324
    %2317 = vmatpush1.msra.mxu0 %v323
    %2318 = vmatprep.subr.mxu0 %v448
    %2319 = vmatpush2.msra.mxu0 %v447
    %2320 = vmatprep.subr.mxu0 %v444
    %2321 = vmatpush2.msra.mxu0 %v443
    %2322 = vmatprep.subr.mxu0 %v440
    %2323 = vmatpush2.msra.mxu0 %v439
    %2324 = vmatprep.subr.mxu0 %v436
    %2325 = vmatpush2.msra.mxu0 %v435
    %2326 = vmatprep.subr.mxu0 %v432
    %2327 = vmatpush2.msra.mxu0 %v431
    %2328 = vmatprep.subr.mxu0 %v428
    %2329 = vmatpush2.msra.mxu0 %v427
    %2330 = vmatprep.subr.mxu0 %v424
    %2331 = vmatpush2.msra.mxu0 %v423
    %2332 = vmatprep.subr.mxu0 %v420
    %2333 = vmatpush2.msra.mxu0 %v419
    %2334 = vmatprep.subr.mxu0 %v416
    %2335 = vmatpush2.msra.mxu0 %v415
    %2336 = vmatprep.subr.mxu0 %v412
    %2337 = vmatpush2.msra.mxu0 %v411
    %2338 = vmatprep.subr.mxu0 %v408
    %2339 = vmatpush2.msra.mxu0 %v407
    %2340 = vmatprep.subr.mxu0 %v404
    %2341 = vmatpush2.msra.mxu0 %v403
    %2342 = vmatprep.subr.mxu0 %v400
    %2343 = vmatpush2.msra.mxu0 %v399
    %2344 = vmatprep.subr.mxu0 %v396
    %2345 = vmatpush2.msra.mxu0 %v395
    %2346 = vmatprep.subr.mxu0 %v392
    %2347 = vmatpush2.msra.mxu0 %v391
    %2348 = vmatprep.subr.mxu0 %v388
    %2349 = vmatpush2.msra.mxu0 %v387
    %2350 = vmatprep.mubr.f32.mxu0 %v1482
    %2351 = vmatmul.mubr.f32.gmra.mxu0 %v2214
    %v2352 = vpop.f32.mrf.mxu0
    %v2353 = vadd.f32 %v485, %v2352
    %v2354 = vpop.f32.mrf.mxu0
    %v2355 = vadd.f32 %v489, %v2354
    %2356 = vdwg.mxu0
    %v2357 = vxor.u32 %v2282, 2147483648
    %v2358 = vmul.f32 %v2357, 1.442695
    %v2359 = vpow.pop %v2358
    %v2360 = vadd.f32 %v2359, 1.0
    %v2361 = vrcp.pop %v2360
    %v2362 = vmul.f32 1.0, %v2361
    %v2363 = vxor.u32 %v2284, 2147483648
    %v2364 = vmul.f32 %v2363, 1.442695
    %v2365 = vpow.pop %v2364
    %v2366 = vadd.f32 %v2365, 1.0
    %v2367 = vrcp.pop %v2366
    %v2368 = vmul.f32 1.0, %v2367
    %v2369 = vtanh.pop %v2353
    %v2370 = vxor.u32 %v2355, 2147483648
    %v2371 = vmul.f32 %v2370, 1.442695
    %v2372 = vpow.pop %v2371
    %v2373 = vadd.f32 %v2372, 1.0
    %v2374 = vrcp.pop %v2373
    %v2375 = vmul.f32 1.0, %v2374
    %v2376 = vmul.f32 %v2368, %v1480
    %v2377 = vmul.f32 %v2362, %v2369
    %v2378 = vadd.f32 %v2376, %v2377
    %v2379 = vtanh.pop %v2378
    %v2380 = vmul.f32 %v2375, %v2379
    %2381 = vmatprep.subr.mxu0 0.0
    %2382 = vmatpush1.msra.mxu0 %v113
    %2383 = vmatprep.subr.mxu0 0.0
    %2384 = vmatpush1.msra.mxu0 %v112
    %2385 = vmatprep.subr.mxu0 0.0
    %2386 = vmatpush1.msra.mxu0 %v111
    %2387 = vmatprep.subr.mxu0 0.0
    %2388 = vmatpush1.msra.mxu0 %v110
    %2389 = vmatprep.subr.mxu0 0.0
    %2390 = vmatpush1.msra.mxu0 %v109
    %2391 = vmatprep.subr.mxu0 0.0
    %2392 = vmatpush1.msra.mxu0 %v108
    %2393 = vmatprep.subr.mxu0 0.0
    %2394 = vmatpush1.msra.mxu0 %v107
    %2395 = vmatprep.subr.mxu0 0.0
    %2396 = vmatpush1.msra.mxu0 %v106
    %2397 = vmatprep.subr.mxu0 0.0
    %2398 = vmatpush1.msra.mxu0 %v105
    %2399 = vmatprep.subr.mxu0 0.0
    %2400 = vmatpush1.msra.mxu0 %v104
    %2401 = vmatprep.subr.mxu0 0.0
    %2402 = vmatpush1.msra.mxu0 %v103
    %2403 = vmatprep.subr.mxu0 0.0
    %2404 = vmatpush1.msra.mxu0 %v102
    %2405 = vmatprep.subr.mxu0 0.0
    %2406 = vmatpush1.msra.mxu0 %v101
    %2407 = vmatprep.subr.mxu0 0.0
    %2408 = vmatpush1.msra.mxu0 %v100
    %2409 = vmatprep.subr.mxu0 0.0
    %2410 = vmatpush1.msra.mxu0 %v99
    %2411 = vmatprep.subr.mxu0 0.0
    %2412 = vmatpush1.msra.mxu0 %v98
    %2413 = vmatprep.subr.mxu0 0.0
    %2414 = vmatpush2.msra.mxu0 0.0
    %2415 = vmatprep.subr.mxu0 0.0
    %2416 = vmatpush2.msra.mxu0 0.0
    %2417 = vmatprep.subr.mxu0 0.0
    %2418 = vmatpush2.msra.mxu0 0.0
    %2419 = vmatprep.subr.mxu0 0.0
    %2420 = vmatpush2.msra.mxu0 0.0
    %2421 = vmatprep.subr.mxu0 0.0
    %2422 = vmatpush2.msra.mxu0 0.0
    %2423 = vmatprep.subr.mxu0 0.0
    %2424 = vmatpush2.msra.mxu0 0.0
    %2425 = vmatprep.subr.mxu0 0.0
    %2426 = vmatpush2.msra.mxu0 0.0
    %2427 = vmatprep.subr.mxu0 0.0
    %2428 = vmatpush2.msra.mxu0 0.0
    %2429 = vmatprep.subr.mxu0 0.0
    %2430 = vmatpush2.msra.mxu0 0.0
    %2431 = vmatprep.subr.mxu0 0.0
    %2432 = vmatpush2.msra.mxu0 0.0
    %2433 = vmatprep.subr.mxu0 0.0
    %2434 = vmatpush2.msra.mxu0 0.0
    %2435 = vmatprep.subr.mxu0 0.0
    %2436 = vmatpush2.msra.mxu0 0.0
    %2437 = vmatprep.subr.mxu0 0.0
    %2438 = vmatpush2.msra.mxu0 0.0
    %2439 = vmatprep.subr.mxu0 0.0
    %2440 = vmatpush2.msra.mxu0 0.0
    %2441 = vmatprep.subr.mxu0 0.0
    %2442 = vmatpush2.msra.mxu0 0.0
    %2443 = vmatprep.subr.mxu0 0.0
    %2444 = vmatpush2.msra.mxu0 0.0
    %2445 = vmatprep.mubr.f32.mxu0 0.0
    %2446 = vmatmul.mubr.f32.gmra.mxu0 %v2380
    %v2447 = vpop.f32.mrf.mxu0
    %v2448 = vadd.f32 %v183, %v2447
    %v2449 = vpop.f32.mrf.mxu0
    %2450 = vdwg.mxu0
    %v2451 = vtanh.pop %v2448
    %v2454 = vunpack.c.l.s4 1966171168
    %v2455 = vunpack.c.0.s8 %v2454
    %v2456 = vlaneseq
    %v2457 = vshrl.u32 %v2456, 7
    %v2458 = vsub.s32 %v2455, %v2457
    %v2459 = vrot.slane %v2451, %v2458
    %v2460 = vcombine.high %v2459, %v2459
    %v2462 = vunpack.c.l.s4 1966171168
    %v2463 = vunpack.c.0.s8 %v2462
    %v2464 = vlaneseq
    %v2465 = vshrl.u32 %v2464, 7
    %v2466 = vsub.s32 %v2463, %v2465
    %v2467 = vrot.slane %v2459, %v2466
    %v2469 = vunpack.c.l.s4 1966171168
    %v2470 = vunpack.c.0.s8 %v2469
    %v2471 = vlaneseq
    %v2472 = vshrl.u32 %v2471, 7
    %v2473 = vsub.s32 %v2470, %v2472
    %v2474 = vrot.slane %v2460, %v2473
    %2477 = vmatprep.subr.mxu0 0.0
    %2478 = vmatpush1.xpose.msra.mxu0 0.0
    %2479 = vmatprep.subr.mxu0 0.0
    %2480 = vmatpush1.xpose.msra.mxu0 0.0
    %2481 = vmatprep.subr.mxu0 0.0
    %2482 = vmatpush1.xpose.msra.mxu0 0.0
    %2483 = vmatprep.subr.mxu0 0.0
    %2484 = vmatpush1.xpose.msra.mxu0 0.0
    %2485 = vmatprep.subr.mxu0 0.0
    %2486 = vmatpush1.xpose.msra.mxu0 0.0
    %2487 = vmatprep.subr.mxu0 0.0
    %2488 = vmatpush1.xpose.msra.mxu0 0.0
    %2489 = vmatprep.subr.mxu0 0.0
    %2490 = vmatpush1.xpose.msra.mxu0 0.0
    %2491 = vmatprep.subr.mxu0 0.0
    %2492 = vmatpush1.xpose.msra.mxu0 0.0
    %2493 = vmatprep.subr.mxu0 0.0
    %2494 = vmatpush1.xpose.msra.mxu0 0.0
    %2495 = vmatprep.subr.mxu0 0.0
    %2496 = vmatpush1.xpose.msra.mxu0 0.0
    %2497 = vmatprep.subr.mxu0 0.0
    %2498 = vmatpush1.xpose.msra.mxu0 0.0
    %2499 = vmatprep.subr.mxu0 0.0
    %2500 = vmatpush1.xpose.msra.mxu0 0.0
    %2501 = vmatprep.subr.mxu0 0.0
    %2502 = vmatpush1.xpose.msra.mxu0 0.0
    %2503 = vmatprep.subr.mxu0 0.0
    %2504 = vmatpush1.xpose.msra.mxu0 0.0
    %2505 = vmatprep.subr.mxu0 0.0
    %2506 = vmatpush1.xpose.msra.mxu0 0.0
    %2507 = vmatprep.subr.mxu0 0.0
    %2508 = vmatpush1.xpose.msra.mxu0 %v586
    %2509 = vmatprep.subr.mxu0 0.0
    %2510 = vmatpush2.xpose.msra.mxu0 0.0
    %2511 = vmatprep.subr.mxu0 0.0
    %2512 = vmatpush2.xpose.msra.mxu0 0.0
    %2513 = vmatprep.subr.mxu0 0.0
    %2514 = vmatpush2.xpose.msra.mxu0 0.0
    %2515 = vmatprep.subr.mxu0 0.0
    %2516 = vmatpush2.xpose.msra.mxu0 0.0
    %2517 = vmatprep.subr.mxu0 0.0
    %2518 = vmatpush2.xpose.msra.mxu0 0.0
    %2519 = vmatprep.subr.mxu0 0.0
    %2520 = vmatpush2.xpose.msra.mxu0 0.0
    %2521 = vmatprep.subr.mxu0 0.0
    %2522 = vmatpush2.xpose.msra.mxu0 0.0
    %2523 = vmatprep.subr.mxu0 0.0
    %2524 = vmatpush2.xpose.msra.mxu0 0.0
    %2525 = vmatprep.subr.mxu0 0.0
    %2526 = vmatpush2.xpose.msra.mxu0 0.0
    %2527 = vmatprep.subr.mxu0 0.0
    %2528 = vmatpush2.xpose.msra.mxu0 0.0
    %2529 = vmatprep.subr.mxu0 0.0
    %2530 = vmatpush2.xpose.msra.mxu0 0.0
    %2531 = vmatprep.subr.mxu0 0.0
    %2532 = vmatpush2.xpose.msra.mxu0 0.0
    %2533 = vmatprep.subr.mxu0 0.0
    %2534 = vmatpush2.xpose.msra.mxu0 0.0
    %2535 = vmatprep.subr.mxu0 0.0
    %2536 = vmatpush2.xpose.msra.mxu0 0.0
    %2537 = vmatprep.subr.mxu0 0.0
    %2538 = vmatpush2.xpose.msra.mxu0 0.0
    %2539 = vmatprep.subr.mxu0 0.0
    %2540 = vmatpush2.xpose.msra.mxu0 0.0
    %2541 = vmatprep.mubr.f32.mxu0 0.0
    %2542 = vmatmul.mubr.f32.gmra.mxu0 %v2467
    %v2543 = vpop.f32.mrf.mxu0
    %v2544 = vadd.f32 0.0, %v2543
    %v2545 = vpop.f32.mrf.mxu0
    %2546 = vdwg.mxu0
    %2547 = vmatprep.subr.mxu0 0.0
    %2548 = vmatpush1.xpose.msra.mxu0 0.0
    %2549 = vmatprep.subr.mxu0 0.0
    %2550 = vmatpush1.xpose.msra.mxu0 0.0
    %2551 = vmatprep.subr.mxu0 0.0
    %2552 = vmatpush1.xpose.msra.mxu0 0.0
    %2553 = vmatprep.subr.mxu0 0.0
    %2554 = vmatpush1.xpose.msra.mxu0 0.0
    %2555 = vmatprep.subr.mxu0 0.0
    %2556 = vmatpush1.xpose.msra.mxu0 0.0
    %2557 = vmatprep.subr.mxu0 0.0
    %2558 = vmatpush1.xpose.msra.mxu0 0.0
    %2559 = vmatprep.subr.mxu0 0.0
    %2560 = vmatpush1.xpose.msra.mxu0 0.0
    %2561 = vmatprep.subr.mxu0 0.0
    %2562 = vmatpush1.xpose.msra.mxu0 0.0
    %2563 = vmatprep.subr.mxu0 0.0
    %2564 = vmatpush1.xpose.msra.mxu0 0.0
    %2565 = vmatprep.subr.mxu0 0.0
    %2566 = vmatpush1.xpose.msra.mxu0 0.0
    %2567 = vmatprep.subr.mxu0 0.0
    %2568 = vmatpush1.xpose.msra.mxu0 0.0
    %2569 = vmatprep.subr.mxu0 0.0
    %2570 = vmatpush1.xpose.msra.mxu0 0.0
    %2571 = vmatprep.subr.mxu0 0.0
    %2572 = vmatpush1.xpose.msra.mxu0 0.0
    %2573 = vmatprep.subr.mxu0 0.0
    %2574 = vmatpush1.xpose.msra.mxu0 0.0
    %2575 = vmatprep.subr.mxu0 0.0
    %2576 = vmatpush1.xpose.msra.mxu0 0.0
    %2577 = vmatprep.subr.mxu0 0.0
    %2578 = vmatpush1.xpose.msra.mxu0 %v588
    %2579 = vmatprep.subr.mxu0 0.0
    %2580 = vmatpush2.xpose.msra.mxu0 0.0
    %2581 = vmatprep.subr.mxu0 0.0
    %2582 = vmatpush2.xpose.msra.mxu0 0.0
    %2583 = vmatprep.subr.mxu0 0.0
    %2584 = vmatpush2.xpose.msra.mxu0 0.0
    %2585 = vmatprep.subr.mxu0 0.0
    %2586 = vmatpush2.xpose.msra.mxu0 0.0
    %2587 = vmatprep.subr.mxu0 0.0
    %2588 = vmatpush2.xpose.msra.mxu0 0.0
    %2589 = vmatprep.subr.mxu0 0.0
    %2590 = vmatpush2.xpose.msra.mxu0 0.0
    %2591 = vmatprep.subr.mxu0 0.0
    %2592 = vmatpush2.xpose.msra.mxu0 0.0
    %2593 = vmatprep.subr.mxu0 0.0
    %2594 = vmatpush2.xpose.msra.mxu0 0.0
    %2595 = vmatprep.subr.mxu0 0.0
    %2596 = vmatpush2.xpose.msra.mxu0 0.0
    %2597 = vmatprep.subr.mxu0 0.0
    %2598 = vmatpush2.xpose.msra.mxu0 0.0
    %2599 = vmatprep.subr.mxu0 0.0
    %2600 = vmatpush2.xpose.msra.mxu0 0.0
    %2601 = vmatprep.subr.mxu0 0.0
    %2602 = vmatpush2.xpose.msra.mxu0 0.0
    %2603 = vmatprep.subr.mxu0 0.0
    %2604 = vmatpush2.xpose.msra.mxu0 0.0
    %2605 = vmatprep.subr.mxu0 0.0
    %2606 = vmatpush2.xpose.msra.mxu0 0.0
    %2607 = vmatprep.subr.mxu0 0.0
    %2608 = vmatpush2.xpose.msra.mxu0 0.0
    %2609 = vmatprep.subr.mxu0 0.0
    %2610 = vmatpush2.xpose.msra.mxu0 0.0
    %2611 = vmatprep.mubr.f32.mxu0 0.0
    %2612 = vmatmul.mubr.f32.gmra.mxu0 %v2474
    %v2613 = vpop.f32.mrf.mxu0
    %v2614 = vadd.f32 0.0, %v2613
    %v2615 = vpop.f32.mrf.mxu0
    %2616 = vdwg.mxu0
    %v2617 = vsel %vm903, %v2544, -inf
    %2618 = vmax.xlane.f32.xlu0 %v2617
    %v2619 = vpop.xlane.xlu0 %2618
    %v2620 = vsel %vm903, %v2614, -inf
    %2621 = vmax.xlane.f32.xlu0 %v2620
    %v2622 = vpop.xlane.xlu0 %2621
    %v2623 = vsub.f32 %v2544, %v2619
    %v2624 = vsub.f32 %v2614, %v2622
    %v2625 = vmul.f32 %v2623, 1.442695
    %v2626 = vpow.pop %v2625
    %v2627 = vmul.f32 %v2624, 1.442695
    %v2628 = vpow.pop %v2627
    %v2629 = vsel %vm903, %v2626, 0.0
    %2630 = vadd.xlane.f32.xlu0 %v2629
    %v2631 = vpop.xlane.xlu0 %2630
    %v2632 = vsel %vm903, %v2628, 0.0
    %2633 = vadd.xlane.f32.xlu0 %v2632
    %v2634 = vpop.xlane.xlu0 %2633
    %v2635 = vrcp.pop %v2631
    %v2636 = vmul.f32 %v2626, %v2635
    %v2637 = vrcp.pop %v2634
    %v2638 = vmul.f32 %v2628, %v2637
    %v2639 = vadd.f32 %v2636, %v84
    %v2640 = vadd.f32 %v2638, %v91
    %v2642 = vsel %vm928, %v2639, 0
    %2644 = vmatprep.subr.mxu0 0.0
    %2645 = vmatpush1.msra.mxu0 0.0
    %2646 = vmatprep.subr.mxu0 0.0
    %2647 = vmatpush1.msra.mxu0 0.0
    %2648 = vmatprep.subr.mxu0 0.0
    %2649 = vmatpush1.msra.mxu0 0.0
    %2650 = vmatprep.subr.mxu0 0.0
    %2651 = vmatpush1.msra.mxu0 0.0
    %2652 = vmatprep.subr.mxu0 0.0
    %2653 = vmatpush1.msra.mxu0 0.0
    %2654 = vmatprep.subr.mxu0 0.0
    %2655 = vmatpush1.msra.mxu0 0.0
    %2656 = vmatprep.subr.mxu0 0.0
    %2657 = vmatpush1.msra.mxu0 0.0
    %2658 = vmatprep.subr.mxu0 0.0
    %2659 = vmatpush1.msra.mxu0 0.0
    %2660 = vmatprep.subr.mxu0 0.0
    %2661 = vmatpush1.msra.mxu0 0.0
    %2662 = vmatprep.subr.mxu0 0.0
    %2663 = vmatpush1.msra.mxu0 0.0
    %2664 = vmatprep.subr.mxu0 0.0
    %2665 = vmatpush1.msra.mxu0 0.0
    %2666 = vmatprep.subr.mxu0 0.0
    %2667 = vmatpush1.msra.mxu0 0.0
    %2668 = vmatprep.subr.mxu0 0.0
    %2669 = vmatpush1.msra.mxu0 0.0
    %2670 = vmatprep.subr.mxu0 0.0
    %2671 = vmatpush1.msra.mxu0 0.0
    %2672 = vmatprep.subr.mxu0 0.0
    %2673 = vmatpush1.msra.mxu0 0.0
    %2674 = vmatprep.subr.mxu0 0.0
    %2675 = vmatpush1.msra.mxu0 %v587
    %2676 = vmatprep.subr.mxu0 0.0
    %2677 = vmatpush2.msra.mxu0 0.0
    %2678 = vmatprep.subr.mxu0 0.0
    %2679 = vmatpush2.msra.mxu0 0.0
    %2680 = vmatprep.subr.mxu0 0.0
    %2681 = vmatpush2.msra.mxu0 0.0
    %2682 = vmatprep.subr.mxu0 0.0
    %2683 = vmatpush2.msra.mxu0 0.0
    %2684 = vmatprep.subr.mxu0 0.0
    %2685 = vmatpush2.msra.mxu0 0.0
    %2686 = vmatprep.subr.mxu0 0.0
    %2687 = vmatpush2.msra.mxu0 0.0
    %2688 = vmatprep.subr.mxu0 0.0
    %2689 = vmatpush2.msra.mxu0 0.0
    %2690 = vmatprep.subr.mxu0 0.0
    %2691 = vmatpush2.msra.mxu0 0.0
    %2692 = vmatprep.subr.mxu0 0.0
    %2693 = vmatpush2.msra.mxu0 0.0
    %2694 = vmatprep.subr.mxu0 0.0
    %2695 = vmatpush2.msra.mxu0 0.0
    %2696 = vmatprep.subr.mxu0 0.0
    %2697 = vmatpush2.msra.mxu0 0.0
    %2698 = vmatprep.subr.mxu0 0.0
    %2699 = vmatpush2.msra.mxu0 0.0
    %2700 = vmatprep.subr.mxu0 0.0
    %2701 = vmatpush2.msra.mxu0 0.0
    %2702 = vmatprep.subr.mxu0 0.0
    %2703 = vmatpush2.msra.mxu0 0.0
    %2704 = vmatprep.subr.mxu0 0.0
    %2705 = vmatpush2.msra.mxu0 0.0
    %2706 = vmatprep.subr.mxu0 0.0
    %2707 = vmatpush2.msra.mxu0 0.0
    %2708 = vmatprep.mubr.f32.mxu0 0.0
    %2709 = vmatmul.mubr.f32.gmra.mxu0 %v2642
    %v2710 = vpop.f32.mrf.mxu0
    %v2711 = vadd.f32 0.0, %v2710
    %v2712 = vpop.f32.mrf.mxu0
    %2713 = vdwg.mxu0
    %v2715 = vsel %vm928, %v2640, 0
    %2717 = vmatprep.subr.mxu0 0.0
    %2718 = vmatpush1.msra.mxu0 0.0
    %2719 = vmatprep.subr.mxu0 0.0
    %2720 = vmatpush1.msra.mxu0 0.0
    %2721 = vmatprep.subr.mxu0 0.0
    %2722 = vmatpush1.msra.mxu0 0.0
    %2723 = vmatprep.subr.mxu0 0.0
    %2724 = vmatpush1.msra.mxu0 0.0
    %2725 = vmatprep.subr.mxu0 0.0
    %2726 = vmatpush1.msra.mxu0 0.0
    %2727 = vmatprep.subr.mxu0 0.0
    %2728 = vmatpush1.msra.mxu0 0.0
    %2729 = vmatprep.subr.mxu0 0.0
    %2730 = vmatpush1.msra.mxu0 0.0
    %2731 = vmatprep.subr.mxu0 0.0
    %2732 = vmatpush1.msra.mxu0 0.0
    %2733 = vmatprep.subr.mxu0 0.0
    %2734 = vmatpush1.msra.mxu0 0.0
    %2735 = vmatprep.subr.mxu0 0.0
    %2736 = vmatpush1.msra.mxu0 0.0
    %2737 = vmatprep.subr.mxu0 0.0
    %2738 = vmatpush1.msra.mxu0 0.0
    %2739 = vmatprep.subr.mxu0 0.0
    %2740 = vmatpush1.msra.mxu0 0.0
    %2741 = vmatprep.subr.mxu0 0.0
    %2742 = vmatpush1.msra.mxu0 0.0
    %2743 = vmatprep.subr.mxu0 0.0
    %2744 = vmatpush1.msra.mxu0 0.0
    %2745 = vmatprep.subr.mxu0 0.0
    %2746 = vmatpush1.msra.mxu0 0.0
    %2747 = vmatprep.subr.mxu0 0.0
    %2748 = vmatpush1.msra.mxu0 %v589
    %2749 = vmatprep.subr.mxu0 0.0
    %2750 = vmatpush2.msra.mxu0 0.0
    %2751 = vmatprep.subr.mxu0 0.0
    %2752 = vmatpush2.msra.mxu0 0.0
    %2753 = vmatprep.subr.mxu0 0.0
    %2754 = vmatpush2.msra.mxu0 0.0
    %2755 = vmatprep.subr.mxu0 0.0
    %2756 = vmatpush2.msra.mxu0 0.0
    %2757 = vmatprep.subr.mxu0 0.0
    %2758 = vmatpush2.msra.mxu0 0.0
    %2759 = vmatprep.subr.mxu0 0.0
    %2760 = vmatpush2.msra.mxu0 0.0
    %2761 = vmatprep.subr.mxu0 0.0
    %2762 = vmatpush2.msra.mxu0 0.0
    %2763 = vmatprep.subr.mxu0 0.0
    %2764 = vmatpush2.msra.mxu0 0.0
    %2765 = vmatprep.subr.mxu0 0.0
    %2766 = vmatpush2.msra.mxu0 0.0
    %2767 = vmatprep.subr.mxu0 0.0
    %2768 = vmatpush2.msra.mxu0 0.0
    %2769 = vmatprep.subr.mxu0 0.0
    %2770 = vmatpush2.msra.mxu0 0.0
    %2771 = vmatprep.subr.mxu0 0.0
    %2772 = vmatpush2.msra.mxu0 0.0
    %2773 = vmatprep.subr.mxu0 0.0
    %2774 = vmatpush2.msra.mxu0 0.0
    %2775 = vmatprep.subr.mxu0 0.0
    %2776 = vmatpush2.msra.mxu0 0.0
    %2777 = vmatprep.subr.mxu0 0.0
    %2778 = vmatpush2.msra.mxu0 0.0
    %2779 = vmatprep.subr.mxu0 0.0
    %2780 = vmatpush2.msra.mxu0 0.0
    %2781 = vmatprep.mubr.f32.mxu0 0.0
    %2782 = vmatmul.mubr.f32.gmra.mxu0 %v2715
    %v2783 = vpop.f32.mrf.mxu0
    %v2784 = vadd.f32 0.0, %v2783
    %v2785 = vpop.f32.mrf.mxu0
    %2786 = vdwg.mxu0
    %v2789 = vrot.slane %v2784, 7
    %v2790 = vsel %vm1078, %v2789, %v2711
    %2792 = vmatprep.subr.mxu0 0.0
    %2793 = vmatpush1.msra.mxu0 %v161
    %2794 = vmatprep.subr.mxu0 0.0
    %2795 = vmatpush1.msra.mxu0 %v160
    %2796 = vmatprep.subr.mxu0 0.0
    %2797 = vmatpush1.msra.mxu0 %v159
    %2798 = vmatprep.subr.mxu0 0.0
    %2799 = vmatpush1.msra.mxu0 %v158
    %2800 = vmatprep.subr.mxu0 0.0
    %2801 = vmatpush1.msra.mxu0 %v157
    %2802 = vmatprep.subr.mxu0 0.0
    %2803 = vmatpush1.msra.mxu0 %v156
    %2804 = vmatprep.subr.mxu0 0.0
    %2805 = vmatpush1.msra.mxu0 %v155
    %2806 = vmatprep.subr.mxu0 0.0
    %2807 = vmatpush1.msra.mxu0 %v154
    %2808 = vmatprep.subr.mxu0 0.0
    %2809 = vmatpush1.msra.mxu0 %v153
    %2810 = vmatprep.subr.mxu0 0.0
    %2811 = vmatpush1.msra.mxu0 %v152
    %2812 = vmatprep.subr.mxu0 0.0
    %2813 = vmatpush1.msra.mxu0 %v151
    %2814 = vmatprep.subr.mxu0 0.0
    %2815 = vmatpush1.msra.mxu0 %v150
    %2816 = vmatprep.subr.mxu0 0.0
    %2817 = vmatpush1.msra.mxu0 %v149
    %2818 = vmatprep.subr.mxu0 0.0
    %2819 = vmatpush1.msra.mxu0 %v148
    %2820 = vmatprep.subr.mxu0 0.0
    %2821 = vmatpush1.msra.mxu0 %v147
    %2822 = vmatprep.subr.mxu0 0.0
    %2823 = vmatpush1.msra.mxu0 %v146
    %2824 = vmatprep.subr.mxu0 0.0
    %2825 = vmatpush2.msra.mxu0 %v177
    %2826 = vmatprep.subr.mxu0 0.0
    %2827 = vmatpush2.msra.mxu0 %v176
    %2828 = vmatprep.subr.mxu0 0.0
    %2829 = vmatpush2.msra.mxu0 %v175
    %2830 = vmatprep.subr.mxu0 0.0
    %2831 = vmatpush2.msra.mxu0 %v174
    %2832 = vmatprep.subr.mxu0 0.0
    %2833 = vmatpush2.msra.mxu0 %v173
    %2834 = vmatprep.subr.mxu0 0.0
    %2835 = vmatpush2.msra.mxu0 %v172
    %2836 = vmatprep.subr.mxu0 0.0
    %2837 = vmatpush2.msra.mxu0 %v171
    %2838 = vmatprep.subr.mxu0 0.0
    %2839 = vmatpush2.msra.mxu0 %v170
    %2840 = vmatprep.subr.mxu0 0.0
    %2841 = vmatpush2.msra.mxu0 %v169
    %2842 = vmatprep.subr.mxu0 0.0
    %2843 = vmatpush2.msra.mxu0 %v168
    %2844 = vmatprep.subr.mxu0 0.0
    %2845 = vmatpush2.msra.mxu0 %v167
    %2846 = vmatprep.subr.mxu0 0.0
    %2847 = vmatpush2.msra.mxu0 %v166
    %2848 = vmatprep.subr.mxu0 0.0
    %2849 = vmatpush2.msra.mxu0 %v165
    %2850 = vmatprep.subr.mxu0 0.0
    %2851 = vmatpush2.msra.mxu0 %v164
    %2852 = vmatprep.subr.mxu0 0.0
    %2853 = vmatpush2.msra.mxu0 %v163
    %2854 = vmatprep.subr.mxu0 0.0
    %2855 = vmatpush2.msra.mxu0 %v162
    %2856 = vmatprep.mubr.f32.mxu0 %v2380
    %2857 = vmatmul.mubr.f32.gmra.mxu0 %v2790
    %v2858 = vpop.f32.mrf.mxu0
    %v2859 = vadd.f32 %v190, %v2858
    %v2860 = vpop.f32.mrf.mxu0
    %2861 = vdwg.mxu0
    %v2862 = vsel %vm1964, %v2859, -inf
    %2863 = vmax.xlane.f32.xlu0 %v2862
    %v2864 = vpop.xlane.xlu0 %2863
    %vm2865 = vcmp.eq.f32.partialorder %v2859, %v2864
    %v2866 = vsel %vm2865, %v496, 32.0
    %v2867 = vsel %vm1964, %v2866, inf
    %2868 = vmin.xlane.f32.xlu0 %v2867
    %v2869 = vpop.xlane.xlu0 %2868
    %vm2870 = vcmp.eq.f32.partialorder %v496, %v2869
    %v2871 = vsel %vm2870, 1, 0
    %v2872 = vcvt.s32.f32 %v2871
    %v2874 = vsel %vm593, %v2872, 0
    %2876 = vmatprep.subr.mxu0 0.0
    %2877 = vmatpush1.msra.mxu0 0.0
    %2878 = vmatprep.subr.mxu0 0.0
    %2879 = vmatpush1.msra.mxu0 0.0
    %2880 = vmatprep.subr.mxu0 0.0
    %2881 = vmatpush1.msra.mxu0 0.0
    %2882 = vmatprep.subr.mxu0 0.0
    %2883 = vmatpush1.msra.mxu0 0.0
    %2884 = vmatprep.subr.mxu0 0.0
    %2885 = vmatpush1.msra.mxu0 0.0
    %2886 = vmatprep.subr.mxu0 0.0
    %2887 = vmatpush1.msra.mxu0 0.0
    %2888 = vmatprep.subr.mxu0 0.0
    %2889 = vmatpush1.msra.mxu0 0.0
    %2890 = vmatprep.subr.mxu0 0.0
    %2891 = vmatpush1.msra.mxu0 0.0
    %2892 = vmatprep.subr.mxu0 0.0
    %2893 = vmatpush1.msra.mxu0 0.0
    %2894 = vmatprep.subr.mxu0 0.0
    %2895 = vmatpush1.msra.mxu0 0.0
    %2896 = vmatprep.subr.mxu0 0.0
    %2897 = vmatpush1.msra.mxu0 0.0
    %2898 = vmatprep.subr.mxu0 0.0
    %2899 = vmatpush1.msra.mxu0 0.0
    %2900 = vmatprep.subr.mxu0 0.0
    %2901 = vmatpush1.msra.mxu0 %v97
    %2902 = vmatprep.subr.mxu0 0.0
    %2903 = vmatpush1.msra.mxu0 %v96
    %2904 = vmatprep.subr.mxu0 0.0
    %2905 = vmatpush1.msra.mxu0 %v95
    %2906 = vmatprep.subr.mxu0 0.0
    %2907 = vmatpush1.msra.mxu0 %v94
    %2908 = vmatprep.subr.mxu0 0.0
    %2909 = vmatpush2.msra.mxu0 0.0
    %2910 = vmatprep.subr.mxu0 0.0
    %2911 = vmatpush2.msra.mxu0 0.0
    %2912 = vmatprep.subr.mxu0 0.0
    %2913 = vmatpush2.msra.mxu0 0.0
    %2914 = vmatprep.subr.mxu0 0.0
    %2915 = vmatpush2.msra.mxu0 0.0
    %2916 = vmatprep.subr.mxu0 0.0
    %2917 = vmatpush2.msra.mxu0 0.0
    %2918 = vmatprep.subr.mxu0 0.0
    %2919 = vmatpush2.msra.mxu0 0.0
    %2920 = vmatprep.subr.mxu0 0.0
    %2921 = vmatpush2.msra.mxu0 0.0
    %2922 = vmatprep.subr.mxu0 0.0
    %2923 = vmatpush2.msra.mxu0 0.0
    %2924 = vmatprep.subr.mxu0 0.0
    %2925 = vmatpush2.msra.mxu0 0.0
    %2926 = vmatprep.subr.mxu0 0.0
    %2927 = vmatpush2.msra.mxu0 0.0
    %2928 = vmatprep.subr.mxu0 0.0
    %2929 = vmatpush2.msra.mxu0 0.0
    %2930 = vmatprep.subr.mxu0 0.0
    %2931 = vmatpush2.msra.mxu0 0.0
    %2932 = vmatprep.subr.mxu0 0.0
    %2933 = vmatpush2.msra.mxu0 0.0
    %2934 = vmatprep.subr.mxu0 0.0
    %2935 = vmatpush2.msra.mxu0 0.0
    %2936 = vmatprep.subr.mxu0 0.0
    %2937 = vmatpush2.msra.mxu0 0.0
    %2938 = vmatprep.subr.mxu0 0.0
    %2939 = vmatpush2.msra.mxu0 0.0
    %2940 = vmatprep.mubr.f32.mxu0 0.0
    %2941 = vmatmul.mubr.f32.gmra.mxu0 %v2874
    %v2942 = vpop.f32.mrf.mxu0
    %v2943 = vadd.f32 0.0, %v2942
    %v2944 = vpop.f32.mrf.mxu0
    %2945 = vdwg.mxu0
    %2946 = vmatprep.subr.mxu0 %v253
    %2947 = vmatpush1.msra.mxu0 %v252
    %2948 = vmatprep.subr.mxu0 %v249
    %2949 = vmatpush1.msra.mxu0 %v248
    %2950 = vmatprep.subr.mxu0 %v245
    %2951 = vmatpush1.msra.mxu0 %v244
    %2952 = vmatprep.subr.mxu0 %v241
    %2953 = vmatpush1.msra.mxu0 %v240
    %2954 = vmatprep.subr.mxu0 %v237
    %2955 = vmatpush1.msra.mxu0 %v236
    %2956 = vmatprep.subr.mxu0 %v233
    %2957 = vmatpush1.msra.mxu0 %v232
    %2958 = vmatprep.subr.mxu0 %v229
    %2959 = vmatpush1.msra.mxu0 %v228
    %2960 = vmatprep.subr.mxu0 %v225
    %2961 = vmatpush1.msra.mxu0 %v224
    %2962 = vmatprep.subr.mxu0 %v221
    %2963 = vmatpush1.msra.mxu0 %v220
    %2964 = vmatprep.subr.mxu0 %v217
    %2965 = vmatpush1.msra.mxu0 %v216
    %2966 = vmatprep.subr.mxu0 %v213
    %2967 = vmatpush1.msra.mxu0 %v212
    %2968 = vmatprep.subr.mxu0 %v209
    %2969 = vmatpush1.msra.mxu0 %v208
    %2970 = vmatprep.subr.mxu0 %v205
    %2971 = vmatpush1.msra.mxu0 %v204
    %2972 = vmatprep.subr.mxu0 %v201
    %2973 = vmatpush1.msra.mxu0 %v200
    %2974 = vmatprep.subr.mxu0 %v197
    %2975 = vmatpush1.msra.mxu0 %v196
    %2976 = vmatprep.subr.mxu0 %v193
    %2977 = vmatpush1.msra.mxu0 %v192
    %2978 = vmatprep.subr.mxu0 %v317
    %2979 = vmatpush2.msra.mxu0 %v316
    %2980 = vmatprep.subr.mxu0 %v313
    %2981 = vmatpush2.msra.mxu0 %v312
    %2982 = vmatprep.subr.mxu0 %v309
    %2983 = vmatpush2.msra.mxu0 %v308
    %2984 = vmatprep.subr.mxu0 %v305
    %2985 = vmatpush2.msra.mxu0 %v304
    %2986 = vmatprep.subr.mxu0 %v301
    %2987 = vmatpush2.msra.mxu0 %v300
    %2988 = vmatprep.subr.mxu0 %v297
    %2989 = vmatpush2.msra.mxu0 %v296
    %2990 = vmatprep.subr.mxu0 %v293
    %2991 = vmatpush2.msra.mxu0 %v292
    %2992 = vmatprep.subr.mxu0 %v289
    %2993 = vmatpush2.msra.mxu0 %v288
    %2994 = vmatprep.subr.mxu0 %v285
    %2995 = vmatpush2.msra.mxu0 %v284
    %2996 = vmatprep.subr.mxu0 %v281
    %2997 = vmatpush2.msra.mxu0 %v280
    %2998 = vmatprep.subr.mxu0 %v277
    %2999 = vmatpush2.msra.mxu0 %v276
    %3000 = vmatprep.subr.mxu0 %v273
    %3001 = vmatpush2.msra.mxu0 %v272
    %3002 = vmatprep.subr.mxu0 %v269
    %3003 = vmatpush2.msra.mxu0 %v268
    %3004 = vmatprep.subr.mxu0 %v265
    %3005 = vmatpush2.msra.mxu0 %v264
    %3006 = vmatprep.subr.mxu0 %v261
    %3007 = vmatpush2.msra.mxu0 %v260
    %3008 = vmatprep.subr.mxu0 %v257
    %3009 = vmatpush2.msra.mxu0 %v256
    %3010 = vmatprep.mubr.f32.mxu0 %v2214
    %3011 = vmatmul.mubr.f32.gmra.mxu0 %v2943
    %v3012 = vpop.f32.mrf.mxu0
    %v3013 = vadd.f32 %v454, %v3012
    %v3014 = vpop.f32.mrf.mxu0
    %v3015 = vadd.f32 %v458, %v3014
    %3016 = vdwg.mxu0
    %3017 = vmatprep.subr.mxu0 %v255
    %3018 = vmatpush1.msra.mxu0 %v254
    %3019 = vmatprep.subr.mxu0 %v251
    %3020 = vmatpush1.msra.mxu0 %v250
    %3021 = vmatprep.subr.mxu0 %v247
    %3022 = vmatpush1.msra.mxu0 %v246
    %3023 = vmatprep.subr.mxu0 %v243
    %3024 = vmatpush1.msra.mxu0 %v242
    %3025 = vmatprep.subr.mxu0 %v239
    %3026 = vmatpush1.msra.mxu0 %v238
    %3027 = vmatprep.subr.mxu0 %v235
    %3028 = vmatpush1.msra.mxu0 %v234
    %3029 = vmatprep.subr.mxu0 %v231
    %3030 = vmatpush1.msra.mxu0 %v230
    %3031 = vmatprep.subr.mxu0 %v227
    %3032 = vmatpush1.msra.mxu0 %v226
    %3033 = vmatprep.subr.mxu0 %v223
    %3034 = vmatpush1.msra.mxu0 %v222
    %3035 = vmatprep.subr.mxu0 %v219
    %3036 = vmatpush1.msra.mxu0 %v218
    %3037 = vmatprep.subr.mxu0 %v215
    %3038 = vmatpush1.msra.mxu0 %v214
    %3039 = vmatprep.subr.mxu0 %v211
    %3040 = vmatpush1.msra.mxu0 %v210
    %3041 = vmatprep.subr.mxu0 %v207
    %3042 = vmatpush1.msra.mxu0 %v206
    %3043 = vmatprep.subr.mxu0 %v203
    %3044 = vmatpush1.msra.mxu0 %v202
    %3045 = vmatprep.subr.mxu0 %v199
    %3046 = vmatpush1.msra.mxu0 %v198
    %3047 = vmatprep.subr.mxu0 %v195
    %3048 = vmatpush1.msra.mxu0 %v194
    %3049 = vmatprep.subr.mxu0 %v319
    %3050 = vmatpush2.msra.mxu0 %v318
    %3051 = vmatprep.subr.mxu0 %v315
    %3052 = vmatpush2.msra.mxu0 %v314
    %3053 = vmatprep.subr.mxu0 %v311
    %3054 = vmatpush2.msra.mxu0 %v310
    %3055 = vmatprep.subr.mxu0 %v307
    %3056 = vmatpush2.msra.mxu0 %v306
    %3057 = vmatprep.subr.mxu0 %v303
    %3058 = vmatpush2.msra.mxu0 %v302
    %3059 = vmatprep.subr.mxu0 %v299
    %3060 = vmatpush2.msra.mxu0 %v298
    %3061 = vmatprep.subr.mxu0 %v295
    %3062 = vmatpush2.msra.mxu0 %v294
    %3063 = vmatprep.subr.mxu0 %v291
    %3064 = vmatpush2.msra.mxu0 %v290
    %3065 = vmatprep.subr.mxu0 %v287
    %3066 = vmatpush2.msra.mxu0 %v286
    %3067 = vmatprep.subr.mxu0 %v283
    %3068 = vmatpush2.msra.mxu0 %v282
    %3069 = vmatprep.subr.mxu0 %v279
    %3070 = vmatpush2.msra.mxu0 %v278
    %3071 = vmatprep.subr.mxu0 %v275
    %3072 = vmatpush2.msra.mxu0 %v274
    %3073 = vmatprep.subr.mxu0 %v271
    %3074 = vmatpush2.msra.mxu0 %v270
    %3075 = vmatprep.subr.mxu0 %v267
    %3076 = vmatpush2.msra.mxu0 %v266
    %3077 = vmatprep.subr.mxu0 %v263
    %3078 = vmatpush2.msra.mxu0 %v262
    %3079 = vmatprep.subr.mxu0 %v259
    %3080 = vmatpush2.msra.mxu0 %v258
    %3081 = vmatprep.mubr.f32.mxu0 %v2214
    %3082 = vmatmul.mubr.f32.gmra.mxu0 %v2943
    %v3083 = vpop.f32.mrf.mxu0
    %v3084 = vadd.f32 %v462, %v3083
    %v3085 = vpop.f32.mrf.mxu0
    %v3086 = vadd.f32 %v466, %v3085
    %3087 = vdwg.mxu0
    %v3088 = vxor.u32 %v3013, 2147483648
    %v3089 = vmul.f32 %v3088, 1.442695
    %v3090 = vpow.pop %v3089
    %v3091 = vadd.f32 %v3090, 1.0
    %v3092 = vrcp.pop %v3091
    %v3093 = vmul.f32 1.0, %v3092
    %v3094 = vxor.u32 %v3015, 2147483648
    %v3095 = vmul.f32 %v3094, 1.442695
    %v3096 = vpow.pop %v3095
    %v3097 = vadd.f32 %v3096, 1.0
    %v3098 = vrcp.pop %v3097
    %v3099 = vmul.f32 1.0, %v3098
    %v3100 = vtanh.pop %v3084
    %v3101 = vxor.u32 %v3086, 2147483648
    %v3102 = vmul.f32 %v3101, 1.442695
    %v3103 = vpow.pop %v3102
    %v3104 = vadd.f32 %v3103, 1.0
    %v3105 = vrcp.pop %v3104
    %v3106 = vmul.f32 1.0, %v3105
    %v3107 = vmul.f32 %v3099, %v2212
    %v3108 = vmul.f32 %v3093, %v3100
    %v3109 = vadd.f32 %v3107, %v3108
    %v3110 = vtanh.pop %v3109
    %v3111 = vmul.f32 %v3106, %v3110
    %3112 = vmatprep.subr.mxu0 %v382
    %3113 = vmatpush1.msra.mxu0 %v381
    %3114 = vmatprep.subr.mxu0 %v378
    %3115 = vmatpush1.msra.mxu0 %v377
    %3116 = vmatprep.subr.mxu0 %v374
    %3117 = vmatpush1.msra.mxu0 %v373
    %3118 = vmatprep.subr.mxu0 %v370
    %3119 = vmatpush1.msra.mxu0 %v369
    %3120 = vmatprep.subr.mxu0 %v366
    %3121 = vmatpush1.msra.mxu0 %v365
    %3122 = vmatprep.subr.mxu0 %v362
    %3123 = vmatpush1.msra.mxu0 %v361
    %3124 = vmatprep.subr.mxu0 %v358
    %3125 = vmatpush1.msra.mxu0 %v357
    %3126 = vmatprep.subr.mxu0 %v354
    %3127 = vmatpush1.msra.mxu0 %v353
    %3128 = vmatprep.subr.mxu0 %v350
    %3129 = vmatpush1.msra.mxu0 %v349
    %3130 = vmatprep.subr.mxu0 %v346
    %3131 = vmatpush1.msra.mxu0 %v345
    %3132 = vmatprep.subr.mxu0 %v342
    %3133 = vmatpush1.msra.mxu0 %v341
    %3134 = vmatprep.subr.mxu0 %v338
    %3135 = vmatpush1.msra.mxu0 %v337
    %3136 = vmatprep.subr.mxu0 %v334
    %3137 = vmatpush1.msra.mxu0 %v333
    %3138 = vmatprep.subr.mxu0 %v330
    %3139 = vmatpush1.msra.mxu0 %v329
    %3140 = vmatprep.subr.mxu0 %v326
    %3141 = vmatpush1.msra.mxu0 %v325
    %3142 = vmatprep.subr.mxu0 %v322
    %3143 = vmatpush1.msra.mxu0 %v321
    %3144 = vmatprep.subr.mxu0 %v446
    %3145 = vmatpush2.msra.mxu0 %v445
    %3146 = vmatprep.subr.mxu0 %v442
    %3147 = vmatpush2.msra.mxu0 %v441
    %3148 = vmatprep.subr.mxu0 %v438
    %3149 = vmatpush2.msra.mxu0 %v437
    %3150 = vmatprep.subr.mxu0 %v434
    %3151 = vmatpush2.msra.mxu0 %v433
    %3152 = vmatprep.subr.mxu0 %v430
    %3153 = vmatpush2.msra.mxu0 %v429
    %3154 = vmatprep.subr.mxu0 %v426
    %3155 = vmatpush2.msra.mxu0 %v425
    %3156 = vmatprep.subr.mxu0 %v422
    %3157 = vmatpush2.msra.mxu0 %v421
    %3158 = vmatprep.subr.mxu0 %v418
    %3159 = vmatpush2.msra.mxu0 %v417
    %3160 = vmatprep.subr.mxu0 %v414
    %3161 = vmatpush2.msra.mxu0 %v413
    %3162 = vmatprep.subr.mxu0 %v410
    %3163 = vmatpush2.msra.mxu0 %v409
    %3164 = vmatprep.subr.mxu0 %v406
    %3165 = vmatpush2.msra.mxu0 %v405
    %3166 = vmatprep.subr.mxu0 %v402
    %3167 = vmatpush2.msra.mxu0 %v401
    %3168 = vmatprep.subr.mxu0 %v398
    %3169 = vmatpush2.msra.mxu0 %v397
    %3170 = vmatprep.subr.mxu0 %v394
    %3171 = vmatpush2.msra.mxu0 %v393
    %3172 = vmatprep.subr.mxu0 %v390
    %3173 = vmatpush2.msra.mxu0 %v389
    %3174 = vmatprep.subr.mxu0 %v386
    %3175 = vmatpush2.msra.mxu0 %v385
    %3176 = vmatprep.mubr.f32.mxu0 %v2380
    %3177 = vmatmul.mubr.f32.gmra.mxu0 %v3111
    %v3178 = vpop.f32.mrf.mxu0
    %v3179 = vadd.f32 %v477, %v3178
    %v3180 = vpop.f32.mrf.mxu0
    %v3181 = vadd.f32 %v481, %v3180
    %3182 = vdwg.mxu0
    %3183 = vmatprep.subr.mxu0 %v384
    %3184 = vmatpush1.msra.mxu0 %v383
    %3185 = vmatprep.subr.mxu0 %v380
    %3186 = vmatpush1.msra.mxu0 %v379
    %3187 = vmatprep.subr.mxu0 %v376
    %3188 = vmatpush1.msra.mxu0 %v375
    %3189 = vmatprep.subr.mxu0 %v372
    %3190 = vmatpush1.msra.mxu0 %v371
    %3191 = vmatprep.subr.mxu0 %v368
    %3192 = vmatpush1.msra.mxu0 %v367
    %3193 = vmatprep.subr.mxu0 %v364
    %3194 = vmatpush1.msra.mxu0 %v363
    %3195 = vmatprep.subr.mxu0 %v360
    %3196 = vmatpush1.msra.mxu0 %v359
    %3197 = vmatprep.subr.mxu0 %v356
    %3198 = vmatpush1.msra.mxu0 %v355
    %3199 = vmatprep.subr.mxu0 %v352
    %3200 = vmatpush1.msra.mxu0 %v351
    %3201 = vmatprep.subr.mxu0 %v348
    %3202 = vmatpush1.msra.mxu0 %v347
    %3203 = vmatprep.subr.mxu0 %v344
    %3204 = vmatpush1.msra.mxu0 %v343
    %3205 = vmatprep.subr.mxu0 %v340
    %3206 = vmatpush1.msra.mxu0 %v339
    %3207 = vmatprep.subr.mxu0 %v336
    %3208 = vmatpush1.msra.mxu0 %v335
    %3209 = vmatprep.subr.mxu0 %v332
    %3210 = vmatpush1.msra.mxu0 %v331
    %3211 = vmatprep.subr.mxu0 %v328
    %3212 = vmatpush1.msra.mxu0 %v327
    %3213 = vmatprep.subr.mxu0 %v324
    %3214 = vmatpush1.msra.mxu0 %v323
    %3215 = vmatprep.subr.mxu0 %v448
    %3216 = vmatpush2.msra.mxu0 %v447
    %3217 = vmatprep.subr.mxu0 %v444
    %3218 = vmatpush2.msra.mxu0 %v443
    %3219 = vmatprep.subr.mxu0 %v440
    %3220 = vmatpush2.msra.mxu0 %v439
    %3221 = vmatprep.subr.mxu0 %v436
    %3222 = vmatpush2.msra.mxu0 %v435
    %3223 = vmatprep.subr.mxu0 %v432
    %3224 = vmatpush2.msra.mxu0 %v431
    %3225 = vmatprep.subr.mxu0 %v428
    %3226 = vmatpush2.msra.mxu0 %v427
    %3227 = vmatprep.subr.mxu0 %v424
    %3228 = vmatpush2.msra.mxu0 %v423
    %3229 = vmatprep.subr.mxu0 %v420
    %3230 = vmatpush2.msra.mxu0 %v419
    %3231 = vmatprep.subr.mxu0 %v416
    %3232 = vmatpush2.msra.mxu0 %v415
    %3233 = vmatprep.subr.mxu0 %v412
    %3234 = vmatpush2.msra.mxu0 %v411
    %3235 = vmatprep.subr.mxu0 %v408
    %3236 = vmatpush2.msra.mxu0 %v407
    %3237 = vmatprep.subr.mxu0 %v404
    %3238 = vmatpush2.msra.mxu0 %v403
    %3239 = vmatprep.subr.mxu0 %v400
    %3240 = vmatpush2.msra.mxu0 %v399
    %3241 = vmatprep.subr.mxu0 %v396
    %3242 = vmatpush2.msra.mxu0 %v395
    %3243 = vmatprep.subr.mxu0 %v392
    %3244 = vmatpush2.msra.mxu0 %v391
    %3245 = vmatprep.subr.mxu0 %v388
    %3246 = vmatpush2.msra.mxu0 %v387
    %3247 = vmatprep.mubr.f32.mxu0 %v2380
    %3248 = vmatmul.mubr.f32.gmra.mxu0 %v3111
    %v3249 = vpop.f32.mrf.mxu0
    %v3250 = vadd.f32 %v485, %v3249
    %v3251 = vpop.f32.mrf.mxu0
    %v3252 = vadd.f32 %v489, %v3251
    %3253 = vdwg.mxu0
    %v3254 = vxor.u32 %v3179, 2147483648
    %v3255 = vmul.f32 %v3254, 1.442695
    %v3256 = vpow.pop %v3255
    %v3257 = vadd.f32 %v3256, 1.0
    %v3258 = vrcp.pop %v3257
    %v3259 = vmul.f32 1.0, %v3258
    %v3260 = vxor.u32 %v3181, 2147483648
    %v3261 = vmul.f32 %v3260, 1.442695
    %v3262 = vpow.pop %v3261
    %v3263 = vadd.f32 %v3262, 1.0
    %v3264 = vrcp.pop %v3263
    %v3265 = vmul.f32 1.0, %v3264
    %v3266 = vtanh.pop %v3250
    %v3267 = vxor.u32 %v3252, 2147483648
    %v3268 = vmul.f32 %v3267, 1.442695
    %v3269 = vpow.pop %v3268
    %v3270 = vadd.f32 %v3269, 1.0
    %v3271 = vrcp.pop %v3270
    %v3272 = vmul.f32 1.0, %v3271
    %v3273 = vmul.f32 %v3265, %v2378
    %v3274 = vmul.f32 %v3259, %v3266
    %v3275 = vadd.f32 %v3273, %v3274
    %v3276 = vtanh.pop %v3275
    %v3277 = vmul.f32 %v3272, %v3276
    %3278 = vmatprep.subr.mxu0 0.0
    %3279 = vmatpush1.msra.mxu0 %v113
    %3280 = vmatprep.subr.mxu0 0.0
    %3281 = vmatpush1.msra.mxu0 %v112
    %3282 = vmatprep.subr.mxu0 0.0
    %3283 = vmatpush1.msra.mxu0 %v111
    %3284 = vmatprep.subr.mxu0 0.0
    %3285 = vmatpush1.msra.mxu0 %v110
    %3286 = vmatprep.subr.mxu0 0.0
    %3287 = vmatpush1.msra.mxu0 %v109
    %3288 = vmatprep.subr.mxu0 0.0
    %3289 = vmatpush1.msra.mxu0 %v108
    %3290 = vmatprep.subr.mxu0 0.0
    %3291 = vmatpush1.msra.mxu0 %v107
    %3292 = vmatprep.subr.mxu0 0.0
    %3293 = vmatpush1.msra.mxu0 %v106
    %3294 = vmatprep.subr.mxu0 0.0
    %3295 = vmatpush1.msra.mxu0 %v105
    %3296 = vmatprep.subr.mxu0 0.0
    %3297 = vmatpush1.msra.mxu0 %v104
    %3298 = vmatprep.subr.mxu0 0.0
    %3299 = vmatpush1.msra.mxu0 %v103
    %3300 = vmatprep.subr.mxu0 0.0
    %3301 = vmatpush1.msra.mxu0 %v102
    %3302 = vmatprep.subr.mxu0 0.0
    %3303 = vmatpush1.msra.mxu0 %v101
    %3304 = vmatprep.subr.mxu0 0.0
    %3305 = vmatpush1.msra.mxu0 %v100
    %3306 = vmatprep.subr.mxu0 0.0
    %3307 = vmatpush1.msra.mxu0 %v99
    %3308 = vmatprep.subr.mxu0 0.0
    %3309 = vmatpush1.msra.mxu0 %v98
    %3310 = vmatprep.subr.mxu0 0.0
    %3311 = vmatpush2.msra.mxu0 0.0
    %3312 = vmatprep.subr.mxu0 0.0
    %3313 = vmatpush2.msra.mxu0 0.0
    %3314 = vmatprep.subr.mxu0 0.0
    %3315 = vmatpush2.msra.mxu0 0.0
    %3316 = vmatprep.subr.mxu0 0.0
    %3317 = vmatpush2.msra.mxu0 0.0
    %3318 = vmatprep.subr.mxu0 0.0
    %3319 = vmatpush2.msra.mxu0 0.0
    %3320 = vmatprep.subr.mxu0 0.0
    %3321 = vmatpush2.msra.mxu0 0.0
    %3322 = vmatprep.subr.mxu0 0.0
    %3323 = vmatpush2.msra.mxu0 0.0
    %3324 = vmatprep.subr.mxu0 0.0
    %3325 = vmatpush2.msra.mxu0 0.0
    %3326 = vmatprep.subr.mxu0 0.0
    %3327 = vmatpush2.msra.mxu0 0.0
    %3328 = vmatprep.subr.mxu0 0.0
    %3329 = vmatpush2.msra.mxu0 0.0
    %3330 = vmatprep.subr.mxu0 0.0
    %3331 = vmatpush2.msra.mxu0 0.0
    %3332 = vmatprep.subr.mxu0 0.0
    %3333 = vmatpush2.msra.mxu0 0.0
    %3334 = vmatprep.subr.mxu0 0.0
    %3335 = vmatpush2.msra.mxu0 0.0
    %3336 = vmatprep.subr.mxu0 0.0
    %3337 = vmatpush2.msra.mxu0 0.0
    %3338 = vmatprep.subr.mxu0 0.0
    %3339 = vmatpush2.msra.mxu0 0.0
    %3340 = vmatprep.subr.mxu0 0.0
    %3341 = vmatpush2.msra.mxu0 0.0
    %3342 = vmatprep.mubr.f32.mxu0 0.0
    %3343 = vmatmul.mubr.f32.gmra.mxu0 %v3277
    %v3344 = vpop.f32.mrf.mxu0
    %v3345 = vadd.f32 %v183, %v3344
    %v3346 = vpop.f32.mrf.mxu0
    %3347 = vdwg.mxu0
    %v3348 = vtanh.pop %v3345
    %v3351 = vunpack.c.l.s4 1966171168
    %v3352 = vunpack.c.0.s8 %v3351
    %v3353 = vlaneseq
    %v3354 = vshrl.u32 %v3353, 7
    %v3355 = vsub.s32 %v3352, %v3354
    %v3356 = vrot.slane %v3348, %v3355
    %v3357 = vcombine.high %v3356, %v3356
    %v3359 = vunpack.c.l.s4 1966171168
    %v3360 = vunpack.c.0.s8 %v3359
    %v3361 = vlaneseq
    %v3362 = vshrl.u32 %v3361, 7
    %v3363 = vsub.s32 %v3360, %v3362
    %v3364 = vrot.slane %v3356, %v3363
    %v3366 = vunpack.c.l.s4 1966171168
    %v3367 = vunpack.c.0.s8 %v3366
    %v3368 = vlaneseq
    %v3369 = vshrl.u32 %v3368, 7
    %v3370 = vsub.s32 %v3367, %v3369
    %v3371 = vrot.slane %v3357, %v3370
    %3374 = vmatprep.subr.mxu0 0.0
    %3375 = vmatpush1.xpose.msra.mxu0 0.0
    %3376 = vmatprep.subr.mxu0 0.0
    %3377 = vmatpush1.xpose.msra.mxu0 0.0
    %3378 = vmatprep.subr.mxu0 0.0
    %3379 = vmatpush1.xpose.msra.mxu0 0.0
    %3380 = vmatprep.subr.mxu0 0.0
    %3381 = vmatpush1.xpose.msra.mxu0 0.0
    %3382 = vmatprep.subr.mxu0 0.0
    %3383 = vmatpush1.xpose.msra.mxu0 0.0
    %3384 = vmatprep.subr.mxu0 0.0
    %3385 = vmatpush1.xpose.msra.mxu0 0.0
    %3386 = vmatprep.subr.mxu0 0.0
    %3387 = vmatpush1.xpose.msra.mxu0 0.0
    %3388 = vmatprep.subr.mxu0 0.0
    %3389 = vmatpush1.xpose.msra.mxu0 0.0
    %3390 = vmatprep.subr.mxu0 0.0
    %3391 = vmatpush1.xpose.msra.mxu0 0.0
    %3392 = vmatprep.subr.mxu0 0.0
    %3393 = vmatpush1.xpose.msra.mxu0 0.0
    %3394 = vmatprep.subr.mxu0 0.0
    %3395 = vmatpush1.xpose.msra.mxu0 0.0
    %3396 = vmatprep.subr.mxu0 0.0
    %3397 = vmatpush1.xpose.msra.mxu0 0.0
    %3398 = vmatprep.subr.mxu0 0.0
    %3399 = vmatpush1.xpose.msra.mxu0 0.0
    %3400 = vmatprep.subr.mxu0 0.0
    %3401 = vmatpush1.xpose.msra.mxu0 0.0
    %3402 = vmatprep.subr.mxu0 0.0
    %3403 = vmatpush1.xpose.msra.mxu0 0.0
    %3404 = vmatprep.subr.mxu0 0.0
    %3405 = vmatpush1.xpose.msra.mxu0 %v586
    %3406 = vmatprep.subr.mxu0 0.0
    %3407 = vmatpush2.xpose.msra.mxu0 0.0
    %3408 = vmatprep.subr.mxu0 0.0
    %3409 = vmatpush2.xpose.msra.mxu0 0.0
    %3410 = vmatprep.subr.mxu0 0.0
    %3411 = vmatpush2.xpose.msra.mxu0 0.0
    %3412 = vmatprep.subr.mxu0 0.0
    %3413 = vmatpush2.xpose.msra.mxu0 0.0
    %3414 = vmatprep.subr.mxu0 0.0
    %3415 = vmatpush2.xpose.msra.mxu0 0.0
    %3416 = vmatprep.subr.mxu0 0.0
    %3417 = vmatpush2.xpose.msra.mxu0 0.0
    %3418 = vmatprep.subr.mxu0 0.0
    %3419 = vmatpush2.xpose.msra.mxu0 0.0
    %3420 = vmatprep.subr.mxu0 0.0
    %3421 = vmatpush2.xpose.msra.mxu0 0.0
    %3422 = vmatprep.subr.mxu0 0.0
    %3423 = vmatpush2.xpose.msra.mxu0 0.0
    %3424 = vmatprep.subr.mxu0 0.0
    %3425 = vmatpush2.xpose.msra.mxu0 0.0
    %3426 = vmatprep.subr.mxu0 0.0
    %3427 = vmatpush2.xpose.msra.mxu0 0.0
    %3428 = vmatprep.subr.mxu0 0.0
    %3429 = vmatpush2.xpose.msra.mxu0 0.0
    %3430 = vmatprep.subr.mxu0 0.0
    %3431 = vmatpush2.xpose.msra.mxu0 0.0
    %3432 = vmatprep.subr.mxu0 0.0
    %3433 = vmatpush2.xpose.msra.mxu0 0.0
    %3434 = vmatprep.subr.mxu0 0.0
    %3435 = vmatpush2.xpose.msra.mxu0 0.0
    %3436 = vmatprep.subr.mxu0 0.0
    %3437 = vmatpush2.xpose.msra.mxu0 0.0
    %3438 = vmatprep.mubr.f32.mxu0 0.0
    %3439 = vmatmul.mubr.f32.gmra.mxu0 %v3364
    %v3440 = vpop.f32.mrf.mxu0
    %v3441 = vadd.f32 0.0, %v3440
    %v3442 = vpop.f32.mrf.mxu0
    %3443 = vdwg.mxu0
    %3444 = vmatprep.subr.mxu0 0.0
    %3445 = vmatpush1.xpose.msra.mxu0 0.0
    %3446 = vmatprep.subr.mxu0 0.0
    %3447 = vmatpush1.xpose.msra.mxu0 0.0
    %3448 = vmatprep.subr.mxu0 0.0
    %3449 = vmatpush1.xpose.msra.mxu0 0.0
    %3450 = vmatprep.subr.mxu0 0.0
    %3451 = vmatpush1.xpose.msra.mxu0 0.0
    %3452 = vmatprep.subr.mxu0 0.0
    %3453 = vmatpush1.xpose.msra.mxu0 0.0
    %3454 = vmatprep.subr.mxu0 0.0
    %3455 = vmatpush1.xpose.msra.mxu0 0.0
    %3456 = vmatprep.subr.mxu0 0.0
    %3457 = vmatpush1.xpose.msra.mxu0 0.0
    %3458 = vmatprep.subr.mxu0 0.0
    %3459 = vmatpush1.xpose.msra.mxu0 0.0
    %3460 = vmatprep.subr.mxu0 0.0
    %3461 = vmatpush1.xpose.msra.mxu0 0.0
    %3462 = vmatprep.subr.mxu0 0.0
    %3463 = vmatpush1.xpose.msra.mxu0 0.0
    %3464 = vmatprep.subr.mxu0 0.0
    %3465 = vmatpush1.xpose.msra.mxu0 0.0
    %3466 = vmatprep.subr.mxu0 0.0
    %3467 = vmatpush1.xpose.msra.mxu0 0.0
    %3468 = vmatprep.subr.mxu0 0.0
    %3469 = vmatpush1.xpose.msra.mxu0 0.0
    %3470 = vmatprep.subr.mxu0 0.0
    %3471 = vmatpush1.xpose.msra.mxu0 0.0
    %3472 = vmatprep.subr.mxu0 0.0
    %3473 = vmatpush1.xpose.msra.mxu0 0.0
    %3474 = vmatprep.subr.mxu0 0.0
    %3475 = vmatpush1.xpose.msra.mxu0 %v588
    %3476 = vmatprep.subr.mxu0 0.0
    %3477 = vmatpush2.xpose.msra.mxu0 0.0
    %3478 = vmatprep.subr.mxu0 0.0
    %3479 = vmatpush2.xpose.msra.mxu0 0.0
    %3480 = vmatprep.subr.mxu0 0.0
    %3481 = vmatpush2.xpose.msra.mxu0 0.0
    %3482 = vmatprep.subr.mxu0 0.0
    %3483 = vmatpush2.xpose.msra.mxu0 0.0
    %3484 = vmatprep.subr.mxu0 0.0
    %3485 = vmatpush2.xpose.msra.mxu0 0.0
    %3486 = vmatprep.subr.mxu0 0.0
    %3487 = vmatpush2.xpose.msra.mxu0 0.0
    %3488 = vmatprep.subr.mxu0 0.0
    %3489 = vmatpush2.xpose.msra.mxu0 0.0
    %3490 = vmatprep.subr.mxu0 0.0
    %3491 = vmatpush2.xpose.msra.mxu0 0.0
    %3492 = vmatprep.subr.mxu0 0.0
    %3493 = vmatpush2.xpose.msra.mxu0 0.0
    %3494 = vmatprep.subr.mxu0 0.0
    %3495 = vmatpush2.xpose.msra.mxu0 0.0
    %3496 = vmatprep.subr.mxu0 0.0
    %3497 = vmatpush2.xpose.msra.mxu0 0.0
    %3498 = vmatprep.subr.mxu0 0.0
    %3499 = vmatpush2.xpose.msra.mxu0 0.0
    %3500 = vmatprep.subr.mxu0 0.0
    %3501 = vmatpush2.xpose.msra.mxu0 0.0
    %3502 = vmatprep.subr.mxu0 0.0
    %3503 = vmatpush2.xpose.msra.mxu0 0.0
    %3504 = vmatprep.subr.mxu0 0.0
    %3505 = vmatpush2.xpose.msra.mxu0 0.0
    %3506 = vmatprep.subr.mxu0 0.0
    %3507 = vmatpush2.xpose.msra.mxu0 0.0
    %3508 = vmatprep.mubr.f32.mxu0 0.0
    %3509 = vmatmul.mubr.f32.gmra.mxu0 %v3371
    %v3510 = vpop.f32.mrf.mxu0
    %v3511 = vadd.f32 0.0, %v3510
    %v3512 = vpop.f32.mrf.mxu0
    %3513 = vdwg.mxu0
    %v3514 = vsel %vm903, %v3441, -inf
    %3515 = vmax.xlane.f32.xlu0 %v3514
    %v3516 = vpop.xlane.xlu0 %3515
    %v3517 = vsel %vm903, %v3511, -inf
    %3518 = vmax.xlane.f32.xlu0 %v3517
    %v3519 = vpop.xlane.xlu0 %3518
    %v3520 = vsub.f32 %v3441, %v3516
    %v3521 = vsub.f32 %v3511, %v3519
    %v3522 = vmul.f32 %v3520, 1.442695
    %v3523 = vpow.pop %v3522
    %v3524 = vmul.f32 %v3521, 1.442695
    %v3525 = vpow.pop %v3524
    %v3526 = vsel %vm903, %v3523, 0.0
    %3527 = vadd.xlane.f32.xlu0 %v3526
    %v3528 = vpop.xlane.xlu0 %3527
    %v3529 = vsel %vm903, %v3525, 0.0
    %3530 = vadd.xlane.f32.xlu0 %v3529
    %v3531 = vpop.xlane.xlu0 %3530
    %v3532 = vrcp.pop %v3528
    %v3533 = vmul.f32 %v3523, %v3532
    %v3534 = vrcp.pop %v3531
    %v3535 = vmul.f32 %v3525, %v3534
    %v3536 = vadd.f32 %v3533, %v84
    %v3537 = vadd.f32 %v3535, %v91
    %v3539 = vsel %vm928, %v3536, 0
    %3541 = vmatprep.subr.mxu0 0.0
    %3542 = vmatpush1.msra.mxu0 0.0
    %3543 = vmatprep.subr.mxu0 0.0
    %3544 = vmatpush1.msra.mxu0 0.0
    %3545 = vmatprep.subr.mxu0 0.0
    %3546 = vmatpush1.msra.mxu0 0.0
    %3547 = vmatprep.subr.mxu0 0.0
    %3548 = vmatpush1.msra.mxu0 0.0
    %3549 = vmatprep.subr.mxu0 0.0
    %3550 = vmatpush1.msra.mxu0 0.0
    %3551 = vmatprep.subr.mxu0 0.0
    %3552 = vmatpush1.msra.mxu0 0.0
    %3553 = vmatprep.subr.mxu0 0.0
    %3554 = vmatpush1.msra.mxu0 0.0
    %3555 = vmatprep.subr.mxu0 0.0
    %3556 = vmatpush1.msra.mxu0 0.0
    %3557 = vmatprep.subr.mxu0 0.0
    %3558 = vmatpush1.msra.mxu0 0.0
    %3559 = vmatprep.subr.mxu0 0.0
    %3560 = vmatpush1.msra.mxu0 0.0
    %3561 = vmatprep.subr.mxu0 0.0
    %3562 = vmatpush1.msra.mxu0 0.0
    %3563 = vmatprep.subr.mxu0 0.0
    %3564 = vmatpush1.msra.mxu0 0.0
    %3565 = vmatprep.subr.mxu0 0.0
    %3566 = vmatpush1.msra.mxu0 0.0
    %3567 = vmatprep.subr.mxu0 0.0
    %3568 = vmatpush1.msra.mxu0 0.0
    %3569 = vmatprep.subr.mxu0 0.0
    %3570 = vmatpush1.msra.mxu0 0.0
    %3571 = vmatprep.subr.mxu0 0.0
    %3572 = vmatpush1.msra.mxu0 %v587
    %3573 = vmatprep.subr.mxu0 0.0
    %3574 = vmatpush2.msra.mxu0 0.0
    %3575 = vmatprep.subr.mxu0 0.0
    %3576 = vmatpush2.msra.mxu0 0.0
    %3577 = vmatprep.subr.mxu0 0.0
    %3578 = vmatpush2.msra.mxu0 0.0
    %3579 = vmatprep.subr.mxu0 0.0
    %3580 = vmatpush2.msra.mxu0 0.0
    %3581 = vmatprep.subr.mxu0 0.0
    %3582 = vmatpush2.msra.mxu0 0.0
    %3583 = vmatprep.subr.mxu0 0.0
    %3584 = vmatpush2.msra.mxu0 0.0
    %3585 = vmatprep.subr.mxu0 0.0
    %3586 = vmatpush2.msra.mxu0 0.0
    %3587 = vmatprep.subr.mxu0 0.0
    %3588 = vmatpush2.msra.mxu0 0.0
    %3589 = vmatprep.subr.mxu0 0.0
    %3590 = vmatpush2.msra.mxu0 0.0
    %3591 = vmatprep.subr.mxu0 0.0
    %3592 = vmatpush2.msra.mxu0 0.0
    %3593 = vmatprep.subr.mxu0 0.0
    %3594 = vmatpush2.msra.mxu0 0.0
    %3595 = vmatprep.subr.mxu0 0.0
    %3596 = vmatpush2.msra.mxu0 0.0
    %3597 = vmatprep.subr.mxu0 0.0
    %3598 = vmatpush2.msra.mxu0 0.0
    %3599 = vmatprep.subr.mxu0 0.0
    %3600 = vmatpush2.msra.mxu0 0.0
    %3601 = vmatprep.subr.mxu0 0.0
    %3602 = vmatpush2.msra.mxu0 0.0
    %3603 = vmatprep.subr.mxu0 0.0
    %3604 = vmatpush2.msra.mxu0 0.0
    %3605 = vmatprep.mubr.f32.mxu0 0.0
    %3606 = vmatmul.mubr.f32.gmra.mxu0 %v3539
    %v3607 = vpop.f32.mrf.mxu0
    %v3608 = vadd.f32 0.0, %v3607
    %v3609 = vpop.f32.mrf.mxu0
    %3610 = vdwg.mxu0
    %v3612 = vsel %vm928, %v3537, 0
    %3614 = vmatprep.subr.mxu0 0.0
    %3615 = vmatpush1.msra.mxu0 0.0
    %3616 = vmatprep.subr.mxu0 0.0
    %3617 = vmatpush1.msra.mxu0 0.0
    %3618 = vmatprep.subr.mxu0 0.0
    %3619 = vmatpush1.msra.mxu0 0.0
    %3620 = vmatprep.subr.mxu0 0.0
    %3621 = vmatpush1.msra.mxu0 0.0
    %3622 = vmatprep.subr.mxu0 0.0
    %3623 = vmatpush1.msra.mxu0 0.0
    %3624 = vmatprep.subr.mxu0 0.0
    %3625 = vmatpush1.msra.mxu0 0.0
    %3626 = vmatprep.subr.mxu0 0.0
    %3627 = vmatpush1.msra.mxu0 0.0
    %3628 = vmatprep.subr.mxu0 0.0
    %3629 = vmatpush1.msra.mxu0 0.0
    %3630 = vmatprep.subr.mxu0 0.0
    %3631 = vmatpush1.msra.mxu0 0.0
    %3632 = vmatprep.subr.mxu0 0.0
    %3633 = vmatpush1.msra.mxu0 0.0
    %3634 = vmatprep.subr.mxu0 0.0
    %3635 = vmatpush1.msra.mxu0 0.0
    %3636 = vmatprep.subr.mxu0 0.0
    %3637 = vmatpush1.msra.mxu0 0.0
    %3638 = vmatprep.subr.mxu0 0.0
    %3639 = vmatpush1.msra.mxu0 0.0
    %3640 = vmatprep.subr.mxu0 0.0
    %3641 = vmatpush1.msra.mxu0 0.0
    %3642 = vmatprep.subr.mxu0 0.0
    %3643 = vmatpush1.msra.mxu0 0.0
    %3644 = vmatprep.subr.mxu0 0.0
    %3645 = vmatpush1.msra.mxu0 %v589
    %3646 = vmatprep.subr.mxu0 0.0
    %3647 = vmatpush2.msra.mxu0 0.0
    %3648 = vmatprep.subr.mxu0 0.0
    %3649 = vmatpush2.msra.mxu0 0.0
    %3650 = vmatprep.subr.mxu0 0.0
    %3651 = vmatpush2.msra.mxu0 0.0
    %3652 = vmatprep.subr.mxu0 0.0
    %3653 = vmatpush2.msra.mxu0 0.0
    %3654 = vmatprep.subr.mxu0 0.0
    %3655 = vmatpush2.msra.mxu0 0.0
    %3656 = vmatprep.subr.mxu0 0.0
    %3657 = vmatpush2.msra.mxu0 0.0
    %3658 = vmatprep.subr.mxu0 0.0
    %3659 = vmatpush2.msra.mxu0 0.0
    %3660 = vmatprep.subr.mxu0 0.0
    %3661 = vmatpush2.msra.mxu0 0.0
    %3662 = vmatprep.subr.mxu0 0.0
    %3663 = vmatpush2.msra.mxu0 0.0
    %3664 = vmatprep.subr.mxu0 0.0
    %3665 = vmatpush2.msra.mxu0 0.0
    %3666 = vmatprep.subr.mxu0 0.0
    %3667 = vmatpush2.msra.mxu0 0.0
    %3668 = vmatprep.subr.mxu0 0.0
    %3669 = vmatpush2.msra.mxu0 0.0
    %3670 = vmatprep.subr.mxu0 0.0
    %3671 = vmatpush2.msra.mxu0 0.0
    %3672 = vmatprep.subr.mxu0 0.0
    %3673 = vmatpush2.msra.mxu0 0.0
    %3674 = vmatprep.subr.mxu0 0.0
    %3675 = vmatpush2.msra.mxu0 0.0
    %3676 = vmatprep.subr.mxu0 0.0
    %3677 = vmatpush2.msra.mxu0 0.0
    %3678 = vmatprep.mubr.f32.mxu0 0.0
    %3679 = vmatmul.mubr.f32.gmra.mxu0 %v3612
    %v3680 = vpop.f32.mrf.mxu0
    %v3681 = vadd.f32 0.0, %v3680
    %v3682 = vpop.f32.mrf.mxu0
    %3683 = vdwg.mxu0
    %v3686 = vrot.slane %v3681, 7
    %v3687 = vsel %vm1078, %v3686, %v3608
    %3689 = vmatprep.subr.mxu0 0.0
    %3690 = vmatpush1.msra.mxu0 %v161
    %3691 = vmatprep.subr.mxu0 0.0
    %3692 = vmatpush1.msra.mxu0 %v160
    %3693 = vmatprep.subr.mxu0 0.0
    %3694 = vmatpush1.msra.mxu0 %v159
    %3695 = vmatprep.subr.mxu0 0.0
    %3696 = vmatpush1.msra.mxu0 %v158
    %3697 = vmatprep.subr.mxu0 0.0
    %3698 = vmatpush1.msra.mxu0 %v157
    %3699 = vmatprep.subr.mxu0 0.0
    %3700 = vmatpush1.msra.mxu0 %v156
    %3701 = vmatprep.subr.mxu0 0.0
    %3702 = vmatpush1.msra.mxu0 %v155
    %3703 = vmatprep.subr.mxu0 0.0
    %3704 = vmatpush1.msra.mxu0 %v154
    %3705 = vmatprep.subr.mxu0 0.0
    %3706 = vmatpush1.msra.mxu0 %v153
    %3707 = vmatprep.subr.mxu0 0.0
    %3708 = vmatpush1.msra.mxu0 %v152
    %3709 = vmatprep.subr.mxu0 0.0
    %3710 = vmatpush1.msra.mxu0 %v151
    %3711 = vmatprep.subr.mxu0 0.0
    %3712 = vmatpush1.msra.mxu0 %v150
    %3713 = vmatprep.subr.mxu0 0.0
    %3714 = vmatpush1.msra.mxu0 %v149
    %3715 = vmatprep.subr.mxu0 0.0
    %3716 = vmatpush1.msra.mxu0 %v148
    %3717 = vmatprep.subr.mxu0 0.0
    %3718 = vmatpush1.msra.mxu0 %v147
    %3719 = vmatprep.subr.mxu0 0.0
    %3720 = vmatpush1.msra.mxu0 %v146
    %3721 = vmatprep.subr.mxu0 0.0
    %3722 = vmatpush2.msra.mxu0 %v177
    %3723 = vmatprep.subr.mxu0 0.0
    %3724 = vmatpush2.msra.mxu0 %v176
    %3725 = vmatprep.subr.mxu0 0.0
    %3726 = vmatpush2.msra.mxu0 %v175
    %3727 = vmatprep.subr.mxu0 0.0
    %3728 = vmatpush2.msra.mxu0 %v174
    %3729 = vmatprep.subr.mxu0 0.0
    %3730 = vmatpush2.msra.mxu0 %v173
    %3731 = vmatprep.subr.mxu0 0.0
    %3732 = vmatpush2.msra.mxu0 %v172
    %3733 = vmatprep.subr.mxu0 0.0
    %3734 = vmatpush2.msra.mxu0 %v171
    %3735 = vmatprep.subr.mxu0 0.0
    %3736 = vmatpush2.msra.mxu0 %v170
    %3737 = vmatprep.subr.mxu0 0.0
    %3738 = vmatpush2.msra.mxu0 %v169
    %3739 = vmatprep.subr.mxu0 0.0
    %3740 = vmatpush2.msra.mxu0 %v168
    %3741 = vmatprep.subr.mxu0 0.0
    %3742 = vmatpush2.msra.mxu0 %v167
    %3743 = vmatprep.subr.mxu0 0.0
    %3744 = vmatpush2.msra.mxu0 %v166
    %3745 = vmatprep.subr.mxu0 0.0
    %3746 = vmatpush2.msra.mxu0 %v165
    %3747 = vmatprep.subr.mxu0 0.0
    %3748 = vmatpush2.msra.mxu0 %v164
    %3749 = vmatprep.subr.mxu0 0.0
    %3750 = vmatpush2.msra.mxu0 %v163
    %3751 = vmatprep.subr.mxu0 0.0
    %3752 = vmatpush2.msra.mxu0 %v162
    %3753 = vmatprep.mubr.f32.mxu0 %v3277
    %3754 = vmatmul.mubr.f32.gmra.mxu0 %v3687
    %v3755 = vpop.f32.mrf.mxu0
    %v3756 = vadd.f32 %v190, %v3755
    %v3757 = vpop.f32.mrf.mxu0
    %3758 = vdwg.mxu0
    %3760 = vrot.lane.b32.xlu0 %v1961, 32
    %v3761 = vpop.permute.xlu0 %3760
    %3764 = vrot.lane.b32.xlu0 %v2859, 64
    %v3765 = vpop.permute.xlu0 %3764
    %3768 = vrot.lane.b32.xlu0 %v3756, 96
    %v3769 = vpop.permute.xlu0 %3768
    %v3771 = vsel %vm593, %v1148, %v3761
    %vm3772 = vcmask 523264
    %v3773 = vsel %vm3772, %v3771, %v3765
    %vm3774 = vcmask 785408
    %v3775 = vsel %vm3774, %v3773, %v3769
    %3776 = vst [vmem:[%s11] sm:$0x3] %v3775
    // Predicated region
    $region54: #{forward.1} parent=1 // pred_check
      _
    $region55: #{forward.1} parent=1 // pred_check_branch
      %3778 = sbr.rel (0) target = $region57
    $region56: #{forward.1} parent=1 // pred_region
      _
    $region57: #{forward.1} parent=1 // pred_fallthru
      _
    // Predicated region
    $region58: #{forward.1} parent=1 // pred_check
      _
    $region59: #{forward.1} parent=1 // pred_check_branch
      %3780 = sbr.rel (0) target = $region61
    $region60: #{forward.1} parent=1 // pred_region
      _
    $region61: #{forward.1} parent=1 // pred_fallthru
      _
    %3781 = vsyncpa [#allocation3], 1
    %3782 = vsyncpa [#allocation5], 1

</llo_original>
